<compile_context>
chip_gen: v7x
topology: tpu7x:2x2x1
jax: 0.10.0
libtpu: 0.0.40
codegen_flags: <defaults>
</compile_context>

<pallas_src>
from functools import partial

import numpy as np
import jax
import jax.numpy as jnp
from jax.experimental import pallas as pl
from jax.experimental.pallas import tpu as pltpu

F32 = jnp.float32
LANE = 128      # lane width; adim is chosen == LANE so activations are lane-dense
HALO = 2        # max conv half-width (K=5 -> pad 2)

# TODO(synk): get_feature_to_index_lookup() source not provided; indices are synthetic.
VOICED_IDX = 60
SILENCE_IDX = 61


def _vmem_spec():
    # Whole-array block resident in VMEM (all shapes here are small).
    return pl.BlockSpec(memory_space=pltpu.MemorySpace.VMEM)


# ------------------------------ in-kernel helpers ---------------------------

def _im2col(x, K, buf_ref, T):
    """Build the [T, K*C] im2col slab for a 'same' conv with odd K.

    `buf_ref` is a zero-initialized VMEM scratch of shape [T + 2*HALO, C]; x is
    written into its interior rows so the halo rows provide the zero padding.
    """
    pad = (K - 1) // 2
    buf_ref[HALO:HALO + T, :] = x
    cols = [buf_ref[HALO - pad + k: HALO - pad + k + T, :] for k in range(K)]
    return jnp.concatenate(cols, axis=1)


def _scale_variance(seq, scale):
    """Faithful to torch _scale_variance on a [T, 1] sequence (batch 1)."""
    if scale == 1.0:
        return seq
    mask = (seq != 0.0).astype(F32)
    cnt = jnp.maximum(jnp.sum(mask, axis=0, keepdims=True), 1.0)   # [1, 1]
    avg = jnp.sum(seq * mask, axis=0, keepdims=True) / cnt          # [1, 1]
    out = (seq - avg) * scale + avg
    return jnp.maximum(out, 0.0)    # negatives clamped to 0, as in the torch loop


# ------------------------------ Pallas kernel 1 ------------------------------
# encoder input layer + fused FVAE heads + variance adaptor, all resident in VMEM

def _encoder_va_kernel(text_ref, z_ref,
                       w1_ref, b1_ref, w2_ref, b2_ref,
                       hcw_ref, hcb_ref, hzw_ref,
                       pew_ref, peb_ref, eew_ref, eeb_ref,
                       enc_ref, aux_ref,
                       buf_ref,
                       *, T, pitch_scale, energy_scale):
    buf_ref[...] = jnp.zeros(buf_ref.shape, F32)

    text = text_ref[...]

    # encoder input layer: Linear(idim, 100) -> Tanh -> Linear(100, adim)
    # TODO(synk): Conformer encoder blocks (MHSA / conv modules / lang & utt
    # conditioning) source not provided; only the input_layer Sequential is real.
    h = jnp.tanh(jnp.dot(text, w1_ref[...], preferred_element_type=F32) + b1_ref[...])
    encoded = jnp.dot(h, w2_ref[...], preferred_element_type=F32) + b2_ref[...]   # [T, adim]

    # fused FVAE-decoder stand-in heads (pitch / energy / duration): one im2col
    # matmul for the cond convs (K padded to 5) + one matmul for the 1x1 z convs.
    # TODO(synk): FVAE encoder/decoder (WN conv stacks, cln) source not provided.
    cols = _im2col(encoded, 5, buf_ref, T)                                         # [T, 5*adim]
    heads = (jnp.dot(cols, hcw_ref[...], preferred_element_type=F32)
             + jnp.dot(z_ref[...], hzw_ref[...], preferred_element_type=F32)
             + hcb_ref[...])                                                       # [T, 3]

    pitch = heads[:, 0:1]
    energy = heads[:, 1:2]
    dur_raw = heads[:, 2:3]

    # voiced masking over phoneme feature vectors (before variance scaling, as in torch)
    voiced = (text[:, VOICED_IDX:VOICED_IDX + 1] != 0.0).astype(F32)
    pitch = pitch * voiced

    # variance scaling (faithful to _scale_variance)
    pitch = _scale_variance(pitch, pitch_scale)
    energy = _scale_variance(energy, energy_scale)

    # pitch / energy embedding convs (kernel_size=1) + fused residual add
    emb_p = pitch * pew_ref[...] + peb_ref[...]     # [T,1]*[1,adim] broadcast == 1x1 conv
    emb_e = energy * eew_ref[...] + eeb_ref[...]
    enc_ref[...] = encoded + emb_e + emb_p

    # lane-dense auxiliary output: lane 0 = pitch, 1 = energy, 2 = raw duration head
    aux_ref[...] = jnp.concatenate(
        [pitch, energy, dur_raw, jnp.zeros((T, LANE - 3), F32)], axis=1)


def _encoder_variance_call(text, z, p, *, pitch_scale, energy_scale):
    T = text.shape[0]
    adim = p["embed_w2"].shape[1]
    args = (text, z,
            p["embed_w1"], p["embed_b1"], p["embed_w2"], p["embed_b2"],
            p["head_cond_w"], p["head_cond_b"], p["head_z_w"],
            p["pitch_embed_w"], p["pitch_embed_b"],
            p["energy_embed_w"], p["energy_embed_b"])
    kernel = partial(_encoder_va_kernel, T=T,
                     pitch_scale=float(pitch_scale), energy_scale=float(energy_scale))
    return pl.pallas_call(
        kernel,
        out_shape=(jax.ShapeDtypeStruct((T, adim), F32),
                   jax.ShapeDtypeStruct((T, LANE), F32)),
        in_specs=[_vmem_spec()] * len(args),
        out_specs=(_vmem_spec(), _vmem_spec()),
        scratch_shapes=[pltpu.VMEM((T + 2 * HALO, adim), F32)],
    )(*args)


# ------------------------------ Pallas kernel 2 ------------------------------
# decoder conv stack + out_proj + run_post_glow stand-in, all resident in VMEM

def _decoder_kernel(x_ref, valid_ref,
                    w0_ref, b0_ref, w1_ref, b1_ref, wp_ref, bp_ref,
                    opw_ref, opb_ref, gpw_ref, gpb_ref, flw_ref, flb_ref,
                    before_ref, after_ref,
                    buf_a_ref, buf_c_ref,
                    *, T):
    buf_a_ref[...] = jnp.zeros(buf_a_ref.shape, F32)
    buf_c_ref[...] = jnp.zeros(buf_c_ref.shape, F32)

    valid = valid_ref[...]                       # [T, 1] 1/0 mask of real frames
    x = x_ref[...] * valid                       # length-regulated conditioning

    # decoder ConvBlocks stand-in: 2 residual tanh conv layers (K=5) + post conv (K=3)
    # TODO(synk): ConvBlocks (cln norm, dilations, dropout) source not provided.
    h = x
    h = (h + jnp.tanh(jnp.dot(_im2col(h, 5, buf_a_ref, T), w0_ref[...],
                              preferred_element_type=F32) + b0_ref[...])) * valid
    h = (h + jnp.tanh(jnp.dot(_im2col(h, 5, buf_a_ref, T), w1_ref[...],
                              preferred_element_type=F32) + b1_ref[...])) * valid
    h = (jnp.dot(_im2col(h, 3, buf_a_ref, T), wp_ref[...],
                 preferred_element_type=F32) + bp_ref[...]) * valid

    # out_proj: Conv1d(adim, odim, 1); odim padded to 128 lanes for a lane-dense store
    before = (jnp.dot(h, opw_ref[...], preferred_element_type=F32) + opb_ref[...]) * valid

    # run_post_glow: g_proj (K=5) on concat([mel_out, encoded_texts]) then flow
    # TODO(synk): Glow reverse flow source not provided; stand-in residual projection
    # of the conditioning `g` (z_post ~ N(0, 0.8^2) is not consumed).
    g_in = jnp.concatenate([before, x], axis=1)                                    # [T, LANE+adim]
    g = (jnp.dot(_im2col(g_in, 5, buf_c_ref, T), gpw_ref[...],
                 preferred_element_type=F32) + gpb_ref[...])                       # [T, adim]
    after = (before + jnp.tanh(jnp.dot(g, flw_ref[...],
                                       preferred_element_type=F32) + flb_ref[...])) * valid

    before_ref[...] = before
    after_ref[...] = after


def _decoder_call(expanded, valid_f, p):
    MF, adim = expanded.shape
    args = (expanded, valid_f,
            p["dec_w0"], p["dec_b0"], p["dec_w1"], p["dec_b1"],
            p["dec_post_w"], p["dec_post_b"],
            p["out_proj_w"], p["out_proj_b"],
            p["g_proj_w"], p["g_proj_b"],
            p["flow_w"], p["flow_b"])
    kernel = partial(_decoder_kernel, T=MF)
    return pl.pallas_call(
        kernel,
        out_shape=(jax.ShapeDtypeStruct((MF, LANE), F32),
                   jax.ShapeDtypeStruct((MF, LANE), F32)),
        in_specs=[_vmem_spec()] * len(args),
        out_specs=(_vmem_spec(), _vmem_spec()),
        scratch_shapes=[pltpu.VMEM((MF + 2 * HALO, adim), F32),
                        pltpu.VMEM((MF + 2 * HALO, LANE + adim), F32)],
    )(*args)


# ------------------------------- jitted forward ------------------------------

@partial(jax.jit, static_argnames=("duration_scaling_factor", "pitch_variance_scale",
                                   "energy_variance_scale", "pause_duration_scaling_factor",
                                   "max_frames", "odim"))
def portaspeech_forward(text, utterance_embedding, params, key,
                        duration_scaling_factor=1.0,
                        pitch_variance_scale=1.0,
                        energy_variance_scale=1.0,
                        pause_duration_scaling_factor=1.0,
                        max_frames=64,
                        odim=80):
    """text: [T, idim] float32; utterance_embedding: [utt_dim] (unused stand-in).

    Returns (after, before, durations, pitch, energy, total_frames); `after` and
    `before` are padded to `max_frames` rows, the first `total_frames` are valid.
    """
    # TODO(synk): utterance_embedding conditioning lives inside Conformer/FVAE (cln),
    # whose source is not provided; it is not consumed here.
    T, _ = text.shape

    # prior samples for the three FVAE heads (pitch / energy / duration)
    z = jax.random.normal(key, (T, params["head_z_w"].shape[0]), dtype=F32)

    # ---- stage 1 (single fused Pallas kernel) ----
    enc_plus, aux = _encoder_variance_call(
        text, z, params,
        pitch_scale=pitch_variance_scale, energy_scale=energy_variance_scale)
    pitch = aux[:, 0:1]
    energy = aux[:, 1:2]
    dur_raw = aux[:, 2]

    # ---- durations usable for inference ----
    # TODO(synk): make_estimated_durations_usable_for_inference source not provided;
    # stand-in: round(exp(.)) clipped to [1, 4].
    durations = jnp.clip(jnp.round(jnp.exp(dur_raw)), 1.0, 4.0)
    if pause_duration_scaling_factor != 1.0:
        sil = text[:, SILENCE_IDX] == 1.0
        durations = jnp.where(sil, jnp.round(durations * pause_duration_scaling_factor),
                              durations)
    if duration_scaling_factor != 1.0:
        # TODO(synk): LengthRegulator scaling source not provided; standard round(d*alpha).
        durations = jnp.maximum(jnp.round(durations * duration_scaling_factor), 0.0)
    durations = durations.astype(jnp.int32)

    # ---- length regulator: device-side expansion to a static frame budget ----
    # (no host sync: token id of frame f = #(cumsum <= f); frames >= total are masked)
    csum = jnp.cumsum(durations)
    total_frames = csum[-1]
    frames = jnp.arange(max_frames, dtype=jnp.int32)
    tok = jnp.sum((frames[:, None] >= csum[None, :]).astype(jnp.int32), axis=1)
    tok = jnp.minimum(tok, T - 1)
    valid = frames < total_frames
    expanded = jnp.where(valid[:, None], jnp.take(enc_plus, tok, axis=0), 0.0)
    valid_f = valid.astype(F32)[:, None]

    # ---- stage 2 (single fused Pallas kernel) ----
    before_p, after_p = _decoder_call(expanded, valid_f, params)
    before = before_p[:, :odim]
    after = after_p[:, :odim]

    return after, before, durations, pitch, energy, total_frames


# ------------------------------ parameter init ------------------------------

def init_params(key, idim, adim, odim, c_latent):
    keys = iter(jax.random.split(key, 64))

    def lin(shape, fan_in=None):
        if fan_in is None:
            fan_in = int(np.prod(shape[:-1]))
        return (1.0 / np.sqrt(max(fan_in, 1))) * jax.random.normal(next(keys), shape, dtype=F32)

    def bias(*shape):
        return jnp.zeros(shape, dtype=F32)

    def pad_lanes(w, width=LANE):
        return jnp.concatenate([w, jnp.zeros((w.shape[0], width - w.shape[1]), F32)], axis=1)

    # fused FVAE-decoder head cond convs, im2col layout [5*adim, 3]
    # (pitch K=5 uses all taps; energy/duration K=3 use the center taps 1..3)
    pitch_col = lin((5 * adim, 1))
    energy_col = jnp.concatenate([jnp.zeros((adim, 1), F32), lin((3 * adim, 1)),
                                  jnp.zeros((adim, 1), F32)], axis=0)
    dur_col = jnp.concatenate([jnp.zeros((adim, 1), F32), lin((3 * adim, 1)),
                               jnp.zeros((adim, 1), F32)], axis=0)
    head_cond_w = jnp.concatenate([pitch_col, energy_col, dur_col], axis=1)

    # block-diagonal 1x1 z convs for the three heads: [3*c_latent, 3]
    head_z_w = jnp.zeros((3 * c_latent, 3), F32)
    for i in range(3):
        head_z_w = head_z_w.at[i * c_latent:(i + 1) * c_latent, i:i + 1].set(lin((c_latent, 1)))

    # g_proj: Conv1d(odim + adim, adim, 5) in im2col layout over [before_pad128 | encoded]
    g_taps = []
    for _ in range(5):
        wb = jnp.concatenate([lin((odim, adim), fan_in=5 * (odim + adim)),
                              jnp.zeros((LANE - odim, adim), F32)], axis=0)
        we = lin((adim, adim), fan_in=5 * (odim + adim))
        g_taps.append(jnp.concatenate([wb, we], axis=0))
    g_proj_w = jnp.concatenate(g_taps, axis=0)           # [5*(LANE+adim), adim]

    p = {
        # encoder input embedding: Linear(idim,100) -> Tanh -> Linear(100, adim)
        "embed_w1": lin((idim, 100)), "embed_b1": bias(1, 100),
        "embed_w2": lin((100, adim)), "embed_b2": bias(1, adim),
        # fused FVAE-decoder stand-in heads
        "head_cond_w": head_cond_w, "head_cond_b": bias(1, 3),
        "head_z_w": head_z_w,
        # pitch / energy embeds: Conv1d(1, adim, 1)
        "pitch_embed_w": lin((1, adim)), "pitch_embed_b": bias(1, adim),
        "energy_embed_w": lin((1, adim)), "energy_embed_b": bias(1, adim),
        # decoder stand-in convs (kernel 5, 5, post 3) in im2col layout
        "dec_w0": lin((5 * adim, adim)), "dec_b0": bias(1, adim),
        "dec_w1": lin((5 * adim, adim)), "dec_b1": bias(1, adim),
        "dec_post_w": lin((3 * adim, adim)), "dec_post_b": bias(1, adim),
        # out_proj: Conv1d(adim, odim, 1), output padded to 128 lanes
        "out_proj_w": pad_lanes(lin((adim, odim))), "out_proj_b": bias(1, LANE),
        # g_proj: Conv1d(odim + adim, adim, 5, padding=2)
        "g_proj_w": g_proj_w, "g_proj_b": bias(1, adim),
        # post-flow stand-in projection adim -> odim (padded to 128 lanes)
        "flow_w": pad_lanes(lin((adim, odim))), "flow_b": bias(1, LANE),
    }
    return p


# ----------------------------------- main -----------------------------------

if __name__ == "__main__":
    idim, adim, odim, T = 62, 128, 80, 16     # small shapes consistent with the module
    c_latent = adim // 12                     # 10
    max_frames = 4 * T                        # static budget: duration stand-in clips at 4

    root = jax.random.PRNGKey(0)
    k_params, k_text, k_utt, k_z = jax.random.split(root, 4)

    params = init_params(k_params, idim, adim, odim, c_latent)

    text = jax.random.normal(k_text, (T, idim), dtype=F32)
    # make the synthetic "voiced" flag column binary so the masking path is exercised
    text = text.at[:, VOICED_IDX].set(1.0)
    text = text.at[0, VOICED_IDX].set(0.0)
    text = text.at[:, SILENCE_IDX].set(0.0)

    utterance_embedding = jax.random.normal(k_utt, (256,), dtype=F32)

    after, before, durations, pitch, energy, total = portaspeech_forward(
        text, utterance_embedding, params, k_z,
        duration_scaling_factor=1.0,
        pitch_variance_scale=1.2,
        energy_variance_scale=1.2,
        pause_duration_scaling_factor=1.0,
        max_frames=max_frames,
        odim=odim,
    )

    jax.block_until_ready((after, before, durations, pitch, energy, total))

    assert after.shape == (max_frames, odim) and before.shape == after.shape
    assert durations.shape == (T,) and pitch.shape == (T, 1) and energy.shape == (T, 1)
    assert T <= int(total) <= max_frames
    assert bool(jnp.all(jnp.isfinite(after))) and bool(jnp.all(jnp.isfinite(before)))
    print("KERNEL_OK")
</pallas_src>

<mosaic_0001>
module attributes {stable_mosaic.version = 11 : i64} {
  func.func @_decoder_kernel(%arg0: memref<64x128xf32, #tpu.memory_space<vmem>>, %arg1: memref<64x1xf32, #tpu.memory_space<vmem>>, %arg2: memref<640x128xf32, #tpu.memory_space<vmem>>, %arg3: memref<1x128xf32, #tpu.memory_space<vmem>>, %arg4: memref<640x128xf32, #tpu.memory_space<vmem>>, %arg5: memref<1x128xf32, #tpu.memory_space<vmem>>, %arg6: memref<384x128xf32, #tpu.memory_space<vmem>>, %arg7: memref<1x128xf32, #tpu.memory_space<vmem>>, %arg8: memref<128x128xf32, #tpu.memory_space<vmem>>, %arg9: memref<1x128xf32, #tpu.memory_space<vmem>>, %arg10: memref<1280x128xf32, #tpu.memory_space<vmem>>, %arg11: memref<1x128xf32, #tpu.memory_space<vmem>>, %arg12: memref<128x128xf32, #tpu.memory_space<vmem>>, %arg13: memref<1x128xf32, #tpu.memory_space<vmem>>, %arg14: memref<64x128xf32, #tpu.memory_space<vmem>>, %arg15: memref<64x128xf32, #tpu.memory_space<vmem>>, %arg16: memref<68x128xf32, #tpu.memory_space<vmem>>, %arg17: memref<68x256xf32, #tpu.memory_space<vmem>>) attributes {dimension_semantics = [], scalar_prefetch = 0 : i64, scratch_operands = 2 : i64, tpu.core_type = #tpu.core_type<tc>} {
    %cst = arith.constant 0.000000e+00 : f32
    %0 = vector.broadcast %cst : f32 to vector<68x128xf32>
    %c0 = arith.constant 0 : index
    %c0_0 = arith.constant 0 : index
    %1 = vector.load %arg16[%c0, %c0_0] : memref<68x128xf32, #tpu.memory_space<vmem>>, vector<68x128xf32>
    tpu.vector_store %arg16[%c0, %c0_0], %0 {strides = array<i32>} : memref<68x128xf32, #tpu.memory_space<vmem>>, vector<68x128xf32>,
    %cst_1 = arith.constant 0.000000e+00 : f32
    %2 = vector.broadcast %cst_1 : f32 to vector<68x256xf32>
    %c0_2 = arith.constant 0 : index
    %c0_3 = arith.constant 0 : index
    %3 = vector.load %arg17[%c0_2, %c0_3] : memref<68x256xf32, #tpu.memory_space<vmem>>, vector<68x256xf32>
    tpu.vector_store %arg17[%c0_2, %c0_3], %2 {strides = array<i32>} : memref<68x256xf32, #tpu.memory_space<vmem>>, vector<68x256xf32>,
    %c0_4 = arith.constant 0 : index
    %c0_5 = arith.constant 0 : index
    %4 = vector.load %arg1[%c0_4, %c0_5] : memref<64x1xf32, #tpu.memory_space<vmem>>, vector<64x1xf32>
    %c0_6 = arith.constant 0 : index
    %c0_7 = arith.constant 0 : index
    %5 = vector.load %arg0[%c0_6, %c0_7] : memref<64x128xf32, #tpu.memory_space<vmem>>, vector<64x128xf32>
    %6 = vector.broadcast %4 : vector<64x1xf32> to vector<64x128xf32>
    %7 = arith.mulf %5, %6 : vector<64x128xf32>
    %c2 = arith.constant 2 : index
    %c0_8 = arith.constant 0 : index
    %8 = vector.load %arg16[%c2, %c0_8] : memref<68x128xf32, #tpu.memory_space<vmem>>, vector<64x128xf32>
    tpu.vector_store %arg16[%c2, %c0_8], %7 {strides = array<i32>} : memref<68x128xf32, #tpu.memory_space<vmem>>, vector<64x128xf32>,
    %c0_9 = arith.constant 0 : index
    %c0_10 = arith.constant 0 : index
    %9 = vector.load %arg16[%c0_9, %c0_10] : memref<68x128xf32, #tpu.memory_space<vmem>>, vector<64x128xf32>
    %c1 = arith.constant 1 : index
    %c0_11 = arith.constant 0 : index
    %10 = vector.load %arg16[%c1, %c0_11] : memref<68x128xf32, #tpu.memory_space<vmem>>, vector<64x128xf32>
    %c2_12 = arith.constant 2 : index
    %c0_13 = arith.constant 0 : index
    %11 = vector.load %arg16[%c2_12, %c0_13] : memref<68x128xf32, #tpu.memory_space<vmem>>, vector<64x128xf32>
    %c3 = arith.constant 3 : index
    %c0_14 = arith.constant 0 : index
    %12 = vector.load %arg16[%c3, %c0_14] : memref<68x128xf32, #tpu.memory_space<vmem>>, vector<64x128xf32>
    %c4 = arith.constant 4 : index
    %c0_15 = arith.constant 0 : index
    %13 = vector.load %arg16[%c4, %c0_15] : memref<68x128xf32, #tpu.memory_space<vmem>>, vector<64x128xf32>
    %14 = tpu.concatenate %9, %10, %11, %12, %13 in 1 : vector<64x128xf32>, vector<64x128xf32>, vector<64x128xf32>, vector<64x128xf32>, vector<64x128xf32> -> vector<64x640xf32>
    %c0_16 = arith.constant 0 : index
    %c0_17 = arith.constant 0 : index
    %15 = vector.load %arg2[%c0_16, %c0_17] : memref<640x128xf32, #tpu.memory_space<vmem>>, vector<640x128xf32>
    %cst_18 = arith.constant dense<0.000000e+00> : vector<64x128xf32>
    %16 = tpu.matmul %14, %15, %cst_18 {dimension_numbers = #tpu.dot_dimension_numbers<[1], [0], [0], [1], [0, 0, 1, 1], [], []>} : vector<64x640xf32>, vector<640x128xf32>, vector<64x128xf32> -> vector<64x128xf32>
    %c0_19 = arith.constant 0 : index
    %c0_20 = arith.constant 0 : index
    %17 = vector.load %arg3[%c0_19, %c0_20] : memref<1x128xf32, #tpu.memory_space<vmem>>, vector<1x128xf32>
    %18 = vector.broadcast %17 : vector<1x128xf32> to vector<64x128xf32>
    %19 = arith.addf %16, %18 : vector<64x128xf32>
    %20 = math.tanh %19 : vector<64x128xf32>
    %21 = arith.addf %7, %20 : vector<64x128xf32>
    %22 = vector.broadcast %4 : vector<64x1xf32> to vector<64x128xf32>
    %23 = arith.mulf %21, %22 : vector<64x128xf32>
    %c2_21 = arith.constant 2 : index
    %c0_22 = arith.constant 0 : index
    %24 = vector.load %arg16[%c2_21, %c0_22] : memref<68x128xf32, #tpu.memory_space<vmem>>, vector<64x128xf32>
    tpu.vector_store %arg16[%c2_21, %c0_22], %23 {strides = array<i32>} : memref<68x128xf32, #tpu.memory_space<vmem>>, vector<64x128xf32>,
    %c0_23 = arith.constant 0 : index
    %c0_24 = arith.constant 0 : index
    %25 = vector.load %arg16[%c0_23, %c0_24] : memref<68x128xf32, #tpu.memory_space<vmem>>, vector<64x128xf32>
    %c1_25 = arith.constant 1 : index
    %c0_26 = arith.constant 0 : index
    %26 = vector.load %arg16[%c1_25, %c0_26] : memref<68x128xf32, #tpu.memory_space<vmem>>, vector<64x128xf32>
    %c2_27 = arith.constant 2 : index
    %c0_28 = arith.constant 0 : index
    %27 = vector.load %arg16[%c2_27, %c0_28] : memref<68x128xf32, #tpu.memory_space<vmem>>, vector<64x128xf32>
    %c3_29 = arith.constant 3 : index
    %c0_30 = arith.constant 0 : index
    %28 = vector.load %arg16[%c3_29, %c0_30] : memref<68x128xf32, #tpu.memory_space<vmem>>, vector<64x128xf32>
    %c4_31 = arith.constant 4 : index
    %c0_32 = arith.constant 0 : index
    %29 = vector.load %arg16[%c4_31, %c0_32] : memref<68x128xf32, #tpu.memory_space<vmem>>, vector<64x128xf32>
    %30 = tpu.concatenate %25, %26, %27, %28, %29 in 1 : vector<64x128xf32>, vector<64x128xf32>, vector<64x128xf32>, vector<64x128xf32>, vector<64x128xf32> -> vector<64x640xf32>
    %c0_33 = arith.constant 0 : index
    %c0_34 = arith.constant 0 : index
    %31 = vector.load %arg4[%c0_33, %c0_34] : memref<640x128xf32, #tpu.memory_space<vmem>>, vector<640x128xf32>
    %cst_35 = arith.constant dense<0.000000e+00> : vector<64x128xf32>
    %32 = tpu.matmul %30, %31, %cst_35 {dimension_numbers = #tpu.dot_dimension_numbers<[1], [0], [0], [1], [0, 0, 1, 1], [], []>} : vector<64x640xf32>, vector<640x128xf32>, vector<64x128xf32> -> vector<64x128xf32>
    %c0_36 = arith.constant 0 : index
    %c0_37 = arith.constant 0 : index
    %33 = vector.load %arg5[%c0_36, %c0_37] : memref<1x128xf32, #tpu.memory_space<vmem>>, vector<1x128xf32>
    %34 = vector.broadcast %33 : vector<1x128xf32> to vector<64x128xf32>
    %35 = arith.addf %32, %34 : vector<64x128xf32>
    %36 = math.tanh %35 : vector<64x128xf32>
    %37 = arith.addf %23, %36 : vector<64x128xf32>
    %38 = vector.broadcast %4 : vector<64x1xf32> to vector<64x128xf32>
    %39 = arith.mulf %37, %38 : vector<64x128xf32>
    %c2_38 = arith.constant 2 : index
    %c0_39 = arith.constant 0 : index
    %40 = vector.load %arg16[%c2_38, %c0_39] : memref<68x128xf32, #tpu.memory_space<vmem>>, vector<64x128xf32>
    tpu.vector_store %arg16[%c2_38, %c0_39], %39 {strides = array<i32>} : memref<68x128xf32, #tpu.memory_space<vmem>>, vector<64x128xf32>,
    %c1_40 = arith.constant 1 : index
    %c0_41 = arith.constant 0 : index
    %41 = vector.load %arg16[%c1_40, %c0_41] : memref<68x128xf32, #tpu.memory_space<vmem>>, vector<64x128xf32>
    %c2_42 = arith.constant 2 : index
    %c0_43 = arith.constant 0 : index
    %42 = vector.load %arg16[%c2_42, %c0_43] : memref<68x128xf32, #tpu.memory_space<vmem>>, vector<64x128xf32>
    %c3_44 = arith.constant 3 : index
    %c0_45 = arith.constant 0 : index
    %43 = vector.load %arg16[%c3_44, %c0_45] : memref<68x128xf32, #tpu.memory_space<vmem>>, vector<64x128xf32>
    %44 = tpu.concatenate %41, %42, %43 in 1 : vector<64x128xf32>, vector<64x128xf32>, vector<64x128xf32> -> vector<64x384xf32>
    %c0_46 = arith.constant 0 : index
    %c0_47 = arith.constant 0 : index
    %45 = vector.load %arg6[%c0_46, %c0_47] : memref<384x128xf32, #tpu.memory_space<vmem>>, vector<384x128xf32>
    %cst_48 = arith.constant dense<0.000000e+00> : vector<64x128xf32>
    %46 = tpu.matmul %44, %45, %cst_48 {dimension_numbers = #tpu.dot_dimension_numbers<[1], [0], [0], [1], [0, 0, 1, 1], [], []>} : vector<64x384xf32>, vector<384x128xf32>, vector<64x128xf32> -> vector<64x128xf32>
    %c0_49 = arith.constant 0 : index
    %c0_50 = arith.constant 0 : index
    %47 = vector.load %arg7[%c0_49, %c0_50] : memref<1x128xf32, #tpu.memory_space<vmem>>, vector<1x128xf32>
    %48 = vector.broadcast %47 : vector<1x128xf32> to vector<64x128xf32>
    %49 = arith.addf %46, %48 : vector<64x128xf32>
    %50 = vector.broadcast %4 : vector<64x1xf32> to vector<64x128xf32>
    %51 = arith.mulf %49, %50 : vector<64x128xf32>
    %c0_51 = arith.constant 0 : index
    %c0_52 = arith.constant 0 : index
    %52 = vector.load %arg8[%c0_51, %c0_52] : memref<128x128xf32, #tpu.memory_space<vmem>>, vector<128x128xf32>
    %cst_53 = arith.constant dense<0.000000e+00> : vector<64x128xf32>
    %53 = tpu.matmul %51, %52, %cst_53 {dimension_numbers = #tpu.dot_dimension_numbers<[1], [0], [0], [1], [0, 0, 1, 1], [], []>} : vector<64x128xf32>, vector<128x128xf32>, vector<64x128xf32> -> vector<64x128xf32>
    %c0_54 = arith.constant 0 : index
    %c0_55 = arith.constant 0 : index
    %54 = vector.load %arg9[%c0_54, %c0_55] : memref<1x128xf32, #tpu.memory_space<vmem>>, vector<1x128xf32>
    %55 = vector.broadcast %54 : vector<1x128xf32> to vector<64x128xf32>
    %56 = arith.addf %53, %55 : vector<64x128xf32>
    %57 = vector.broadcast %4 : vector<64x1xf32> to vector<64x128xf32>
    %58 = arith.mulf %56, %57 : vector<64x128xf32>
    %59 = tpu.concatenate %58, %7 in 1 : vector<64x128xf32>, vector<64x128xf32> -> vector<64x256xf32>
    %c2_56 = arith.constant 2 : index
    %c0_57 = arith.constant 0 : index
    %60 = vector.load %arg17[%c2_56, %c0_57] : memref<68x256xf32, #tpu.memory_space<vmem>>, vector<64x256xf32>
    tpu.vector_store %arg17[%c2_56, %c0_57], %59 {strides = array<i32>} : memref<68x256xf32, #tpu.memory_space<vmem>>, vector<64x256xf32>,
    %c0_58 = arith.constant 0 : index
    %c0_59 = arith.constant 0 : index
    %61 = vector.load %arg17[%c0_58, %c0_59] : memref<68x256xf32, #tpu.memory_space<vmem>>, vector<64x256xf32>
    %c1_60 = arith.constant 1 : index
    %c0_61 = arith.constant 0 : index
    %62 = vector.load %arg17[%c1_60, %c0_61] : memref<68x256xf32, #tpu.memory_space<vmem>>, vector<64x256xf32>
    %c2_62 = arith.constant 2 : index
    %c0_63 = arith.constant 0 : index
    %63 = vector.load %arg17[%c2_62, %c0_63] : memref<68x256xf32, #tpu.memory_space<vmem>>, vector<64x256xf32>
    %c3_64 = arith.constant 3 : index
    %c0_65 = arith.constant 0 : index
    %64 = vector.load %arg17[%c3_64, %c0_65] : memref<68x256xf32, #tpu.memory_space<vmem>>, vector<64x256xf32>
    %c4_66 = arith.constant 4 : index
    %c0_67 = arith.constant 0 : index
    %65 = vector.load %arg17[%c4_66, %c0_67] : memref<68x256xf32, #tpu.memory_space<vmem>>, vector<64x256xf32>
    %66 = tpu.concatenate %61, %62, %63, %64, %65 in 1 : vector<64x256xf32>, vector<64x256xf32>, vector<64x256xf32>, vector<64x256xf32>, vector<64x256xf32> -> vector<64x1280xf32>
    %c0_68 = arith.constant 0 : index
    %c0_69 = arith.constant 0 : index
    %67 = vector.load %arg10[%c0_68, %c0_69] : memref<1280x128xf32, #tpu.memory_space<vmem>>, vector<1280x128xf32>
    %cst_70 = arith.constant dense<0.000000e+00> : vector<64x128xf32>
    %68 = tpu.matmul %66, %67, %cst_70 {dimension_numbers = #tpu.dot_dimension_numbers<[1], [0], [0], [1], [0, 0, 1, 1], [], []>} : vector<64x1280xf32>, vector<1280x128xf32>, vector<64x128xf32> -> vector<64x128xf32>
    %c0_71 = arith.constant 0 : index
    %c0_72 = arith.constant 0 : index
    %69 = vector.load %arg11[%c0_71, %c0_72] : memref<1x128xf32, #tpu.memory_space<vmem>>, vector<1x128xf32>
    %70 = vector.broadcast %69 : vector<1x128xf32> to vector<64x128xf32>
    %71 = arith.addf %68, %70 : vector<64x128xf32>
    %c0_73 = arith.constant 0 : index
    %c0_74 = arith.constant 0 : index
    %72 = vector.load %arg12[%c0_73, %c0_74] : memref<128x128xf32, #tpu.memory_space<vmem>>, vector<128x128xf32>
    %cst_75 = arith.constant dense<0.000000e+00> : vector<64x128xf32>
    %73 = tpu.matmul %71, %72, %cst_75 {dimension_numbers = #tpu.dot_dimension_numbers<[1], [0], [0], [1], [0, 0, 1, 1], [], []>} : vector<64x128xf32>, vector<128x128xf32>, vector<64x128xf32> -> vector<64x128xf32>
    %c0_76 = arith.constant 0 : index
    %c0_77 = arith.constant 0 : index
    %74 = vector.load %arg13[%c0_76, %c0_77] : memref<1x128xf32, #tpu.memory_space<vmem>>, vector<1x128xf32>
    %75 = vector.broadcast %74 : vector<1x128xf32> to vector<64x128xf32>
    %76 = arith.addf %73, %75 : vector<64x128xf32>
    %77 = math.tanh %76 : vector<64x128xf32>
    %78 = arith.addf %58, %77 : vector<64x128xf32>
    %79 = vector.broadcast %4 : vector<64x1xf32> to vector<64x128xf32>
    %80 = arith.mulf %78, %79 : vector<64x128xf32>
    %c0_78 = arith.constant 0 : index
    %c0_79 = arith.constant 0 : index
    %81 = vector.load %arg14[%c0_78, %c0_79] : memref<64x128xf32, #tpu.memory_space<vmem>>, vector<64x128xf32>
    tpu.vector_store %arg14[%c0_78, %c0_79], %58 {strides = array<i32>} : memref<64x128xf32, #tpu.memory_space<vmem>>, vector<64x128xf32>,
    %c0_80 = arith.constant 0 : index
    %c0_81 = arith.constant 0 : index
    %82 = vector.load %arg15[%c0_80, %c0_81] : memref<64x128xf32, #tpu.memory_space<vmem>>, vector<64x128xf32>
    tpu.vector_store %arg15[%c0_80, %c0_81], %80 {strides = array<i32>} : memref<64x128xf32, #tpu.memory_space<vmem>>, vector<64x128xf32>,
    return
  }
}

module attributes {stable_mosaic.version = 11 : i64} {
  func.func @_encoder_va_kernel(%arg0: memref<16x62xf32, #tpu.memory_space<vmem>>, %arg1: memref<16x30xf32, #tpu.memory_space<vmem>>, %arg2: memref<62x100xf32, #tpu.memory_space<vmem>>, %arg3: memref<1x100xf32, #tpu.memory_space<vmem>>, %arg4: memref<100x128xf32, #tpu.memory_space<vmem>>, %arg5: memref<1x128xf32, #tpu.memory_space<vmem>>, %arg6: memref<640x3xf32, #tpu.memory_space<vmem>>, %arg7: memref<1x3xf32, #tpu.memory_space<vmem>>, %arg8: memref<30x3xf32, #tpu.memory_space<vmem>>, %arg9: memref<1x128xf32, #tpu.memory_space<vmem>>, %arg10: memref<1x128xf32, #tpu.memory_space<vmem>>, %arg11: memref<1x128xf32, #tpu.memory_space<vmem>>, %arg12: memref<1x128xf32, #tpu.memory_space<vmem>>, %arg13: memref<16x128xf32, #tpu.memory_space<vmem>>, %arg14: memref<16x128xf32, #tpu.memory_space<vmem>>, %arg15: memref<20x128xf32, #tpu.memory_space<vmem>>) attributes {dimension_semantics = [], scalar_prefetch = 0 : i64, scratch_operands = 1 : i64, tpu.core_type = #tpu.core_type<tc>} {
    %cst = arith.constant 0.000000e+00 : f32
    %0 = vector.broadcast %cst : f32 to vector<20x128xf32>
    %c0 = arith.constant 0 : index
    %c0_0 = arith.constant 0 : index
    %1 = vector.load %arg15[%c0, %c0_0] : memref<20x128xf32, #tpu.memory_space<vmem>>, vector<20x128xf32>
    tpu.vector_store %arg15[%c0, %c0_0], %0 {strides = array<i32>} : memref<20x128xf32, #tpu.memory_space<vmem>>, vector<20x128xf32>,
    %c0_1 = arith.constant 0 : index
    %c0_2 = arith.constant 0 : index
    %2 = vector.load %arg0[%c0_1, %c0_2] : memref<16x62xf32, #tpu.memory_space<vmem>>, vector<16x62xf32>
    %c0_3 = arith.constant 0 : index
    %c0_4 = arith.constant 0 : index
    %3 = vector.load %arg2[%c0_3, %c0_4] : memref<62x100xf32, #tpu.memory_space<vmem>>, vector<62x100xf32>
    %cst_5 = arith.constant dense<0.000000e+00> : vector<16x100xf32>
    %4 = tpu.matmul %2, %3, %cst_5 {dimension_numbers = #tpu.dot_dimension_numbers<[1], [0], [0], [1], [0, 0, 1, 1], [], []>} : vector<16x62xf32>, vector<62x100xf32>, vector<16x100xf32> -> vector<16x100xf32>
    %c0_6 = arith.constant 0 : index
    %c0_7 = arith.constant 0 : index
    %5 = vector.load %arg3[%c0_6, %c0_7] : memref<1x100xf32, #tpu.memory_space<vmem>>, vector<1x100xf32>
    %6 = vector.broadcast %5 : vector<1x100xf32> to vector<16x100xf32>
    %7 = arith.addf %4, %6 : vector<16x100xf32>
    %8 = math.tanh %7 : vector<16x100xf32>
    %c0_8 = arith.constant 0 : index
    %c0_9 = arith.constant 0 : index
    %9 = vector.load %arg4[%c0_8, %c0_9] : memref<100x128xf32, #tpu.memory_space<vmem>>, vector<100x128xf32>
    %cst_10 = arith.constant dense<0.000000e+00> : vector<16x128xf32>
    %10 = tpu.matmul %8, %9, %cst_10 {dimension_numbers = #tpu.dot_dimension_numbers<[1], [0], [0], [1], [0, 0, 1, 1], [], []>} : vector<16x100xf32>, vector<100x128xf32>, vector<16x128xf32> -> vector<16x128xf32>
    %c0_11 = arith.constant 0 : index
    %c0_12 = arith.constant 0 : index
    %11 = vector.load %arg5[%c0_11, %c0_12] : memref<1x128xf32, #tpu.memory_space<vmem>>, vector<1x128xf32>
    %12 = vector.broadcast %11 : vector<1x128xf32> to vector<16x128xf32>
    %13 = arith.addf %10, %12 : vector<16x128xf32>
    %c2 = arith.constant 2 : index
    %c0_13 = arith.constant 0 : index
    %14 = vector.load %arg15[%c2, %c0_13] : memref<20x128xf32, #tpu.memory_space<vmem>>, vector<16x128xf32>
    tpu.vector_store %arg15[%c2, %c0_13], %13 {strides = array<i32>} : memref<20x128xf32, #tpu.memory_space<vmem>>, vector<16x128xf32>,
    %c0_14 = arith.constant 0 : index
    %c0_15 = arith.constant 0 : index
    %15 = vector.load %arg15[%c0_14, %c0_15] : memref<20x128xf32, #tpu.memory_space<vmem>>, vector<16x128xf32>
    %c1 = arith.constant 1 : index
    %c0_16 = arith.constant 0 : index
    %16 = vector.load %arg15[%c1, %c0_16] : memref<20x128xf32, #tpu.memory_space<vmem>>, vector<16x128xf32>
    %c2_17 = arith.constant 2 : index
    %c0_18 = arith.constant 0 : index
    %17 = vector.load %arg15[%c2_17, %c0_18] : memref<20x128xf32, #tpu.memory_space<vmem>>, vector<16x128xf32>
    %c3 = arith.constant 3 : index
    %c0_19 = arith.constant 0 : index
    %18 = vector.load %arg15[%c3, %c0_19] : memref<20x128xf32, #tpu.memory_space<vmem>>, vector<16x128xf32>
    %c4 = arith.constant 4 : index
    %c0_20 = arith.constant 0 : index
    %19 = vector.load %arg15[%c4, %c0_20] : memref<20x128xf32, #tpu.memory_space<vmem>>, vector<16x128xf32>
    %20 = tpu.concatenate %15, %16, %17, %18, %19 in 1 : vector<16x128xf32>, vector<16x128xf32>, vector<16x128xf32>, vector<16x128xf32>, vector<16x128xf32> -> vector<16x640xf32>
    %c0_21 = arith.constant 0 : index
    %c0_22 = arith.constant 0 : index
    %21 = vector.load %arg6[%c0_21, %c0_22] : memref<640x3xf32, #tpu.memory_space<vmem>>, vector<640x3xf32>
    %cst_23 = arith.constant dense<0.000000e+00> : vector<16x3xf32>
    %22 = tpu.matmul %20, %21, %cst_23 {dimension_numbers = #tpu.dot_dimension_numbers<[1], [0], [0], [1], [0, 0, 1, 1], [], []>} : vector<16x640xf32>, vector<640x3xf32>, vector<16x3xf32> -> vector<16x3xf32>
    %c0_24 = arith.constant 0 : index
    %c0_25 = arith.constant 0 : index
    %23 = vector.load %arg1[%c0_24, %c0_25] : memref<16x30xf32, #tpu.memory_space<vmem>>, vector<16x30xf32>
    %c0_26 = arith.constant 0 : index
    %c0_27 = arith.constant 0 : index
    %24 = vector.load %arg8[%c0_26, %c0_27] : memref<30x3xf32, #tpu.memory_space<vmem>>, vector<30x3xf32>
    %cst_28 = arith.constant dense<0.000000e+00> : vector<16x3xf32>
    %25 = tpu.matmul %23, %24, %cst_28 {dimension_numbers = #tpu.dot_dimension_numbers<[1], [0], [0], [1], [0, 0, 1, 1], [], []>} : vector<16x30xf32>, vector<30x3xf32>, vector<16x3xf32> -> vector<16x3xf32>
    %26 = arith.addf %22, %25 : vector<16x3xf32>
    %c0_29 = arith.constant 0 : index
    %c0_30 = arith.constant 0 : index
    %27 = vector.load %arg7[%c0_29, %c0_30] : memref<1x3xf32, #tpu.memory_space<vmem>>, vector<1x3xf32>
    %28 = vector.broadcast %27 : vector<1x3xf32> to vector<16x3xf32>
    %29 = arith.addf %26, %28 : vector<16x3xf32>
    %30 = vector.extract_strided_slice %29 {offsets = [0, 0], sizes = [16, 1], strides = [1, 1]} : vector<16x3xf32> to vector<16x1xf32>
    %31 = vector.extract_strided_slice %29 {offsets = [0, 1], sizes = [16, 1], strides = [1, 1]} : vector<16x3xf32> to vector<16x1xf32>
    %32 = vector.extract_strided_slice %29 {offsets = [0, 2], sizes = [16, 1], strides = [1, 1]} : vector<16x3xf32> to vector<16x1xf32>
    %33 = vector.extract_strided_slice %2 {offsets = [0, 60], sizes = [16, 1], strides = [1, 1]} : vector<16x62xf32> to vector<16x1xf32>
    %cst_31 = arith.constant 0.000000e+00 : f32
    %34 = vector.broadcast %cst_31 : f32 to vector<16x1xf32>
    %35 = arith.cmpf one, %33, %34 : vector<16x1xf32>
    %36 = arith.extui %35 : vector<16x1xi1> to vector<16x1xi32>
    %37 = arith.sitofp %36 : vector<16x1xi32> to vector<16x1xf32>
    %38 = arith.mulf %30, %37 : vector<16x1xf32>
    %cst_32 = arith.constant 0.000000e+00 : f32
    %39 = vector.broadcast %cst_32 : f32 to vector<16x1xf32>
    %40 = arith.cmpf one, %38, %39 : vector<16x1xf32>
    %41 = arith.extui %40 : vector<16x1xi1> to vector<16x1xi32>
    %42 = arith.sitofp %41 : vector<16x1xi32> to vector<16x1xf32>
    %cst_33 = arith.constant dense<0.000000e+00> : vector<1xf32>
    %43 = vector.multi_reduction <add>, %42, %cst_33 [0] : vector<16x1xf32> to vector<1xf32>
    %44 = vector.shape_cast %43 : vector<1xf32> to vector<1x1xf32>
    %cst_34 = arith.constant 1.000000e+00 : f32
    %45 = vector.broadcast %cst_34 : f32 to vector<1x1xf32>
    %46 = arith.maximumf %44, %45 : vector<1x1xf32>
    %47 = arith.mulf %38, %42 : vector<16x1xf32>
    %cst_35 = arith.constant dense<0.000000e+00> : vector<1xf32>
    %48 = vector.multi_reduction <add>, %47, %cst_35 [0] : vector<16x1xf32> to vector<1xf32>
    %49 = vector.shape_cast %48 : vector<1xf32> to vector<1x1xf32>
    %50 = arith.divf %49, %46 : vector<1x1xf32>
    %51 = vector.broadcast %50 : vector<1x1xf32> to vector<16x1xf32>
    %52 = arith.subf %38, %51 : vector<16x1xf32>
    %cst_36 = arith.constant 1.200000e+00 : f32
    %53 = vector.broadcast %cst_36 : f32 to vector<16x1xf32>
    %54 = arith.mulf %52, %53 : vector<16x1xf32>
    %55 = vector.broadcast %50 : vector<1x1xf32> to vector<16x1xf32>
    %56 = arith.addf %54, %55 : vector<16x1xf32>
    %cst_37 = arith.constant 0.000000e+00 : f32
    %57 = vector.broadcast %cst_37 : f32 to vector<16x1xf32>
    %58 = arith.maximumf %56, %57 : vector<16x1xf32>
    %cst_38 = arith.constant 0.000000e+00 : f32
    %59 = vector.broadcast %cst_38 : f32 to vector<16x1xf32>
    %60 = arith.cmpf one, %31, %59 : vector<16x1xf32>
    %61 = arith.extui %60 : vector<16x1xi1> to vector<16x1xi32>
    %62 = arith.sitofp %61 : vector<16x1xi32> to vector<16x1xf32>
    %cst_39 = arith.constant dense<0.000000e+00> : vector<1xf32>
    %63 = vector.multi_reduction <add>, %62, %cst_39 [0] : vector<16x1xf32> to vector<1xf32>
    %64 = vector.shape_cast %63 : vector<1xf32> to vector<1x1xf32>
    %cst_40 = arith.constant 1.000000e+00 : f32
    %65 = vector.broadcast %cst_40 : f32 to vector<1x1xf32>
    %66 = arith.maximumf %64, %65 : vector<1x1xf32>
    %67 = arith.mulf %31, %62 : vector<16x1xf32>
    %cst_41 = arith.constant dense<0.000000e+00> : vector<1xf32>
    %68 = vector.multi_reduction <add>, %67, %cst_41 [0] : vector<16x1xf32> to vector<1xf32>
    %69 = vector.shape_cast %68 : vector<1xf32> to vector<1x1xf32>
    %70 = arith.divf %69, %66 : vector<1x1xf32>
    %71 = vector.broadcast %70 : vector<1x1xf32> to vector<16x1xf32>
    %72 = arith.subf %31, %71 : vector<16x1xf32>
    %cst_42 = arith.constant 1.200000e+00 : f32
    %73 = vector.broadcast %cst_42 : f32 to vector<16x1xf32>
    %74 = arith.mulf %72, %73 : vector<16x1xf32>
    %75 = vector.broadcast %70 : vector<1x1xf32> to vector<16x1xf32>
    %76 = arith.addf %74, %75 : vector<16x1xf32>
    %cst_43 = arith.constant 0.000000e+00 : f32
    %77 = vector.broadcast %cst_43 : f32 to vector<16x1xf32>
    %78 = arith.maximumf %76, %77 : vector<16x1xf32>
    %c0_44 = arith.constant 0 : index
    %c0_45 = arith.constant 0 : index
    %79 = vector.load %arg9[%c0_44, %c0_45] : memref<1x128xf32, #tpu.memory_space<vmem>>, vector<1x128xf32>
    %80 = vector.broadcast %58 : vector<16x1xf32> to vector<16x128xf32>
    %81 = vector.broadcast %79 : vector<1x128xf32> to vector<16x128xf32>
    %82 = arith.mulf %80, %81 : vector<16x128xf32>
    %c0_46 = arith.constant 0 : index
    %c0_47 = arith.constant 0 : index
    %83 = vector.load %arg10[%c0_46, %c0_47] : memref<1x128xf32, #tpu.memory_space<vmem>>, vector<1x128xf32>
    %84 = vector.broadcast %83 : vector<1x128xf32> to vector<16x128xf32>
    %85 = arith.addf %82, %84 : vector<16x128xf32>
    %c0_48 = arith.constant 0 : index
    %c0_49 = arith.constant 0 : index
    %86 = vector.load %arg11[%c0_48, %c0_49] : memref<1x128xf32, #tpu.memory_space<vmem>>, vector<1x128xf32>
    %87 = vector.broadcast %78 : vector<16x1xf32> to vector<16x128xf32>
    %88 = vector.broadcast %86 : vector<1x128xf32> to vector<16x128xf32>
    %89 = arith.mulf %87, %88 : vector<16x128xf32>
    %c0_50 = arith.constant 0 : index
    %c0_51 = arith.constant 0 : index
    %90 = vector.load %arg12[%c0_50, %c0_51] : memref<1x128xf32, #tpu.memory_space<vmem>>, vector<1x128xf32>
    %91 = vector.broadcast %90 : vector<1x128xf32> to vector<16x128xf32>
    %92 = arith.addf %89, %91 : vector<16x128xf32>
    %93 = arith.addf %13, %92 : vector<16x128xf32>
    %94 = arith.addf %93, %85 : vector<16x128xf32>
    %c0_52 = arith.constant 0 : index
    %c0_53 = arith.constant 0 : index
    %95 = vector.load %arg13[%c0_52, %c0_53] : memref<16x128xf32, #tpu.memory_space<vmem>>, vector<16x128xf32>
    tpu.vector_store %arg13[%c0_52, %c0_53], %94 {strides = array<i32>} : memref<16x128xf32, #tpu.memory_space<vmem>>, vector<16x128xf32>,
    %cst_54 = arith.constant 0.000000e+00 : f32
    %96 = vector.broadcast %cst_54 : f32 to vector<16x125xf32>
    %97 = tpu.concatenate %58, %78, %32, %96 in 1 : vector<16x1xf32>, vector<16x1xf32>, vector<16x1xf32>, vector<16x125xf32> -> vector<16x128xf32>
    %c0_55 = arith.constant 0 : index
    %c0_56 = arith.constant 0 : index
    %98 = vector.load %arg14[%c0_55, %c0_56] : memref<16x128xf32, #tpu.memory_space<vmem>>, vector<16x128xf32>
    tpu.vector_store %arg14[%c0_55, %c0_56], %97 {strides = array<i32>} : memref<16x128xf32, #tpu.memory_space<vmem>>, vector<16x128xf32>,
    return
  }
}

</mosaic_0001>

<llo_original>
// kernel: portaspeech_forward.2
$region0: #{portaspeech_forward.2}
  #allocation0 [shape = 'u32[]', space=smem, size = 0x4, offset = 0x4, fixed_abs, tag = 'smem constant byte address 0x4 - core index']
  #allocation1 [shape = 'u32[144,128]{1,0:T(1,128)}', space=vmem, size = 0x12000, scoped, tag = 'internal scratch']
  #allocation2 [shape = 'f32[20,128]{1,0:T(8,128)}', space=vmem, size = 0x3000, scoped, tag = 'scratch operand']
  %s0 = inlined_call_operand.hbm [shape: f32[16,62], index: 0, kind: input, shape index: {}]
  %s1 = inlined_call_operand.vmem [shape: f32[16,30], index: 1, kind: input, shape index: {}]
  %s2 = inlined_call_operand.hbm [shape: f32[62,100], index: 2, kind: input, shape index: {}]
  %s3 = inlined_call_operand.vmem [shape: f32[1,100], index: 3, kind: input, shape index: {}]
  %s4 = inlined_call_operand.hbm [shape: f32[100,128], index: 4, kind: input, shape index: {}]
  %s5 = inlined_call_operand.vmem [shape: f32[1,128], index: 5, kind: input, shape index: {}]
  %s6 = inlined_call_operand.vmem [shape: f32[640,3], index: 6, kind: input, shape index: {}]
  %s7 = inlined_call_operand.hbm [shape: f32[1,3], index: 7, kind: input, shape index: {}]
  %s8 = inlined_call_operand.vmem [shape: f32[30,3], index: 8, kind: input, shape index: {}]
  %s9 = inlined_call_operand.hbm [shape: f32[1,128], index: 9, kind: input, shape index: {}]
  %s10 = inlined_call_operand.hbm [shape: f32[1,128], index: 10, kind: input, shape index: {}]
  %s11 = inlined_call_operand.hbm [shape: f32[1,128], index: 11, kind: input, shape index: {}]
  %s12 = inlined_call_operand.hbm [shape: f32[1,128], index: 12, kind: input, shape index: {}]
  %s13 = inlined_call_operand.vmem [shape: f32[16,128], index: 13, kind: output, shape index: {0}]
  %s14 = inlined_call_operand.vmem [shape: f32[16,128], index: 14, kind: output, shape index: {1}]
  %15 = xla_tuple %s13, %s14
  %s16 = sld [smem:[#allocation0]]
  $region102: #{portaspeech_forward.2} parent=0
    _
  %s18 = ssub.s32 1, %s16
  %s19 = scalar_select 0, %s18, %s16
  $region1: #{portaspeech_forward.2} parent=0
    #allocation3 [shape = 'u8[8192]{0}', space=vmem, size = 0x2000, scoped, tag = 'input window, operand 0, single buffered']
    #allocation4 [shape = 's32[1]{0}', space=sflag, size = 0x4, scoped, tag = 'scoped memory for portaspeech_forward.2']
    #allocation5 [shape = 'u8[32768]{0}', space=vmem, size = 0x8000, scoped, tag = 'input window, operand 2, single buffered']
    #allocation6 [shape = 's32[1]{0}', space=sflag, size = 0x4, scoped, tag = 'scoped memory for portaspeech_forward.2']
    #allocation7 [shape = 'u8[53248]{0}', space=vmem, size = 0xd000, scoped, tag = 'input window, operand 4, single buffered']
    #allocation8 [shape = 'u8[512]{0}', space=vmem, size = 0x400, scoped, tag = 'input window, operand 7, single buffered']
    #allocation9 [shape = 's32[1]{0}', space=sflag, size = 0x4, scoped, tag = 'scoped memory for portaspeech_forward.2']
    #allocation10 [shape = 'u8[512]{0}', space=vmem, size = 0x400, scoped, tag = 'input window, operand 9, single buffered']
    #allocation11 [shape = 'u8[512]{0}', space=vmem, size = 0x400, scoped, tag = 'input window, operand 10, single buffered']
    #allocation12 [shape = 's32[1]{0}', space=sflag, size = 0x4, scoped, tag = 'scoped memory for portaspeech_forward.2']
    #allocation13 [shape = 'u8[512]{0}', space=vmem, size = 0x400, scoped, tag = 'input window, operand 11, single buffered']
    #allocation14 [shape = 'u8[512]{0}', space=vmem, size = 0x400, scoped, tag = 'input window, operand 12, single buffered']
    #allocation15 [shape = 's32[1]{0}', space=sflag, size = 0x4, scoped, tag = 'scoped memory for portaspeech_forward.2']
    %20 = vsyncpa [#allocation4], 0
    %21 = vsyncpa [#allocation6], 0
    %22 = vsyncpa [#allocation9], 0
    %23 = vsyncpa [#allocation12], 0
    %24 = vsyncpa [#allocation15], 0
    // Predicated region
    $region2: #{portaspeech_forward.2} parent=1 // pred_check
      _
    $region3: #{portaspeech_forward.2} parent=1 // pred_check_branch
      %26 = sbr.rel (0) target = $region5
    $region4: #{portaspeech_forward.2} parent=1 // pred_region
      %s28 = ssub.s32 256, 256
      %29 = vsyncadd [#allocation4], %s28
      %s30 = sshll.u32 [#allocation3], 4
      %s31 = int_to_ptr.vmem [resolvable:$true] %s30
      %36 = dma.hbm_to_vmem [thread:$0]  %s0, 256, %s31, [#allocation4], 128, 128, 8
    $region5: #{portaspeech_forward.2} parent=1 // pred_fallthru
      _
    // Predicated region
    $region6: #{portaspeech_forward.2} parent=1 // pred_check
      _
    $region7: #{portaspeech_forward.2} parent=1 // pred_check_branch
      %38 = sbr.rel (0) target = $region9
    $region8: #{portaspeech_forward.2} parent=1 // pred_region
      _
    $region9: #{portaspeech_forward.2} parent=1 // pred_fallthru
      _
    // Predicated region
    $region10: #{portaspeech_forward.2} parent=1 // pred_check
      _
    $region11: #{portaspeech_forward.2} parent=1 // pred_check_branch
      %40 = sbr.rel (0) target = $region13
    $region12: #{portaspeech_forward.2} parent=1 // pred_region
      %s42 = ssub.s32 1024, 1024
      %43 = vsyncadd [#allocation6], %s42
      %s44 = sshll.u32 [#allocation5], 4
      %s45 = int_to_ptr.vmem [resolvable:$true] %s44
      %50 = dma.hbm_to_vmem [thread:$0]  %s2, 1024, %s45, [#allocation6], 128, 128, 8
    $region13: #{portaspeech_forward.2} parent=1 // pred_fallthru
      _
    // Predicated region
    $region14: #{portaspeech_forward.2} parent=1 // pred_check
      _
    $region15: #{portaspeech_forward.2} parent=1 // pred_check_branch
      %52 = sbr.rel (0) target = $region17
    $region16: #{portaspeech_forward.2} parent=1 // pred_region
      _
    $region17: #{portaspeech_forward.2} parent=1 // pred_fallthru
      _
    // Predicated region
    $region18: #{portaspeech_forward.2} parent=1 // pred_check
      _
    $region19: #{portaspeech_forward.2} parent=1 // pred_check_branch
      %54 = sbr.rel (0) target = $region21
    $region20: #{portaspeech_forward.2} parent=1 // pred_region
      %s56 = ssub.s32 1664, 1664
      %57 = vsyncadd [#allocation6], %s56
      %s58 = sshll.u32 [#allocation7], 4
      %s59 = int_to_ptr.vmem [resolvable:$true] %s58
      %64 = dma.hbm_to_vmem [thread:$0]  %s4, 1664, %s59, [#allocation6], 128, 128, 8
    $region21: #{portaspeech_forward.2} parent=1 // pred_fallthru
      _
    // Predicated region
    $region22: #{portaspeech_forward.2} parent=1 // pred_check
      _
    $region23: #{portaspeech_forward.2} parent=1 // pred_check_branch
      %66 = sbr.rel (0) target = $region25
    $region24: #{portaspeech_forward.2} parent=1 // pred_region
      _
    $region25: #{portaspeech_forward.2} parent=1 // pred_fallthru
      _
    // Predicated region
    $region26: #{portaspeech_forward.2} parent=1 // pred_check
      _
    $region27: #{portaspeech_forward.2} parent=1 // pred_check_branch
      %68 = sbr.rel (0) target = $region29
    $region28: #{portaspeech_forward.2} parent=1 // pred_region
      _
    $region29: #{portaspeech_forward.2} parent=1 // pred_fallthru
      _
    // Predicated region
    $region30: #{portaspeech_forward.2} parent=1 // pred_check
      _
    $region31: #{portaspeech_forward.2} parent=1 // pred_check_branch
      %70 = sbr.rel (0) target = $region33
    $region32: #{portaspeech_forward.2} parent=1 // pred_region
      %s72 = ssub.s32 16, 16
      %73 = vsyncadd [#allocation9], %s72
      %s75 = sshll.u32 [#allocation8], 4
      %s76 = int_to_ptr.vmem [resolvable:$true] %s75
      %78 = dma.hbm_to_vmem [thread:$0]  %s7, 16, %s76, [#allocation9]
    $region33: #{portaspeech_forward.2} parent=1 // pred_fallthru
      _
    // Predicated region
    $region34: #{portaspeech_forward.2} parent=1 // pred_check
      _
    $region35: #{portaspeech_forward.2} parent=1 // pred_check_branch
      %80 = sbr.rel (0) target = $region37
    $region36: #{portaspeech_forward.2} parent=1 // pred_region
      _
    $region37: #{portaspeech_forward.2} parent=1 // pred_fallthru
      _
    // Predicated region
    $region38: #{portaspeech_forward.2} parent=1 // pred_check
      _
    $region39: #{portaspeech_forward.2} parent=1 // pred_check_branch
      %82 = sbr.rel (0) target = $region41
    $region40: #{portaspeech_forward.2} parent=1 // pred_region
      %s84 = ssub.s32 16, 16
      %85 = vsyncadd [#allocation9], %s84
      %s87 = sshll.u32 [#allocation10], 4
      %s88 = int_to_ptr.vmem [resolvable:$true] %s87
      %90 = dma.hbm_to_vmem [thread:$0]  %s9, 16, %s88, [#allocation9]
    $region41: #{portaspeech_forward.2} parent=1 // pred_fallthru
      _
    // Predicated region
    $region42: #{portaspeech_forward.2} parent=1 // pred_check
      _
    $region43: #{portaspeech_forward.2} parent=1 // pred_check_branch
      %92 = sbr.rel (0) target = $region45
    $region44: #{portaspeech_forward.2} parent=1 // pred_region
      %s94 = ssub.s32 16, 16
      %95 = vsyncadd [#allocation12], %s94
      %s97 = sshll.u32 [#allocation11], 4
      %s98 = int_to_ptr.vmem [resolvable:$true] %s97
      %100 = dma.hbm_to_vmem [thread:$0]  %s10, 16, %s98, [#allocation12]
    $region45: #{portaspeech_forward.2} parent=1 // pred_fallthru
      _
    // Predicated region
    $region46: #{portaspeech_forward.2} parent=1 // pred_check
      _
    $region47: #{portaspeech_forward.2} parent=1 // pred_check_branch
      %102 = sbr.rel (0) target = $region49
    $region48: #{portaspeech_forward.2} parent=1 // pred_region
      %s104 = ssub.s32 16, 16
      %105 = vsyncadd [#allocation12], %s104
      %s107 = sshll.u32 [#allocation13], 4
      %s108 = int_to_ptr.vmem [resolvable:$true] %s107
      %110 = dma.hbm_to_vmem [thread:$0]  %s11, 16, %s108, [#allocation12]
    $region49: #{portaspeech_forward.2} parent=1 // pred_fallthru
      _
    // Predicated region
    $region50: #{portaspeech_forward.2} parent=1 // pred_check
      _
    $region51: #{portaspeech_forward.2} parent=1 // pred_check_branch
      %112 = sbr.rel (0) target = $region53
    $region52: #{portaspeech_forward.2} parent=1 // pred_region
      %s114 = ssub.s32 16, 16
      %115 = vsyncadd [#allocation15], %s114
      %s117 = sshll.u32 [#allocation14], 4
      %s118 = int_to_ptr.vmem [resolvable:$true] %s117
      %120 = dma.hbm_to_vmem [thread:$0]  %s12, 16, %s118, [#allocation15]
    $region53: #{portaspeech_forward.2} parent=1 // pred_fallthru
      _
    // Predicated region
    $region54: #{portaspeech_forward.2} parent=1 // pred_check
      _
    $region55: #{portaspeech_forward.2} parent=1 // pred_check_branch
      %122 = sbr.rel (0) target = $region57
    $region56: #{portaspeech_forward.2} parent=1 // pred_region
      %123 = dma.done [#allocation4], 256
    $region57: #{portaspeech_forward.2} parent=1 // pred_fallthru
      _
    // Predicated region
    $region58: #{portaspeech_forward.2} parent=1 // pred_check
      _
    $region59: #{portaspeech_forward.2} parent=1 // pred_check_branch
      %125 = sbr.rel (0) target = $region61
    $region60: #{portaspeech_forward.2} parent=1 // pred_region
      %126 = dma.done [#allocation6], 1024
    $region61: #{portaspeech_forward.2} parent=1 // pred_fallthru
      _
    // Predicated region
    $region62: #{portaspeech_forward.2} parent=1 // pred_check
      _
    $region63: #{portaspeech_forward.2} parent=1 // pred_check_branch
      %128 = sbr.rel (0) target = $region65
    $region64: #{portaspeech_forward.2} parent=1 // pred_region
      %129 = dma.done [#allocation6], 1664
    $region65: #{portaspeech_forward.2} parent=1 // pred_fallthru
      _
    // Predicated region
    $region66: #{portaspeech_forward.2} parent=1 // pred_check
      _
    $region67: #{portaspeech_forward.2} parent=1 // pred_check_branch
      %131 = sbr.rel (0) target = $region69
    $region68: #{portaspeech_forward.2} parent=1 // pred_region
      %132 = dma.done [#allocation9], 16
    $region69: #{portaspeech_forward.2} parent=1 // pred_fallthru
      _
    // Predicated region
    $region70: #{portaspeech_forward.2} parent=1 // pred_check
      _
    $region71: #{portaspeech_forward.2} parent=1 // pred_check_branch
      %134 = sbr.rel (0) target = $region73
    $region72: #{portaspeech_forward.2} parent=1 // pred_region
      %135 = dma.done [#allocation9], 16
    $region73: #{portaspeech_forward.2} parent=1 // pred_fallthru
      _
    // Predicated region
    $region74: #{portaspeech_forward.2} parent=1 // pred_check
      _
    $region75: #{portaspeech_forward.2} parent=1 // pred_check_branch
      %137 = sbr.rel (0) target = $region77
    $region76: #{portaspeech_forward.2} parent=1 // pred_region
      %138 = dma.done [#allocation12], 16
    $region77: #{portaspeech_forward.2} parent=1 // pred_fallthru
      _
    // Predicated region
    $region78: #{portaspeech_forward.2} parent=1 // pred_check
      _
    $region79: #{portaspeech_forward.2} parent=1 // pred_check_branch
      %140 = sbr.rel (0) target = $region81
    $region80: #{portaspeech_forward.2} parent=1 // pred_region
      %141 = dma.done [#allocation12], 16
    $region81: #{portaspeech_forward.2} parent=1 // pred_fallthru
      _
    // Predicated region
    $region82: #{portaspeech_forward.2} parent=1 // pred_check
      _
    $region83: #{portaspeech_forward.2} parent=1 // pred_check_branch
      %143 = sbr.rel (0) target = $region85
    $region84: #{portaspeech_forward.2} parent=1 // pred_region
      %144 = dma.done [#allocation15], 16
    $region85: #{portaspeech_forward.2} parent=1 // pred_fallthru
      _
    %145 = vst [vmem:[#allocation2] sm:$0xff] 0.0
    %146 = vst [vmem:[#allocation2 + $0x8] sm:$0xff] 0.0
    %147 = vst [vmem:[#allocation2 + $0x10] sm:$0xf] 0.0
    %v148 = vld [vmem:[#allocation3] sm:$0xff]
    %v149 = vld [vmem:[#allocation3 + $0x8] sm:$0xff]
    %v150 = vld [vmem:[#allocation5] sm:$0xff]
    %v151 = vld [vmem:[#allocation5 + $0x8] sm:$0xff]
    %v152 = vld [vmem:[#allocation5 + $0x10] sm:$0xff]
    %v153 = vld [vmem:[#allocation5 + $0x18] sm:$0xff]
    %v154 = vld [vmem:[#allocation5 + $0x20] sm:$0xff]
    %v155 = vld [vmem:[#allocation5 + $0x28] sm:$0xff]
    %v156 = vld [vmem:[#allocation5 + $0x30] sm:$0xff]
    %v157 = vld [vmem:[#allocation5 + $0x38] sm:$0x3f]
    %v158 = vld [vmem:[%s3] sm:$0x1]
    %v160 = vlaneseq
    %v161 = vshrl.u32 %v160, 7
    %v162 = vsub.s32 0, %v161
    %v163 = vrot.slane %v158, %v162
    %vm165 = vcmask 506880
    %v167 = vsel %vm165, %v148, 0
    %v170 = vsel %vm165, %v149, 0
    %vm172 = vcmask 1045504
    %v174 = vsel %vm172, %v157, 0
    %176 = vmatprep.subr.mxu0 0.0
    %177 = vmatpush1.msra.mxu0 %v150
    %178 = vmatprep.subr.mxu0 0.0
    %179 = vmatpush1.msra.mxu0 %v151
    %180 = vmatprep.subr.mxu0 0.0
    %181 = vmatpush1.msra.mxu0 %v152
    %182 = vmatprep.subr.mxu0 0.0
    %183 = vmatpush1.msra.mxu0 %v153
    %184 = vmatprep.subr.mxu0 0.0
    %185 = vmatpush1.msra.mxu0 %v154
    %186 = vmatprep.subr.mxu0 0.0
    %187 = vmatpush1.msra.mxu0 %v155
    %188 = vmatprep.subr.mxu0 0.0
    %189 = vmatpush1.msra.mxu0 %v156
    %190 = vmatprep.subr.mxu0 0.0
    %191 = vmatpush1.msra.mxu0 %v174
    %192 = vmatprep.subr.mxu0 0.0
    %193 = vmatpush1.msra.mxu0 0.0
    %194 = vmatprep.subr.mxu0 0.0
    %195 = vmatpush1.msra.mxu0 0.0
    %196 = vmatprep.subr.mxu0 0.0
    %197 = vmatpush1.msra.mxu0 0.0
    %198 = vmatprep.subr.mxu0 0.0
    %199 = vmatpush1.msra.mxu0 0.0
    %200 = vmatprep.subr.mxu0 0.0
    %201 = vmatpush1.msra.mxu0 0.0
    %202 = vmatprep.subr.mxu0 0.0
    %203 = vmatpush1.msra.mxu0 0.0
    %204 = vmatprep.subr.mxu0 0.0
    %205 = vmatpush1.msra.mxu0 0.0
    %206 = vmatprep.subr.mxu0 0.0
    %207 = vmatpush1.msra.mxu0 0.0
    %208 = vmatprep.subr.mxu0 0.0
    %209 = vmatpush1.msra.mxu0 0.0
    %210 = vmatprep.subr.mxu0 0.0
    %211 = vmatpush1.msra.mxu0 0.0
    %212 = vmatprep.subr.mxu0 0.0
    %213 = vmatpush1.msra.mxu0 0.0
    %214 = vmatprep.subr.mxu0 0.0
    %215 = vmatpush1.msra.mxu0 0.0
    %216 = vmatprep.subr.mxu0 0.0
    %217 = vmatpush1.msra.mxu0 0.0
    %218 = vmatprep.subr.mxu0 0.0
    %219 = vmatpush1.msra.mxu0 0.0
    %220 = vmatprep.subr.mxu0 0.0
    %221 = vmatpush1.msra.mxu0 0.0
    %222 = vmatprep.subr.mxu0 0.0
    %223 = vmatpush1.msra.mxu0 0.0
    %224 = vmatprep.subr.mxu0 0.0
    %225 = vmatpush1.msra.mxu0 0.0
    %226 = vmatprep.subr.mxu0 0.0
    %227 = vmatpush1.msra.mxu0 0.0
    %228 = vmatprep.subr.mxu0 0.0
    %229 = vmatpush1.msra.mxu0 0.0
    %230 = vmatprep.subr.mxu0 0.0
    %231 = vmatpush1.msra.mxu0 0.0
    %232 = vmatprep.subr.mxu0 0.0
    %233 = vmatpush1.msra.mxu0 0.0
    %234 = vmatprep.subr.mxu0 0.0
    %235 = vmatpush1.msra.mxu0 0.0
    %236 = vmatprep.subr.mxu0 0.0
    %237 = vmatpush1.msra.mxu0 0.0
    %238 = vmatprep.subr.mxu0 0.0
    %239 = vmatpush1.msra.mxu0 0.0
    %240 = vmatprep.mubr.f32.mxu0 0.0
    %241 = vmatmul.mubr.f32.gmra.mrb[0].mxu0 %v167
    %v242 = vpop.f32.mrb[0].mxu0
    %v243 = vadd.f32 %v163, %v242
    %v244 = vpop.f32.mrb[0].mxu0
    %245 = vmatprep.mubr.f32.mxu0 0.0
    %246 = vmatmul.mubr.f32.gmra.mrb[0].mxu0 %v170
    %v247 = vpop.f32.mrb[0].mxu0
    %v248 = vadd.f32 %v163, %v247
    %v249 = vpop.f32.mrb[0].mxu0
    %250 = vdwg.mxu0
    %v251 = vtanh.pop %v243
    %v252 = vtanh.pop %v248
    %v253 = vld [vmem:[#allocation7] sm:$0xff]
    %v254 = vld [vmem:[#allocation7 + $0x8] sm:$0xff]
    %v255 = vld [vmem:[#allocation7 + $0x10] sm:$0xff]
    %v256 = vld [vmem:[#allocation7 + $0x18] sm:$0xff]
    %v257 = vld [vmem:[#allocation7 + $0x20] sm:$0xff]
    %v258 = vld [vmem:[#allocation7 + $0x28] sm:$0xff]
    %v259 = vld [vmem:[#allocation7 + $0x30] sm:$0xff]
    %v260 = vld [vmem:[#allocation7 + $0x38] sm:$0xff]
    %v261 = vld [vmem:[#allocation7 + $0x40] sm:$0xff]
    %v262 = vld [vmem:[#allocation7 + $0x48] sm:$0xff]
    %v263 = vld [vmem:[#allocation7 + $0x50] sm:$0xff]
    %v264 = vld [vmem:[#allocation7 + $0x58] sm:$0xff]
    %v265 = vld [vmem:[#allocation7 + $0x60] sm:$0xf]
    %v266 = vld [vmem:[%s5] sm:$0x1]
    %v268 = vlaneseq
    %v269 = vshrl.u32 %v268, 7
    %v270 = vsub.s32 0, %v269
    %v271 = vrot.slane %v266, %v270
    %vm273 = vcmask 818176
    %v275 = vsel %vm273, %v251, 0
    %v278 = vsel %vm273, %v252, 0
    %vm280 = vcmask 1043456
    %v282 = vsel %vm280, %v265, 0
    %284 = vmatprep.subr.mxu0 0.0
    %285 = vmatpush1.msra.mxu0 %v253
    %286 = vmatprep.subr.mxu0 0.0
    %287 = vmatpush1.msra.mxu0 %v254
    %288 = vmatprep.subr.mxu0 0.0
    %289 = vmatpush1.msra.mxu0 %v255
    %290 = vmatprep.subr.mxu0 0.0
    %291 = vmatpush1.msra.mxu0 %v256
    %292 = vmatprep.subr.mxu0 0.0
    %293 = vmatpush1.msra.mxu0 %v257
    %294 = vmatprep.subr.mxu0 0.0
    %295 = vmatpush1.msra.mxu0 %v258
    %296 = vmatprep.subr.mxu0 0.0
    %297 = vmatpush1.msra.mxu0 %v259
    %298 = vmatprep.subr.mxu0 0.0
    %299 = vmatpush1.msra.mxu0 %v260
    %300 = vmatprep.subr.mxu0 0.0
    %301 = vmatpush1.msra.mxu0 %v261
    %302 = vmatprep.subr.mxu0 0.0
    %303 = vmatpush1.msra.mxu0 %v262
    %304 = vmatprep.subr.mxu0 0.0
    %305 = vmatpush1.msra.mxu0 %v263
    %306 = vmatprep.subr.mxu0 0.0
    %307 = vmatpush1.msra.mxu0 %v264
    %308 = vmatprep.subr.mxu0 0.0
    %309 = vmatpush1.msra.mxu0 %v282
    %310 = vmatprep.subr.mxu0 0.0
    %311 = vmatpush1.msra.mxu0 0.0
    %312 = vmatprep.subr.mxu0 0.0
    %313 = vmatpush1.msra.mxu0 0.0
    %314 = vmatprep.subr.mxu0 0.0
    %315 = vmatpush1.msra.mxu0 0.0
    %316 = vmatprep.subr.mxu0 0.0
    %317 = vmatpush1.msra.mxu0 0.0
    %318 = vmatprep.subr.mxu0 0.0
    %319 = vmatpush1.msra.mxu0 0.0
    %320 = vmatprep.subr.mxu0 0.0
    %321 = vmatpush1.msra.mxu0 0.0
    %322 = vmatprep.subr.mxu0 0.0
    %323 = vmatpush1.msra.mxu0 0.0
    %324 = vmatprep.subr.mxu0 0.0
    %325 = vmatpush1.msra.mxu0 0.0
    %326 = vmatprep.subr.mxu0 0.0
    %327 = vmatpush1.msra.mxu0 0.0
    %328 = vmatprep.subr.mxu0 0.0
    %329 = vmatpush1.msra.mxu0 0.0
    %330 = vmatprep.subr.mxu0 0.0
    %331 = vmatpush1.msra.mxu0 0.0
    %332 = vmatprep.subr.mxu0 0.0
    %333 = vmatpush1.msra.mxu0 0.0
    %334 = vmatprep.subr.mxu0 0.0
    %335 = vmatpush1.msra.mxu0 0.0
    %336 = vmatprep.subr.mxu0 0.0
    %337 = vmatpush1.msra.mxu0 0.0
    %338 = vmatprep.subr.mxu0 0.0
    %339 = vmatpush1.msra.mxu0 0.0
    %340 = vmatprep.subr.mxu0 0.0
    %341 = vmatpush1.msra.mxu0 0.0
    %342 = vmatprep.subr.mxu0 0.0
    %343 = vmatpush1.msra.mxu0 0.0
    %344 = vmatprep.subr.mxu0 0.0
    %345 = vmatpush1.msra.mxu0 0.0
    %346 = vmatprep.subr.mxu0 0.0
    %347 = vmatpush1.msra.mxu0 0.0
    %348 = vmatprep.mubr.f32.mxu0 0.0
    %349 = vmatmul.mubr.f32.gmra.mrb[0].mxu0 %v275
    %v350 = vpop.f32.mrb[0].mxu0
    %v351 = vadd.f32 %v271, %v350
    %v352 = vpop.f32.mrb[0].mxu0
    %353 = vmatprep.mubr.f32.mxu0 0.0
    %354 = vmatmul.mubr.f32.gmra.mrb[0].mxu0 %v278
    %v355 = vpop.f32.mrb[0].mxu0
    %v356 = vadd.f32 %v271, %v355
    %v357 = vpop.f32.mrb[0].mxu0
    %358 = vdwg.mxu0
    %359 = vst [vmem:[#allocation2 + $0x2] sm:$0xff] %v351
    %360 = vst [vmem:[#allocation2 + $0xa] sm:$0xff] %v356
    %v361 = vld [vmem:[#allocation2] sm:$0xff]
    %v362 = vld [vmem:[#allocation2 + $0x8] sm:$0xff]
    %v363 = vld [vmem:[#allocation2 + $0x1] sm:$0xff]
    %v364 = vld [vmem:[#allocation2 + $0x9] sm:$0xff]
    %v365 = vld [vmem:[#allocation2 + $0x2] sm:$0xff]
    %v366 = vld [vmem:[#allocation2 + $0xa] sm:$0xff]
    %v367 = vld [vmem:[#allocation2 + $0x3] sm:$0xff]
    %v368 = vld [vmem:[#allocation2 + $0xb] sm:$0xff]
    %v369 = vld [vmem:[#allocation2 + $0x4] sm:$0xff]
    %v370 = vld [vmem:[#allocation2 + $0xc] sm:$0xff]
    %v371 = vld [vmem:[%s6] sm:$0xff]
    %v372 = vld [vmem:[%s6 + $0x8] sm:$0xff]
    %v373 = vld [vmem:[%s6 + $0x10] sm:$0xff]
    %v374 = vld [vmem:[%s6 + $0x18] sm:$0xff]
    %v375 = vld [vmem:[%s6 + $0x20] sm:$0xff]
    %v376 = vld [vmem:[%s6 + $0x28] sm:$0xff]
    %v377 = vld [vmem:[%s6 + $0x30] sm:$0xff]
    %v378 = vld [vmem:[%s6 + $0x38] sm:$0xff]
    %v379 = vld [vmem:[%s6 + $0x40] sm:$0xff]
    %v380 = vld [vmem:[%s6 + $0x48] sm:$0xff]
    %v381 = vld [vmem:[%s6 + $0x50] sm:$0xff]
    %v382 = vld [vmem:[%s6 + $0x58] sm:$0xff]
    %v383 = vld [vmem:[%s6 + $0x60] sm:$0xff]
    %v384 = vld [vmem:[%s6 + $0x68] sm:$0xff]
    %v385 = vld [vmem:[%s6 + $0x70] sm:$0xff]
    %v386 = vld [vmem:[%s6 + $0x78] sm:$0xff]
    %v387 = vld [vmem:[%s6 + $0x80] sm:$0xff]
    %v388 = vld [vmem:[%s6 + $0x88] sm:$0xff]
    %v389 = vld [vmem:[%s6 + $0x90] sm:$0xff]
    %v390 = vld [vmem:[%s6 + $0x98] sm:$0xff]
    %v391 = vld [vmem:[%s6 + $0xa0] sm:$0xff]
    %v392 = vld [vmem:[%s6 + $0xa8] sm:$0xff]
    %v393 = vld [vmem:[%s6 + $0xb0] sm:$0xff]
    %v394 = vld [vmem:[%s6 + $0xb8] sm:$0xff]
    %v395 = vld [vmem:[%s6 + $0xc0] sm:$0xff]
    %v396 = vld [vmem:[%s6 + $0xc8] sm:$0xff]
    %v397 = vld [vmem:[%s6 + $0xd0] sm:$0xff]
    %v398 = vld [vmem:[%s6 + $0xd8] sm:$0xff]
    %v399 = vld [vmem:[%s6 + $0xe0] sm:$0xff]
    %v400 = vld [vmem:[%s6 + $0xe8] sm:$0xff]
    %v401 = vld [vmem:[%s6 + $0xf0] sm:$0xff]
    %v402 = vld [vmem:[%s6 + $0xf8] sm:$0xff]
    %v403 = vld [vmem:[%s6 + $0x100] sm:$0xff]
    %v404 = vld [vmem:[%s6 + $0x108] sm:$0xff]
    %v405 = vld [vmem:[%s6 + $0x110] sm:$0xff]
    %v406 = vld [vmem:[%s6 + $0x118] sm:$0xff]
    %v407 = vld [vmem:[%s6 + $0x120] sm:$0xff]
    %v408 = vld [vmem:[%s6 + $0x128] sm:$0xff]
    %v409 = vld [vmem:[%s6 + $0x130] sm:$0xff]
    %v410 = vld [vmem:[%s6 + $0x138] sm:$0xff]
    %v411 = vld [vmem:[%s6 + $0x140] sm:$0xff]
    %v412 = vld [vmem:[%s6 + $0x148] sm:$0xff]
    %v413 = vld [vmem:[%s6 + $0x150] sm:$0xff]
    %v414 = vld [vmem:[%s6 + $0x158] sm:$0xff]
    %v415 = vld [vmem:[%s6 + $0x160] sm:$0xff]
    %v416 = vld [vmem:[%s6 + $0x168] sm:$0xff]
    %v417 = vld [vmem:[%s6 + $0x170] sm:$0xff]
    %v418 = vld [vmem:[%s6 + $0x178] sm:$0xff]
    %v419 = vld [vmem:[%s6 + $0x180] sm:$0xff]
    %v420 = vld [vmem:[%s6 + $0x188] sm:$0xff]
    %v421 = vld [vmem:[%s6 + $0x190] sm:$0xff]
    %v422 = vld [vmem:[%s6 + $0x198] sm:$0xff]
    %v423 = vld [vmem:[%s6 + $0x1a0] sm:$0xff]
    %v424 = vld [vmem:[%s6 + $0x1a8] sm:$0xff]
    %v425 = vld [vmem:[%s6 + $0x1b0] sm:$0xff]
    %v426 = vld [vmem:[%s6 + $0x1b8] sm:$0xff]
    %v427 = vld [vmem:[%s6 + $0x1c0] sm:$0xff]
    %v428 = vld [vmem:[%s6 + $0x1c8] sm:$0xff]
    %v429 = vld [vmem:[%s6 + $0x1d0] sm:$0xff]
    %v430 = vld [vmem:[%s6 + $0x1d8] sm:$0xff]
    %v431 = vld [vmem:[%s6 + $0x1e0] sm:$0xff]
    %v432 = vld [vmem:[%s6 + $0x1e8] sm:$0xff]
    %v433 = vld [vmem:[%s6 + $0x1f0] sm:$0xff]
    %v434 = vld [vmem:[%s6 + $0x1f8] sm:$0xff]
    %v435 = vld [vmem:[%s6 + $0x200] sm:$0xff]
    %v436 = vld [vmem:[%s6 + $0x208] sm:$0xff]
    %v437 = vld [vmem:[%s6 + $0x210] sm:$0xff]
    %v438 = vld [vmem:[%s6 + $0x218] sm:$0xff]
    %v439 = vld [vmem:[%s6 + $0x220] sm:$0xff]
    %v440 = vld [vmem:[%s6 + $0x228] sm:$0xff]
    %v441 = vld [vmem:[%s6 + $0x230] sm:$0xff]
    %v442 = vld [vmem:[%s6 + $0x238] sm:$0xff]
    %v443 = vld [vmem:[%s6 + $0x240] sm:$0xff]
    %v444 = vld [vmem:[%s6 + $0x248] sm:$0xff]
    %v445 = vld [vmem:[%s6 + $0x250] sm:$0xff]
    %v446 = vld [vmem:[%s6 + $0x258] sm:$0xff]
    %v447 = vld [vmem:[%s6 + $0x260] sm:$0xff]
    %v448 = vld [vmem:[%s6 + $0x268] sm:$0xff]
    %v449 = vld [vmem:[%s6 + $0x270] sm:$0xff]
    %v450 = vld [vmem:[%s6 + $0x278] sm:$0xff]
    %v451 = vld [vmem:[%s1] sm:$0xff]
    %v452 = vld [vmem:[%s1 + $0x8] sm:$0xff]
    %v453 = vld [vmem:[%s8] sm:$0xff]
    %v454 = vld [vmem:[%s8 + $0x8] sm:$0xff]
    %v455 = vld [vmem:[%s8 + $0x10] sm:$0xff]
    %v456 = vld [vmem:[%s8 + $0x18] sm:$0x3f]
    %vm457 = vcmask 244736
    %v459 = vsel %vm457, %v451, 0
    %v462 = vsel %vm457, %v452, 0
    %v465 = vsel %vm172, %v456, 0
    %467 = vmatprep.subr.mxu0 0.0
    %468 = vmatpush1.msra.mxu0 %v453
    %469 = vmatprep.subr.mxu0 0.0
    %470 = vmatpush1.msra.mxu0 %v454
    %471 = vmatprep.subr.mxu0 0.0
    %472 = vmatpush1.msra.mxu0 %v455
    %473 = vmatprep.subr.mxu0 0.0
    %474 = vmatpush1.msra.mxu0 %v465
    %475 = vmatprep.subr.mxu0 0.0
    %476 = vmatpush1.msra.mxu0 0.0
    %477 = vmatprep.subr.mxu0 0.0
    %478 = vmatpush1.msra.mxu0 0.0
    %479 = vmatprep.subr.mxu0 0.0
    %480 = vmatpush1.msra.mxu0 0.0
    %481 = vmatprep.subr.mxu0 0.0
    %482 = vmatpush1.msra.mxu0 0.0
    %483 = vmatprep.subr.mxu0 0.0
    %484 = vmatpush1.msra.mxu0 0.0
    %485 = vmatprep.subr.mxu0 0.0
    %486 = vmatpush1.msra.mxu0 0.0
    %487 = vmatprep.subr.mxu0 0.0
    %488 = vmatpush1.msra.mxu0 0.0
    %489 = vmatprep.subr.mxu0 0.0
    %490 = vmatpush1.msra.mxu0 0.0
    %491 = vmatprep.subr.mxu0 0.0
    %492 = vmatpush1.msra.mxu0 0.0
    %493 = vmatprep.subr.mxu0 0.0
    %494 = vmatpush1.msra.mxu0 0.0
    %495 = vmatprep.subr.mxu0 0.0
    %496 = vmatpush1.msra.mxu0 0.0
    %497 = vmatprep.subr.mxu0 0.0
    %498 = vmatpush1.msra.mxu0 0.0
    %499 = vmatprep.subr.mxu0 0.0
    %500 = vmatpush1.msra.mxu0 0.0
    %501 = vmatprep.subr.mxu0 0.0
    %502 = vmatpush1.msra.mxu0 0.0
    %503 = vmatprep.subr.mxu0 0.0
    %504 = vmatpush1.msra.mxu0 0.0
    %505 = vmatprep.subr.mxu0 0.0
    %506 = vmatpush1.msra.mxu0 0.0
    %507 = vmatprep.subr.mxu0 0.0
    %508 = vmatpush1.msra.mxu0 0.0
    %509 = vmatprep.subr.mxu0 0.0
    %510 = vmatpush1.msra.mxu0 0.0
    %511 = vmatprep.subr.mxu0 0.0
    %512 = vmatpush1.msra.mxu0 0.0
    %513 = vmatprep.subr.mxu0 0.0
    %514 = vmatpush1.msra.mxu0 0.0
    %515 = vmatprep.subr.mxu0 0.0
    %516 = vmatpush1.msra.mxu0 0.0
    %517 = vmatprep.subr.mxu0 0.0
    %518 = vmatpush1.msra.mxu0 0.0
    %519 = vmatprep.subr.mxu0 0.0
    %520 = vmatpush1.msra.mxu0 0.0
    %521 = vmatprep.subr.mxu0 0.0
    %522 = vmatpush1.msra.mxu0 0.0
    %523 = vmatprep.subr.mxu0 0.0
    %524 = vmatpush1.msra.mxu0 0.0
    %525 = vmatprep.subr.mxu0 0.0
    %526 = vmatpush1.msra.mxu0 0.0
    %527 = vmatprep.subr.mxu0 0.0
    %528 = vmatpush1.msra.mxu0 0.0
    %529 = vmatprep.subr.mxu0 0.0
    %530 = vmatpush1.msra.mxu0 0.0
    %531 = vmatprep.mubr.f32.mxu0 0.0
    %532 = vmatmul.mubr.f32.gmra.mrb[0].mxu0 %v459
    %v533 = vpop.f32.mrb[0].mxu0
    %v534 = vadd.f32 0.0, %v533
    %v535 = vpop.f32.mrb[0].mxu0
    %536 = vmatprep.mubr.f32.mxu0 0.0
    %537 = vmatmul.mubr.f32.gmra.mrb[0].mxu0 %v462
    %v538 = vpop.f32.mrb[0].mxu0
    %v539 = vadd.f32 0.0, %v538
    %v540 = vpop.f32.mrb[0].mxu0
    %541 = vdwg.mxu0
    %542 = vmatprep.subr.mxu0 0.0
    %543 = vmatpush1.msra.mxu0 %v371
    %544 = vmatprep.subr.mxu0 0.0
    %545 = vmatpush1.msra.mxu0 %v372
    %546 = vmatprep.subr.mxu0 0.0
    %547 = vmatpush1.msra.mxu0 %v373
    %548 = vmatprep.subr.mxu0 0.0
    %549 = vmatpush1.msra.mxu0 %v374
    %550 = vmatprep.subr.mxu0 0.0
    %551 = vmatpush1.msra.mxu0 %v375
    %552 = vmatprep.subr.mxu0 0.0
    %553 = vmatpush1.msra.mxu0 %v376
    %554 = vmatprep.subr.mxu0 0.0
    %555 = vmatpush1.msra.mxu0 %v377
    %556 = vmatprep.subr.mxu0 0.0
    %557 = vmatpush1.msra.mxu0 %v378
    %558 = vmatprep.subr.mxu0 0.0
    %559 = vmatpush1.msra.mxu0 %v379
    %560 = vmatprep.subr.mxu0 0.0
    %561 = vmatpush1.msra.mxu0 %v380
    %562 = vmatprep.subr.mxu0 0.0
    %563 = vmatpush1.msra.mxu0 %v381
    %564 = vmatprep.subr.mxu0 0.0
    %565 = vmatpush1.msra.mxu0 %v382
    %566 = vmatprep.subr.mxu0 0.0
    %567 = vmatpush1.msra.mxu0 %v383
    %568 = vmatprep.subr.mxu0 0.0
    %569 = vmatpush1.msra.mxu0 %v384
    %570 = vmatprep.subr.mxu0 0.0
    %571 = vmatpush1.msra.mxu0 %v385
    %572 = vmatprep.subr.mxu0 0.0
    %573 = vmatpush1.msra.mxu0 %v386
    %574 = vmatprep.subr.mxu0 0.0
    %575 = vmatpush1.msra.mxu0 %v387
    %576 = vmatprep.subr.mxu0 0.0
    %577 = vmatpush1.msra.mxu0 %v388
    %578 = vmatprep.subr.mxu0 0.0
    %579 = vmatpush1.msra.mxu0 %v389
    %580 = vmatprep.subr.mxu0 0.0
    %581 = vmatpush1.msra.mxu0 %v390
    %582 = vmatprep.subr.mxu0 0.0
    %583 = vmatpush1.msra.mxu0 %v391
    %584 = vmatprep.subr.mxu0 0.0
    %585 = vmatpush1.msra.mxu0 %v392
    %586 = vmatprep.subr.mxu0 0.0
    %587 = vmatpush1.msra.mxu0 %v393
    %588 = vmatprep.subr.mxu0 0.0
    %589 = vmatpush1.msra.mxu0 %v394
    %590 = vmatprep.subr.mxu0 0.0
    %591 = vmatpush1.msra.mxu0 %v395
    %592 = vmatprep.subr.mxu0 0.0
    %593 = vmatpush1.msra.mxu0 %v396
    %594 = vmatprep.subr.mxu0 0.0
    %595 = vmatpush1.msra.mxu0 %v397
    %596 = vmatprep.subr.mxu0 0.0
    %597 = vmatpush1.msra.mxu0 %v398
    %598 = vmatprep.subr.mxu0 0.0
    %599 = vmatpush1.msra.mxu0 %v399
    %600 = vmatprep.subr.mxu0 0.0
    %601 = vmatpush1.msra.mxu0 %v400
    %602 = vmatprep.subr.mxu0 0.0
    %603 = vmatpush1.msra.mxu0 %v401
    %604 = vmatprep.subr.mxu0 0.0
    %605 = vmatpush1.msra.mxu0 %v402
    %606 = vmatprep.mubr.f32.mxu0 %v363
    %607 = vmatmul.mubr.f32.gmra.mrb[0].mxu0 %v361
    %v608 = vpop.f32.mrb[0].mxu0
    %v609 = vadd.f32 %v534, %v608
    %v610 = vpop.f32.mrb[0].mxu0
    %611 = vmatprep.mubr.f32.mxu0 %v364
    %612 = vmatmul.mubr.f32.gmra.mrb[0].mxu0 %v362
    %v613 = vpop.f32.mrb[0].mxu0
    %v614 = vadd.f32 %v539, %v613
    %v615 = vpop.f32.mrb[0].mxu0
    %616 = vdwg.mxu0
    %617 = vmatprep.subr.mxu0 0.0
    %618 = vmatpush1.msra.mxu0 %v403
    %619 = vmatprep.subr.mxu0 0.0
    %620 = vmatpush1.msra.mxu0 %v404
    %621 = vmatprep.subr.mxu0 0.0
    %622 = vmatpush1.msra.mxu0 %v405
    %623 = vmatprep.subr.mxu0 0.0
    %624 = vmatpush1.msra.mxu0 %v406
    %625 = vmatprep.subr.mxu0 0.0
    %626 = vmatpush1.msra.mxu0 %v407
    %627 = vmatprep.subr.mxu0 0.0
    %628 = vmatpush1.msra.mxu0 %v408
    %629 = vmatprep.subr.mxu0 0.0
    %630 = vmatpush1.msra.mxu0 %v409
    %631 = vmatprep.subr.mxu0 0.0
    %632 = vmatpush1.msra.mxu0 %v410
    %633 = vmatprep.subr.mxu0 0.0
    %634 = vmatpush1.msra.mxu0 %v411
    %635 = vmatprep.subr.mxu0 0.0
    %636 = vmatpush1.msra.mxu0 %v412
    %637 = vmatprep.subr.mxu0 0.0
    %638 = vmatpush1.msra.mxu0 %v413
    %639 = vmatprep.subr.mxu0 0.0
    %640 = vmatpush1.msra.mxu0 %v414
    %641 = vmatprep.subr.mxu0 0.0
    %642 = vmatpush1.msra.mxu0 %v415
    %643 = vmatprep.subr.mxu0 0.0
    %644 = vmatpush1.msra.mxu0 %v416
    %645 = vmatprep.subr.mxu0 0.0
    %646 = vmatpush1.msra.mxu0 %v417
    %647 = vmatprep.subr.mxu0 0.0
    %648 = vmatpush1.msra.mxu0 %v418
    %649 = vmatprep.subr.mxu0 0.0
    %650 = vmatpush1.msra.mxu0 %v419
    %651 = vmatprep.subr.mxu0 0.0
    %652 = vmatpush1.msra.mxu0 %v420
    %653 = vmatprep.subr.mxu0 0.0
    %654 = vmatpush1.msra.mxu0 %v421
    %655 = vmatprep.subr.mxu0 0.0
    %656 = vmatpush1.msra.mxu0 %v422
    %657 = vmatprep.subr.mxu0 0.0
    %658 = vmatpush1.msra.mxu0 %v423
    %659 = vmatprep.subr.mxu0 0.0
    %660 = vmatpush1.msra.mxu0 %v424
    %661 = vmatprep.subr.mxu0 0.0
    %662 = vmatpush1.msra.mxu0 %v425
    %663 = vmatprep.subr.mxu0 0.0
    %664 = vmatpush1.msra.mxu0 %v426
    %665 = vmatprep.subr.mxu0 0.0
    %666 = vmatpush1.msra.mxu0 %v427
    %667 = vmatprep.subr.mxu0 0.0
    %668 = vmatpush1.msra.mxu0 %v428
    %669 = vmatprep.subr.mxu0 0.0
    %670 = vmatpush1.msra.mxu0 %v429
    %671 = vmatprep.subr.mxu0 0.0
    %672 = vmatpush1.msra.mxu0 %v430
    %673 = vmatprep.subr.mxu0 0.0
    %674 = vmatpush1.msra.mxu0 %v431
    %675 = vmatprep.subr.mxu0 0.0
    %676 = vmatpush1.msra.mxu0 %v432
    %677 = vmatprep.subr.mxu0 0.0
    %678 = vmatpush1.msra.mxu0 %v433
    %679 = vmatprep.subr.mxu0 0.0
    %680 = vmatpush1.msra.mxu0 %v434
    %681 = vmatprep.mubr.f32.mxu0 %v367
    %682 = vmatmul.mubr.f32.gmra.mrb[0].mxu0 %v365
    %v683 = vpop.f32.mrb[0].mxu0
    %v684 = vadd.f32 %v609, %v683
    %v685 = vpop.f32.mrb[0].mxu0
    %686 = vmatprep.mubr.f32.mxu0 %v368
    %687 = vmatmul.mubr.f32.gmra.mrb[0].mxu0 %v366
    %v688 = vpop.f32.mrb[0].mxu0
    %v689 = vadd.f32 %v614, %v688
    %v690 = vpop.f32.mrb[0].mxu0
    %691 = vdwg.mxu0
    %692 = vmatprep.subr.mxu0 0.0
    %693 = vmatpush1.msra.mxu0 %v435
    %694 = vmatprep.subr.mxu0 0.0
    %695 = vmatpush1.msra.mxu0 %v436
    %696 = vmatprep.subr.mxu0 0.0
    %697 = vmatpush1.msra.mxu0 %v437
    %698 = vmatprep.subr.mxu0 0.0
    %699 = vmatpush1.msra.mxu0 %v438
    %700 = vmatprep.subr.mxu0 0.0
    %701 = vmatpush1.msra.mxu0 %v439
    %702 = vmatprep.subr.mxu0 0.0
    %703 = vmatpush1.msra.mxu0 %v440
    %704 = vmatprep.subr.mxu0 0.0
    %705 = vmatpush1.msra.mxu0 %v441
    %706 = vmatprep.subr.mxu0 0.0
    %707 = vmatpush1.msra.mxu0 %v442
    %708 = vmatprep.subr.mxu0 0.0
    %709 = vmatpush1.msra.mxu0 %v443
    %710 = vmatprep.subr.mxu0 0.0
    %711 = vmatpush1.msra.mxu0 %v444
    %712 = vmatprep.subr.mxu0 0.0
    %713 = vmatpush1.msra.mxu0 %v445
    %714 = vmatprep.subr.mxu0 0.0
    %715 = vmatpush1.msra.mxu0 %v446
    %716 = vmatprep.subr.mxu0 0.0
    %717 = vmatpush1.msra.mxu0 %v447
    %718 = vmatprep.subr.mxu0 0.0
    %719 = vmatpush1.msra.mxu0 %v448
    %720 = vmatprep.subr.mxu0 0.0
    %721 = vmatpush1.msra.mxu0 %v449
    %722 = vmatprep.subr.mxu0 0.0
    %723 = vmatpush1.msra.mxu0 %v450
    %724 = vmatprep.subr.mxu0 0.0
    %725 = vmatpush1.msra.mxu0 0.0
    %726 = vmatprep.subr.mxu0 0.0
    %727 = vmatpush1.msra.mxu0 0.0
    %728 = vmatprep.subr.mxu0 0.0
    %729 = vmatpush1.msra.mxu0 0.0
    %730 = vmatprep.subr.mxu0 0.0
    %731 = vmatpush1.msra.mxu0 0.0
    %732 = vmatprep.subr.mxu0 0.0
    %733 = vmatpush1.msra.mxu0 0.0
    %734 = vmatprep.subr.mxu0 0.0
    %735 = vmatpush1.msra.mxu0 0.0
    %736 = vmatprep.subr.mxu0 0.0
    %737 = vmatpush1.msra.mxu0 0.0
    %738 = vmatprep.subr.mxu0 0.0
    %739 = vmatpush1.msra.mxu0 0.0
    %740 = vmatprep.subr.mxu0 0.0
    %741 = vmatpush1.msra.mxu0 0.0
    %742 = vmatprep.subr.mxu0 0.0
    %743 = vmatpush1.msra.mxu0 0.0
    %744 = vmatprep.subr.mxu0 0.0
    %745 = vmatpush1.msra.mxu0 0.0
    %746 = vmatprep.subr.mxu0 0.0
    %747 = vmatpush1.msra.mxu0 0.0
    %748 = vmatprep.subr.mxu0 0.0
    %749 = vmatpush1.msra.mxu0 0.0
    %750 = vmatprep.subr.mxu0 0.0
    %751 = vmatpush1.msra.mxu0 0.0
    %752 = vmatprep.subr.mxu0 0.0
    %753 = vmatpush1.msra.mxu0 0.0
    %754 = vmatprep.subr.mxu0 0.0
    %755 = vmatpush1.msra.mxu0 0.0
    %756 = vmatprep.mubr.f32.mxu0 0.0
    %757 = vmatmul.mubr.f32.gmra.mrb[0].mxu0 %v369
    %v758 = vpop.f32.mrb[0].mxu0
    %v759 = vadd.f32 %v684, %v758
    %v760 = vpop.f32.mrb[0].mxu0
    %761 = vmatprep.mubr.f32.mxu0 0.0
    %762 = vmatmul.mubr.f32.gmra.mrb[0].mxu0 %v370
    %v763 = vpop.f32.mrb[0].mxu0
    %v764 = vadd.f32 %v689, %v763
    %v765 = vpop.f32.mrb[0].mxu0
    %766 = vdwg.mxu0
    %v767 = vld [vmem:[#allocation8] sm:$0x1]
    %v769 = vlaneseq
    %v770 = vshrl.u32 %v769, 7
    %v771 = vsub.s32 0, %v770
    %v772 = vrot.slane %v767, %v771
    %v774 = vadd.f32 %v759, %v772
    %v775 = vadd.f32 %v764, %v772
    %vm776 = vcmp.ne.f32.partialorder %v148, 0.0
    %vm777 = vcmp.ne.f32.partialorder %v149, 0.0
    %v778 = vsel %vm776, 1, 0
    %v779 = vsel %vm777, 1, 0
    %v780 = vcvt.s32.f32 %v778
    %v781 = vcvt.s32.f32 %v779
    %784 = vrot.lane.b32.xlu0 %v780, 68
    %v785 = vpop.permute.xlu0 %784
    %786 = vrot.lane.b32.xlu0 %v781, 68
    %v787 = vpop.permute.xlu0 %786
    %v790 = vmul.f32 %v774, %v785
    %v791 = vmul.f32 %v775, %v787
    %vm792 = vcmp.ne.f32.partialorder %v790, 0.0
    %vm793 = vcmp.ne.f32.partialorder %v791, 0.0
    %v794 = vsel %vm792, 1, 0
    %v795 = vsel %vm793, 1, 0
    %v796 = vcvt.s32.f32 %v794
    %v797 = vcvt.s32.f32 %v795
    %vm798 = vcmask 7168
    %v799 = vsel %vm798, %v796, 0.0
    %v800 = vsel %vm798, %v797, 0.0
    %v801 = vadd.f32 %v799, %v800
    %v802 = vrot.slane %v801, 4
    %v803 = vadd.f32 %v801, %v802
    %v804 = vrot.slane %v803, 2
    %v805 = vadd.f32 %v803, %v804
    %v806 = vrot.slane %v805, 1
    %v807 = vadd.f32 %v805, %v806
    %v808 = vmax.f32 %v807, 1.0
    %v809 = vmul.f32 %v790, %v796
    %v810 = vmul.f32 %v791, %v797
    %v811 = vsel %vm798, %v809, 0.0
    %v812 = vsel %vm798, %v810, 0.0
    %v813 = vadd.f32 %v811, %v812
    %v814 = vrot.slane %v813, 4
    %v815 = vadd.f32 %v813, %v814
    %v816 = vrot.slane %v815, 2
    %v817 = vadd.f32 %v815, %v816
    %v818 = vrot.slane %v817, 1
    %v819 = vadd.f32 %v817, %v818
    %v820 = vrcp.pop %v808
    %v821 = vmul.f32 %v819, %v820
    %v822 = vsub.f32 %v790, %v821
    %v823 = vsub.f32 %v791, %v821
    %v824 = vmul.f32 %v822, 1.2
    %v825 = vmul.f32 %v823, 1.2
    %v826 = vadd.f32 %v824, %v821
    %v827 = vadd.f32 %v825, %v821
    %v828 = vmax.f32 %v826, 0.0
    %v829 = vmax.f32 %v827, 0.0
    %vm830 = vcmp.ne.f32.partialorder %v774, 0.0
    %vm831 = vcmp.ne.f32.partialorder %v775, 0.0
    %v832 = vsel %vm830, 1, 0
    %v833 = vsel %vm831, 1, 0
    %v834 = vcvt.s32.f32 %v832
    %v835 = vcvt.s32.f32 %v833
    %vm836 = vcmask 15368
    %v837 = vsel %vm836, %v834, 0.0
    %v838 = vsel %vm836, %v835, 0.0
    %v839 = vadd.f32 %v837, %v838
    %v840 = vrot.slane %v839, 4
    %v841 = vadd.f32 %v839, %v840
    %v842 = vrot.slane %v841, 2
    %v843 = vadd.f32 %v841, %v842
    %v844 = vrot.slane %v843, 1
    %v845 = vadd.f32 %v843, %v844
    %v846 = vmax.f32 %v845, 1.0
    %v847 = vmul.f32 %v774, %v834
    %v848 = vmul.f32 %v775, %v835
    %v849 = vsel %vm836, %v847, 0.0
    %v850 = vsel %vm836, %v848, 0.0
    %v851 = vadd.f32 %v849, %v850
    %v852 = vrot.slane %v851, 4
    %v853 = vadd.f32 %v851, %v852
    %v854 = vrot.slane %v853, 2
    %v855 = vadd.f32 %v853, %v854
    %v856 = vrot.slane %v855, 1
    %v857 = vadd.f32 %v855, %v856
    %v858 = vrcp.pop %v846
    %v859 = vmul.f32 %v857, %v858
    %v860 = vsub.f32 %v774, %v859
    %v861 = vsub.f32 %v775, %v859
    %v862 = vmul.f32 %v860, 1.2
    %v863 = vmul.f32 %v861, 1.2
    %v864 = vadd.f32 %v862, %v859
    %v865 = vadd.f32 %v863, %v859
    %v866 = vmax.f32 %v864, 0.0
    %v867 = vmax.f32 %v865, 0.0
    %v868 = vld [vmem:[#allocation10] sm:$0x1]
    %870 = vset.pattern.permute.xlu0 0
    %871 = vperm.xlu0 %870, %v828
    %v872 = vpop.permute.xlu0 %871
    %875 = vset.pattern.permute.xlu0 0
    %876 = vperm.xlu0 %875, %v829
    %v877 = vpop.permute.xlu0 %876
    %v880 = vlaneseq
    %v881 = vshrl.u32 %v880, 7
    %v882 = vsub.s32 0, %v881
    %v883 = vrot.slane %v868, %v882
    %v885 = vmul.f32 %v872, %v883
    %v886 = vmul.f32 %v877, %v883
    %v887 = vld [vmem:[#allocation11] sm:$0x1]
    %v889 = vlaneseq
    %v890 = vshrl.u32 %v889, 7
    %v891 = vsub.s32 0, %v890
    %v892 = vrot.slane %v887, %v891
    %v894 = vadd.f32 %v885, %v892
    %v895 = vadd.f32 %v886, %v892
    %v896 = vld [vmem:[#allocation13] sm:$0x1]
    %898 = vset.pattern.permute.xlu0 1
    %899 = vperm.xlu0 %898, %v866
    %v900 = vpop.permute.xlu0 %899
    %903 = vset.pattern.permute.xlu0 1
    %904 = vperm.xlu0 %903, %v867
    %v905 = vpop.permute.xlu0 %904
    %v908 = vlaneseq
    %v909 = vshrl.u32 %v908, 7
    %v910 = vsub.s32 0, %v909
    %v911 = vrot.slane %v896, %v910
    %v913 = vmul.f32 %v900, %v911
    %v914 = vmul.f32 %v905, %v911
    %v915 = vld [vmem:[#allocation14] sm:$0x1]
    %v917 = vlaneseq
    %v918 = vshrl.u32 %v917, 7
    %v919 = vsub.s32 0, %v918
    %v920 = vrot.slane %v915, %v919
    %v922 = vadd.f32 %v913, %v920
    %v923 = vadd.f32 %v914, %v920
    %v924 = vadd.f32 %v351, %v922
    %v925 = vadd.f32 %v356, %v923
    %v926 = vadd.f32 %v924, %v894
    %v927 = vadd.f32 %v925, %v895
    %928 = vst [vmem:[%s13] sm:$0xff] %v926
    %929 = vst [vmem:[%s13 + $0x8] sm:$0xff] %v927
    %v930 = vsel %vm798, %v828, %v866
    %v931 = vsel %vm798, %v829, %v867
    %vm932 = vcmask 15360
    %v933 = vsel %vm932, %v930, %v774
    %v934 = vsel %vm932, %v931, %v775
    %vm935 = vcmask 23552
    %v936 = vsel %vm935, %v933, 0.0
    %v937 = vsel %vm935, %v934, 0.0
    %938 = vst [vmem:[%s14] sm:$0xff] %v936
    %939 = vst [vmem:[%s14 + $0x8] sm:$0xff] %v937
    // Predicated region
    $region86: #{portaspeech_forward.2} parent=1 // pred_check
      _
    $region87: #{portaspeech_forward.2} parent=1 // pred_check_branch
      %941 = sbr.rel (0) target = $region89
    $region88: #{portaspeech_forward.2} parent=1 // pred_region
      _
    $region89: #{portaspeech_forward.2} parent=1 // pred_fallthru
      _
    // Predicated region
    $region90: #{portaspeech_forward.2} parent=1 // pred_check
      _
    $region91: #{portaspeech_forward.2} parent=1 // pred_check_branch
      %943 = sbr.rel (0) target = $region93
    $region92: #{portaspeech_forward.2} parent=1 // pred_region
      _
    $region93: #{portaspeech_forward.2} parent=1 // pred_fallthru
      _
    // Predicated region
    $region94: #{portaspeech_forward.2} parent=1 // pred_check
      _
    $region95: #{portaspeech_forward.2} parent=1 // pred_check_branch
      %945 = sbr.rel (0) target = $region97
    $region96: #{portaspeech_forward.2} parent=1 // pred_region
      _
    $region97: #{portaspeech_forward.2} parent=1 // pred_fallthru
      _
    // Predicated region
    $region98: #{portaspeech_forward.2} parent=1 // pred_check
      _
    $region99: #{portaspeech_forward.2} parent=1 // pred_check_branch
      %947 = sbr.rel (0) target = $region101
    $region100: #{portaspeech_forward.2} parent=1 // pred_region
      _
    $region101: #{portaspeech_forward.2} parent=1 // pred_fallthru
      _
    %948 = vsyncpa [#allocation4], 1
    %949 = vsyncpa [#allocation6], 1
    %950 = vsyncpa [#allocation9], 1
    %951 = vsyncpa [#allocation12], 1
    %952 = vsyncpa [#allocation15], 1

// kernel: portaspeech_forward.3
$region0: #{portaspeech_forward.3}
  #allocation0 [shape = 'u32[]', space=smem, size = 0x4, offset = 0x4, fixed_abs, tag = 'smem constant byte address 0x4 - core index']
  #allocation1 [shape = 'u32[144,128]{1,0:T(1,128)}', space=vmem, size = 0x12000, scoped, tag = 'internal scratch']
  #allocation2 [shape = 'f32[68,128]{1,0:T(8,128)}', space=vmem, size = 0x9000, scoped, tag = 'scratch operand']
  #allocation3 [shape = 'f32[68,256]{1,0:T(8,128)}', space=vmem, size = 0x12000, scoped, tag = 'scratch operand']
  %s0 = inlined_call_operand.vmem [shape: f32[64,128], index: 0, kind: input, shape index: {}]
  %s1 = inlined_call_operand.vmem [shape: f32[64,1], index: 1, kind: input, shape index: {}]
  %s2 = inlined_call_operand.vmem [shape: f32[640,128], index: 2, kind: input, shape index: {}]
  %s3 = inlined_call_operand.vmem [shape: f32[1,128], index: 3, kind: input, shape index: {}]
  %s4 = inlined_call_operand.vmem [shape: f32[640,128], index: 4, kind: input, shape index: {}]
  %s5 = inlined_call_operand.vmem [shape: f32[1,128], index: 5, kind: input, shape index: {}]
  %s6 = inlined_call_operand.hbm [shape: f32[384,128], index: 6, kind: input, shape index: {}]
  %s7 = inlined_call_operand.vmem [shape: f32[1,128], index: 7, kind: input, shape index: {}]
  %s8 = inlined_call_operand.vmem [shape: f32[128,128], index: 8, kind: input, shape index: {}]
  %s9 = inlined_call_operand.vmem [shape: f32[1,128], index: 9, kind: input, shape index: {}]
  %s10 = inlined_call_operand.vmem [shape: f32[1280,128], index: 10, kind: input, shape index: {}]
  %s11 = inlined_call_operand.vmem [shape: f32[1,128], index: 11, kind: input, shape index: {}]
  %s12 = inlined_call_operand.hbm [shape: f32[128,128], index: 12, kind: input, shape index: {}]
  %s13 = inlined_call_operand.vmem [shape: f32[1,128], index: 13, kind: input, shape index: {}]
  %s14 = inlined_call_operand.hbm [shape: f32[64,128], index: 14, kind: output, shape index: {0}]
  %s15 = inlined_call_operand.hbm [shape: f32[64,128], index: 15, kind: output, shape index: {1}]
  %16 = xla_tuple %s14, %s15
  %s17 = sld [smem:[#allocation0]]
  $region82: #{portaspeech_forward.3} parent=0
    _
  %s19 = ssub.s32 1, %s17
  %s20 = scalar_select 0, %s19, %s17
  $region1: #{portaspeech_forward.3} parent=0
    #allocation4 [shape = 'u8[196608]{0}', space=vmem, size = 0x30000, scoped, tag = 'input window, operand 6, single buffered']
    #allocation5 [shape = 's32[1]{0}', space=sflag, size = 0x4, scoped, tag = 'scoped memory for portaspeech_forward.3']
    #allocation6 [shape = 's32[1]{0}', space=sflag, size = 0x4, scoped, tag = 'scoped memory for portaspeech_forward.3']
    #allocation7 [shape = 'u8[65536]{0}', space=vmem, size = 0x10000, scoped, tag = 'input window, operand 12, single buffered']
    #allocation8 [shape = 's32[1]{0}', space=sflag, size = 0x4, scoped, tag = 'scoped memory for portaspeech_forward.3']
    #allocation9 [shape = 'u8[32768]{0}', space=vmem, size = 0x8000, scoped, tag = 'output window, operand 0, single buffered']
    #allocation10 [shape = 'u8[32768]{0}', space=vmem, size = 0x8000, scoped, tag = 'output window, operand 1, single buffered']
    #allocation11 [shape = 's32[1]{0}', space=sflag, size = 0x4, scoped, tag = 'scoped memory for portaspeech_forward.3']
    %21 = vsyncpa [#allocation5], 0
    %22 = vsyncpa [#allocation8], 0
    %23 = vsyncpa [#allocation6], 0
    %24 = vsyncpa [#allocation11], 0
    // Predicated region
    $region2: #{portaspeech_forward.3} parent=1 // pred_check
      _
    $region3: #{portaspeech_forward.3} parent=1 // pred_check_branch
      %26 = sbr.rel (0) target = $region5
    $region4: #{portaspeech_forward.3} parent=1 // pred_region
      _
    $region5: #{portaspeech_forward.3} parent=1 // pred_fallthru
      _
    // Predicated region
    $region6: #{portaspeech_forward.3} parent=1 // pred_check
      _
    $region7: #{portaspeech_forward.3} parent=1 // pred_check_branch
      %28 = sbr.rel (0) target = $region9
    $region8: #{portaspeech_forward.3} parent=1 // pred_region
      _
    $region9: #{portaspeech_forward.3} parent=1 // pred_fallthru
      _
    // Predicated region
    $region10: #{portaspeech_forward.3} parent=1 // pred_check
      _
    $region11: #{portaspeech_forward.3} parent=1 // pred_check_branch
      %30 = sbr.rel (0) target = $region13
    $region12: #{portaspeech_forward.3} parent=1 // pred_region
      _
    $region13: #{portaspeech_forward.3} parent=1 // pred_fallthru
      _
    // Predicated region
    $region14: #{portaspeech_forward.3} parent=1 // pred_check
      _
    $region15: #{portaspeech_forward.3} parent=1 // pred_check_branch
      %32 = sbr.rel (0) target = $region17
    $region16: #{portaspeech_forward.3} parent=1 // pred_region
      _
    $region17: #{portaspeech_forward.3} parent=1 // pred_fallthru
      _
    // Predicated region
    $region18: #{portaspeech_forward.3} parent=1 // pred_check
      _
    $region19: #{portaspeech_forward.3} parent=1 // pred_check_branch
      %34 = sbr.rel (0) target = $region21
    $region20: #{portaspeech_forward.3} parent=1 // pred_region
      _
    $region21: #{portaspeech_forward.3} parent=1 // pred_fallthru
      _
    // Predicated region
    $region22: #{portaspeech_forward.3} parent=1 // pred_check
      _
    $region23: #{portaspeech_forward.3} parent=1 // pred_check_branch
      %36 = sbr.rel (0) target = $region25
    $region24: #{portaspeech_forward.3} parent=1 // pred_region
      _
    $region25: #{portaspeech_forward.3} parent=1 // pred_fallthru
      _
    // Predicated region
    $region26: #{portaspeech_forward.3} parent=1 // pred_check
      _
    $region27: #{portaspeech_forward.3} parent=1 // pred_check_branch
      %38 = sbr.rel (0) target = $region29
    $region28: #{portaspeech_forward.3} parent=1 // pred_region
      %s40 = ssub.s32 6144, 6144
      %41 = vsyncadd [#allocation5], %s40
      %s42 = sshll.u32 [#allocation4], 4
      %s43 = int_to_ptr.vmem [resolvable:$true] %s42
      %48 = dma.hbm_to_vmem [thread:$0]  %s6, 6144, %s43, [#allocation5], 128, 128, 8
    $region29: #{portaspeech_forward.3} parent=1 // pred_fallthru
      _
    // Predicated region
    $region30: #{portaspeech_forward.3} parent=1 // pred_check
      _
    $region31: #{portaspeech_forward.3} parent=1 // pred_check_branch
      %50 = sbr.rel (0) target = $region33
    $region32: #{portaspeech_forward.3} parent=1 // pred_region
      _
    $region33: #{portaspeech_forward.3} parent=1 // pred_fallthru
      _
    // Predicated region
    $region34: #{portaspeech_forward.3} parent=1 // pred_check
      _
    $region35: #{portaspeech_forward.3} parent=1 // pred_check_branch
      %52 = sbr.rel (0) target = $region37
    $region36: #{portaspeech_forward.3} parent=1 // pred_region
      _
    $region37: #{portaspeech_forward.3} parent=1 // pred_fallthru
      _
    // Predicated region
    $region38: #{portaspeech_forward.3} parent=1 // pred_check
      _
    $region39: #{portaspeech_forward.3} parent=1 // pred_check_branch
      %54 = sbr.rel (0) target = $region41
    $region40: #{portaspeech_forward.3} parent=1 // pred_region
      _
    $region41: #{portaspeech_forward.3} parent=1 // pred_fallthru
      _
    // Predicated region
    $region42: #{portaspeech_forward.3} parent=1 // pred_check
      _
    $region43: #{portaspeech_forward.3} parent=1 // pred_check_branch
      %56 = sbr.rel (0) target = $region45
    $region44: #{portaspeech_forward.3} parent=1 // pred_region
      _
    $region45: #{portaspeech_forward.3} parent=1 // pred_fallthru
      _
    // Predicated region
    $region46: #{portaspeech_forward.3} parent=1 // pred_check
      _
    $region47: #{portaspeech_forward.3} parent=1 // pred_check_branch
      %58 = sbr.rel (0) target = $region49
    $region48: #{portaspeech_forward.3} parent=1 // pred_region
      _
    $region49: #{portaspeech_forward.3} parent=1 // pred_fallthru
      _
    // Predicated region
    $region50: #{portaspeech_forward.3} parent=1 // pred_check
      _
    $region51: #{portaspeech_forward.3} parent=1 // pred_check_branch
      %60 = sbr.rel (0) target = $region53
    $region52: #{portaspeech_forward.3} parent=1 // pred_region
      %s62 = ssub.s32 2048, 2048
      %63 = vsyncadd [#allocation8], %s62
      %s64 = sshll.u32 [#allocation7], 4
      %s65 = int_to_ptr.vmem [resolvable:$true] %s64
      %70 = dma.hbm_to_vmem [thread:$0]  %s12, 2048, %s65, [#allocation8], 128, 128, 8
    $region53: #{portaspeech_forward.3} parent=1 // pred_fallthru
      _
    // Predicated region
    $region54: #{portaspeech_forward.3} parent=1 // pred_check
      _
    $region55: #{portaspeech_forward.3} parent=1 // pred_check_branch
      %72 = sbr.rel (0) target = $region57
    $region56: #{portaspeech_forward.3} parent=1 // pred_region
      _
    $region57: #{portaspeech_forward.3} parent=1 // pred_fallthru
      _
    // Predicated region
    $region58: #{portaspeech_forward.3} parent=1 // pred_check
      _
    $region59: #{portaspeech_forward.3} parent=1 // pred_check_branch
      %74 = sbr.rel (0) target = $region61
    $region60: #{portaspeech_forward.3} parent=1 // pred_region
      %75 = dma.done [#allocation5], 6144
    $region61: #{portaspeech_forward.3} parent=1 // pred_fallthru
      _
    // Predicated region
    $region62: #{portaspeech_forward.3} parent=1 // pred_check
      _
    $region63: #{portaspeech_forward.3} parent=1 // pred_check_branch
      %77 = sbr.rel (0) target = $region65
    $region64: #{portaspeech_forward.3} parent=1 // pred_region
      %78 = dma.done [#allocation8], 2048
    $region65: #{portaspeech_forward.3} parent=1 // pred_fallthru
      _
    %79 = vst [vmem:[#allocation2] sm:$0xff] 0.0
    %80 = vst [vmem:[#allocation2 + $0x8] sm:$0xff] 0.0
    %81 = vst [vmem:[#allocation2 + $0x10] sm:$0xff] 0.0
    %82 = vst [vmem:[#allocation2 + $0x18] sm:$0xff] 0.0
    %83 = vst [vmem:[#allocation2 + $0x20] sm:$0xff] 0.0
    %84 = vst [vmem:[#allocation2 + $0x28] sm:$0xff] 0.0
    %85 = vst [vmem:[#allocation2 + $0x30] sm:$0xff] 0.0
    %86 = vst [vmem:[#allocation2 + $0x38] sm:$0xff] 0.0
    %87 = vst [vmem:[#allocation2 + $0x40] sm:$0xf] 0.0
    %88 = vst [vmem:[#allocation3] sm:$0xff] 0.0
    %89 = vst [vmem:[#allocation3 + $0x8] sm:$0xff] 0.0
    %90 = vst [vmem:[#allocation3 + $0x10] sm:$0xff] 0.0
    %91 = vst [vmem:[#allocation3 + $0x18] sm:$0xff] 0.0
    %92 = vst [vmem:[#allocation3 + $0x20] sm:$0xff] 0.0
    %93 = vst [vmem:[#allocation3 + $0x28] sm:$0xff] 0.0
    %94 = vst [vmem:[#allocation3 + $0x30] sm:$0xff] 0.0
    %95 = vst [vmem:[#allocation3 + $0x38] sm:$0xff] 0.0
    %96 = vst [vmem:[#allocation3 + $0x40] sm:$0xff] 0.0
    %97 = vst [vmem:[#allocation3 + $0x48] sm:$0xff] 0.0
    %98 = vst [vmem:[#allocation3 + $0x50] sm:$0xff] 0.0
    %99 = vst [vmem:[#allocation3 + $0x58] sm:$0xff] 0.0
    %100 = vst [vmem:[#allocation3 + $0x60] sm:$0xff] 0.0
    %101 = vst [vmem:[#allocation3 + $0x68] sm:$0xff] 0.0
    %102 = vst [vmem:[#allocation3 + $0x70] sm:$0xff] 0.0
    %103 = vst [vmem:[#allocation3 + $0x78] sm:$0xff] 0.0
    %104 = vst [vmem:[#allocation3 + $0x80] sm:$0xf] 0.0
    %105 = vst [vmem:[#allocation3 + $0x88] sm:$0xf] 0.0
    %v106 = vld [vmem:[%s1] sm:$0xff]
    %v107 = vld [vmem:[%s1 + $0x8] sm:$0xff]
    %v108 = vld [vmem:[%s1 + $0x10] sm:$0xff]
    %v109 = vld [vmem:[%s1 + $0x18] sm:$0xff]
    %v110 = vld [vmem:[%s1 + $0x20] sm:$0xff]
    %v111 = vld [vmem:[%s1 + $0x28] sm:$0xff]
    %v112 = vld [vmem:[%s1 + $0x30] sm:$0xff]
    %v113 = vld [vmem:[%s1 + $0x38] sm:$0xff]
    %v114 = vld [vmem:[%s0] sm:$0xff]
    %v115 = vld [vmem:[%s0 + $0x8] sm:$0xff]
    %v116 = vld [vmem:[%s0 + $0x10] sm:$0xff]
    %v117 = vld [vmem:[%s0 + $0x18] sm:$0xff]
    %v118 = vld [vmem:[%s0 + $0x20] sm:$0xff]
    %v119 = vld [vmem:[%s0 + $0x28] sm:$0xff]
    %v120 = vld [vmem:[%s0 + $0x30] sm:$0xff]
    %v121 = vld [vmem:[%s0 + $0x38] sm:$0xff]
    %123 = vset.pattern.permute.xlu0 0
    %124 = vperm.xlu0 %123, %v106
    %v125 = vpop.permute.xlu0 %124
    %128 = vset.pattern.permute.xlu0 0
    %129 = vperm.xlu0 %128, %v107
    %v130 = vpop.permute.xlu0 %129
    %133 = vset.pattern.permute.xlu0 0
    %134 = vperm.xlu0 %133, %v108
    %v135 = vpop.permute.xlu0 %134
    %138 = vset.pattern.permute.xlu0 0
    %139 = vperm.xlu0 %138, %v109
    %v140 = vpop.permute.xlu0 %139
    %143 = vset.pattern.permute.xlu0 0
    %144 = vperm.xlu0 %143, %v110
    %v145 = vpop.permute.xlu0 %144
    %148 = vset.pattern.permute.xlu0 0
    %149 = vperm.xlu0 %148, %v111
    %v150 = vpop.permute.xlu0 %149
    %153 = vset.pattern.permute.xlu0 0
    %154 = vperm.xlu0 %153, %v112
    %v155 = vpop.permute.xlu0 %154
    %158 = vset.pattern.permute.xlu0 0
    %159 = vperm.xlu0 %158, %v113
    %v160 = vpop.permute.xlu0 %159
    %v162 = vmul.f32 %v114, %v125
    %v163 = vmul.f32 %v115, %v130
    %v164 = vmul.f32 %v116, %v135
    %v165 = vmul.f32 %v117, %v140
    %v166 = vmul.f32 %v118, %v145
    %v167 = vmul.f32 %v119, %v150
    %v168 = vmul.f32 %v120, %v155
    %v169 = vmul.f32 %v121, %v160
    %170 = vst [vmem:[#allocation2 + $0x2] sm:$0xff] %v162
    %171 = vst [vmem:[#allocation2 + $0xa] sm:$0xff] %v163
    %172 = vst [vmem:[#allocation2 + $0x12] sm:$0xff] %v164
    %173 = vst [vmem:[#allocation2 + $0x1a] sm:$0xff] %v165
    %174 = vst [vmem:[#allocation2 + $0x22] sm:$0xff] %v166
    %175 = vst [vmem:[#allocation2 + $0x2a] sm:$0xff] %v167
    %176 = vst [vmem:[#allocation2 + $0x32] sm:$0xff] %v168
    %177 = vst [vmem:[#allocation2 + $0x3a] sm:$0xff] %v169
    %v178 = vld [vmem:[#allocation2] sm:$0xff]
    %v179 = vld [vmem:[#allocation2 + $0x8] sm:$0xff]
    %v180 = vld [vmem:[#allocation2 + $0x10] sm:$0xff]
    %v181 = vld [vmem:[#allocation2 + $0x18] sm:$0xff]
    %v182 = vld [vmem:[#allocation2 + $0x20] sm:$0xff]
    %v183 = vld [vmem:[#allocation2 + $0x28] sm:$0xff]
    %v184 = vld [vmem:[#allocation2 + $0x30] sm:$0xff]
    %v185 = vld [vmem:[#allocation2 + $0x38] sm:$0xff]
    %v186 = vld [vmem:[#allocation2 + $0x1] sm:$0xff]
    %v187 = vld [vmem:[#allocation2 + $0x9] sm:$0xff]
    %v188 = vld [vmem:[#allocation2 + $0x11] sm:$0xff]
    %v189 = vld [vmem:[#allocation2 + $0x19] sm:$0xff]
    %v190 = vld [vmem:[#allocation2 + $0x21] sm:$0xff]
    %v191 = vld [vmem:[#allocation2 + $0x29] sm:$0xff]
    %v192 = vld [vmem:[#allocation2 + $0x31] sm:$0xff]
    %v193 = vld [vmem:[#allocation2 + $0x39] sm:$0xff]
    %v194 = vld [vmem:[#allocation2 + $0x2] sm:$0xff]
    %v195 = vld [vmem:[#allocation2 + $0xa] sm:$0xff]
    %v196 = vld [vmem:[#allocation2 + $0x12] sm:$0xff]
    %v197 = vld [vmem:[#allocation2 + $0x1a] sm:$0xff]
    %v198 = vld [vmem:[#allocation2 + $0x22] sm:$0xff]
    %v199 = vld [vmem:[#allocation2 + $0x2a] sm:$0xff]
    %v200 = vld [vmem:[#allocation2 + $0x32] sm:$0xff]
    %v201 = vld [vmem:[#allocation2 + $0x3a] sm:$0xff]
    %v202 = vld [vmem:[#allocation2 + $0x3] sm:$0xff]
    %v203 = vld [vmem:[#allocation2 + $0xb] sm:$0xff]
    %v204 = vld [vmem:[#allocation2 + $0x13] sm:$0xff]
    %v205 = vld [vmem:[#allocation2 + $0x1b] sm:$0xff]
    %v206 = vld [vmem:[#allocation2 + $0x23] sm:$0xff]
    %v207 = vld [vmem:[#allocation2 + $0x2b] sm:$0xff]
    %v208 = vld [vmem:[#allocation2 + $0x33] sm:$0xff]
    %v209 = vld [vmem:[#allocation2 + $0x3b] sm:$0xff]
    %v210 = vld [vmem:[#allocation2 + $0x4] sm:$0xff]
    %v211 = vld [vmem:[#allocation2 + $0xc] sm:$0xff]
    %v212 = vld [vmem:[#allocation2 + $0x14] sm:$0xff]
    %v213 = vld [vmem:[#allocation2 + $0x1c] sm:$0xff]
    %v214 = vld [vmem:[#allocation2 + $0x24] sm:$0xff]
    %v215 = vld [vmem:[#allocation2 + $0x2c] sm:$0xff]
    %v216 = vld [vmem:[#allocation2 + $0x34] sm:$0xff]
    %v217 = vld [vmem:[#allocation2 + $0x3c] sm:$0xff]
    %v218 = vld [vmem:[%s2] sm:$0xff]
    %v219 = vld [vmem:[%s2 + $0x8] sm:$0xff]
    %v220 = vld [vmem:[%s2 + $0x10] sm:$0xff]
    %v221 = vld [vmem:[%s2 + $0x18] sm:$0xff]
    %v222 = vld [vmem:[%s2 + $0x20] sm:$0xff]
    %v223 = vld [vmem:[%s2 + $0x28] sm:$0xff]
    %v224 = vld [vmem:[%s2 + $0x30] sm:$0xff]
    %v225 = vld [vmem:[%s2 + $0x38] sm:$0xff]
    %v226 = vld [vmem:[%s2 + $0x40] sm:$0xff]
    %v227 = vld [vmem:[%s2 + $0x48] sm:$0xff]
    %v228 = vld [vmem:[%s2 + $0x50] sm:$0xff]
    %v229 = vld [vmem:[%s2 + $0x58] sm:$0xff]
    %v230 = vld [vmem:[%s2 + $0x60] sm:$0xff]
    %v231 = vld [vmem:[%s2 + $0x68] sm:$0xff]
    %v232 = vld [vmem:[%s2 + $0x70] sm:$0xff]
    %v233 = vld [vmem:[%s2 + $0x78] sm:$0xff]
    %v234 = vld [vmem:[%s2 + $0x80] sm:$0xff]
    %v235 = vld [vmem:[%s2 + $0x88] sm:$0xff]
    %v236 = vld [vmem:[%s2 + $0x90] sm:$0xff]
    %v237 = vld [vmem:[%s2 + $0x98] sm:$0xff]
    %v238 = vld [vmem:[%s2 + $0xa0] sm:$0xff]
    %v239 = vld [vmem:[%s2 + $0xa8] sm:$0xff]
    %v240 = vld [vmem:[%s2 + $0xb0] sm:$0xff]
    %v241 = vld [vmem:[%s2 + $0xb8] sm:$0xff]
    %v242 = vld [vmem:[%s2 + $0xc0] sm:$0xff]
    %v243 = vld [vmem:[%s2 + $0xc8] sm:$0xff]
    %v244 = vld [vmem:[%s2 + $0xd0] sm:$0xff]
    %v245 = vld [vmem:[%s2 + $0xd8] sm:$0xff]
    %v246 = vld [vmem:[%s2 + $0xe0] sm:$0xff]
    %v247 = vld [vmem:[%s2 + $0xe8] sm:$0xff]
    %v248 = vld [vmem:[%s2 + $0xf0] sm:$0xff]
    %v249 = vld [vmem:[%s2 + $0xf8] sm:$0xff]
    %v250 = vld [vmem:[%s2 + $0x100] sm:$0xff]
    %v251 = vld [vmem:[%s2 + $0x108] sm:$0xff]
    %v252 = vld [vmem:[%s2 + $0x110] sm:$0xff]
    %v253 = vld [vmem:[%s2 + $0x118] sm:$0xff]
    %v254 = vld [vmem:[%s2 + $0x120] sm:$0xff]
    %v255 = vld [vmem:[%s2 + $0x128] sm:$0xff]
    %v256 = vld [vmem:[%s2 + $0x130] sm:$0xff]
    %v257 = vld [vmem:[%s2 + $0x138] sm:$0xff]
    %v258 = vld [vmem:[%s2 + $0x140] sm:$0xff]
    %v259 = vld [vmem:[%s2 + $0x148] sm:$0xff]
    %v260 = vld [vmem:[%s2 + $0x150] sm:$0xff]
    %v261 = vld [vmem:[%s2 + $0x158] sm:$0xff]
    %v262 = vld [vmem:[%s2 + $0x160] sm:$0xff]
    %v263 = vld [vmem:[%s2 + $0x168] sm:$0xff]
    %v264 = vld [vmem:[%s2 + $0x170] sm:$0xff]
    %v265 = vld [vmem:[%s2 + $0x178] sm:$0xff]
    %v266 = vld [vmem:[%s2 + $0x180] sm:$0xff]
    %v267 = vld [vmem:[%s2 + $0x188] sm:$0xff]
    %v268 = vld [vmem:[%s2 + $0x190] sm:$0xff]
    %v269 = vld [vmem:[%s2 + $0x198] sm:$0xff]
    %v270 = vld [vmem:[%s2 + $0x1a0] sm:$0xff]
    %v271 = vld [vmem:[%s2 + $0x1a8] sm:$0xff]
    %v272 = vld [vmem:[%s2 + $0x1b0] sm:$0xff]
    %v273 = vld [vmem:[%s2 + $0x1b8] sm:$0xff]
    %v274 = vld [vmem:[%s2 + $0x1c0] sm:$0xff]
    %v275 = vld [vmem:[%s2 + $0x1c8] sm:$0xff]
    %v276 = vld [vmem:[%s2 + $0x1d0] sm:$0xff]
    %v277 = vld [vmem:[%s2 + $0x1d8] sm:$0xff]
    %v278 = vld [vmem:[%s2 + $0x1e0] sm:$0xff]
    %v279 = vld [vmem:[%s2 + $0x1e8] sm:$0xff]
    %v280 = vld [vmem:[%s2 + $0x1f0] sm:$0xff]
    %v281 = vld [vmem:[%s2 + $0x1f8] sm:$0xff]
    %v282 = vld [vmem:[%s2 + $0x200] sm:$0xff]
    %v283 = vld [vmem:[%s2 + $0x208] sm:$0xff]
    %v284 = vld [vmem:[%s2 + $0x210] sm:$0xff]
    %v285 = vld [vmem:[%s2 + $0x218] sm:$0xff]
    %v286 = vld [vmem:[%s2 + $0x220] sm:$0xff]
    %v287 = vld [vmem:[%s2 + $0x228] sm:$0xff]
    %v288 = vld [vmem:[%s2 + $0x230] sm:$0xff]
    %v289 = vld [vmem:[%s2 + $0x238] sm:$0xff]
    %v290 = vld [vmem:[%s2 + $0x240] sm:$0xff]
    %v291 = vld [vmem:[%s2 + $0x248] sm:$0xff]
    %v292 = vld [vmem:[%s2 + $0x250] sm:$0xff]
    %v293 = vld [vmem:[%s2 + $0x258] sm:$0xff]
    %v294 = vld [vmem:[%s2 + $0x260] sm:$0xff]
    %v295 = vld [vmem:[%s2 + $0x268] sm:$0xff]
    %v296 = vld [vmem:[%s2 + $0x270] sm:$0xff]
    %v297 = vld [vmem:[%s2 + $0x278] sm:$0xff]
    %v298 = vld [vmem:[%s3] sm:$0x1]
    %v300 = vlaneseq
    %v301 = vshrl.u32 %v300, 7
    %v302 = vsub.s32 0, %v301
    %v303 = vrot.slane %v298, %v302
    %305 = vmatprep.subr.mxu0 0.0
    %306 = vmatpush1.msra.mxu0 %v218
    %307 = vmatprep.subr.mxu0 0.0
    %308 = vmatpush1.msra.mxu0 %v219
    %309 = vmatprep.subr.mxu0 0.0
    %310 = vmatpush1.msra.mxu0 %v220
    %311 = vmatprep.subr.mxu0 0.0
    %312 = vmatpush1.msra.mxu0 %v221
    %313 = vmatprep.subr.mxu0 0.0
    %314 = vmatpush1.msra.mxu0 %v222
    %315 = vmatprep.subr.mxu0 0.0
    %316 = vmatpush1.msra.mxu0 %v223
    %317 = vmatprep.subr.mxu0 0.0
    %318 = vmatpush1.msra.mxu0 %v224
    %319 = vmatprep.subr.mxu0 0.0
    %320 = vmatpush1.msra.mxu0 %v225
    %321 = vmatprep.subr.mxu0 0.0
    %322 = vmatpush1.msra.mxu0 %v226
    %323 = vmatprep.subr.mxu0 0.0
    %324 = vmatpush1.msra.mxu0 %v227
    %325 = vmatprep.subr.mxu0 0.0
    %326 = vmatpush1.msra.mxu0 %v228
    %327 = vmatprep.subr.mxu0 0.0
    %328 = vmatpush1.msra.mxu0 %v229
    %329 = vmatprep.subr.mxu0 0.0
    %330 = vmatpush1.msra.mxu0 %v230
    %331 = vmatprep.subr.mxu0 0.0
    %332 = vmatpush1.msra.mxu0 %v231
    %333 = vmatprep.subr.mxu0 0.0
    %334 = vmatpush1.msra.mxu0 %v232
    %335 = vmatprep.subr.mxu0 0.0
    %336 = vmatpush1.msra.mxu0 %v233
    %337 = vmatprep.subr.mxu0 0.0
    %338 = vmatpush1.msra.mxu0 %v234
    %339 = vmatprep.subr.mxu0 0.0
    %340 = vmatpush1.msra.mxu0 %v235
    %341 = vmatprep.subr.mxu0 0.0
    %342 = vmatpush1.msra.mxu0 %v236
    %343 = vmatprep.subr.mxu0 0.0
    %344 = vmatpush1.msra.mxu0 %v237
    %345 = vmatprep.subr.mxu0 0.0
    %346 = vmatpush1.msra.mxu0 %v238
    %347 = vmatprep.subr.mxu0 0.0
    %348 = vmatpush1.msra.mxu0 %v239
    %349 = vmatprep.subr.mxu0 0.0
    %350 = vmatpush1.msra.mxu0 %v240
    %351 = vmatprep.subr.mxu0 0.0
    %352 = vmatpush1.msra.mxu0 %v241
    %353 = vmatprep.subr.mxu0 0.0
    %354 = vmatpush1.msra.mxu0 %v242
    %355 = vmatprep.subr.mxu0 0.0
    %356 = vmatpush1.msra.mxu0 %v243
    %357 = vmatprep.subr.mxu0 0.0
    %358 = vmatpush1.msra.mxu0 %v244
    %359 = vmatprep.subr.mxu0 0.0
    %360 = vmatpush1.msra.mxu0 %v245
    %361 = vmatprep.subr.mxu0 0.0
    %362 = vmatpush1.msra.mxu0 %v246
    %363 = vmatprep.subr.mxu0 0.0
    %364 = vmatpush1.msra.mxu0 %v247
    %365 = vmatprep.subr.mxu0 0.0
    %366 = vmatpush1.msra.mxu0 %v248
    %367 = vmatprep.subr.mxu0 0.0
    %368 = vmatpush1.msra.mxu0 %v249
    %369 = vmatprep.mubr.f32.mxu0 %v186
    %370 = vmatmul.mubr.f32.gmra.mrb[0].mxu0 %v178
    %v371 = vpop.f32.mrb[0].mxu0
    %v372 = vadd.f32 %v303, %v371
    %v373 = vpop.f32.mrb[0].mxu0
    %374 = vmatprep.mubr.f32.mxu0 %v187
    %375 = vmatmul.mubr.f32.gmra.mrb[0].mxu0 %v179
    %v376 = vpop.f32.mrb[0].mxu0
    %v377 = vadd.f32 %v303, %v376
    %v378 = vpop.f32.mrb[0].mxu0
    %379 = vmatprep.mubr.f32.mxu0 %v188
    %380 = vmatmul.mubr.f32.gmra.mrb[0].mxu0 %v180
    %v381 = vpop.f32.mrb[0].mxu0
    %v382 = vadd.f32 %v303, %v381
    %v383 = vpop.f32.mrb[0].mxu0
    %384 = vmatprep.mubr.f32.mxu0 %v189
    %385 = vmatmul.mubr.f32.gmra.mrb[0].mxu0 %v181
    %v386 = vpop.f32.mrb[0].mxu0
    %v387 = vadd.f32 %v303, %v386
    %v388 = vpop.f32.mrb[0].mxu0
    %389 = vmatprep.mubr.f32.mxu0 %v190
    %390 = vmatmul.mubr.f32.gmra.mrb[0].mxu0 %v182
    %v391 = vpop.f32.mrb[0].mxu0
    %v392 = vadd.f32 %v303, %v391
    %v393 = vpop.f32.mrb[0].mxu0
    %394 = vmatprep.mubr.f32.mxu0 %v191
    %395 = vmatmul.mubr.f32.gmra.mrb[0].mxu0 %v183
    %v396 = vpop.f32.mrb[0].mxu0
    %v397 = vadd.f32 %v303, %v396
    %v398 = vpop.f32.mrb[0].mxu0
    %399 = vmatprep.mubr.f32.mxu0 %v192
    %400 = vmatmul.mubr.f32.gmra.mrb[0].mxu0 %v184
    %v401 = vpop.f32.mrb[0].mxu0
    %v402 = vadd.f32 %v303, %v401
    %v403 = vpop.f32.mrb[0].mxu0
    %404 = vmatprep.mubr.f32.mxu0 %v193
    %405 = vmatmul.mubr.f32.gmra.mrb[0].mxu0 %v185
    %v406 = vpop.f32.mrb[0].mxu0
    %v407 = vadd.f32 %v303, %v406
    %v408 = vpop.f32.mrb[0].mxu0
    %409 = vdwg.mxu0
    %410 = vmatprep.subr.mxu0 0.0
    %411 = vmatpush1.msra.mxu0 %v250
    %412 = vmatprep.subr.mxu0 0.0
    %413 = vmatpush1.msra.mxu0 %v251
    %414 = vmatprep.subr.mxu0 0.0
    %415 = vmatpush1.msra.mxu0 %v252
    %416 = vmatprep.subr.mxu0 0.0
    %417 = vmatpush1.msra.mxu0 %v253
    %418 = vmatprep.subr.mxu0 0.0
    %419 = vmatpush1.msra.mxu0 %v254
    %420 = vmatprep.subr.mxu0 0.0
    %421 = vmatpush1.msra.mxu0 %v255
    %422 = vmatprep.subr.mxu0 0.0
    %423 = vmatpush1.msra.mxu0 %v256
    %424 = vmatprep.subr.mxu0 0.0
    %425 = vmatpush1.msra.mxu0 %v257
    %426 = vmatprep.subr.mxu0 0.0
    %427 = vmatpush1.msra.mxu0 %v258
    %428 = vmatprep.subr.mxu0 0.0
    %429 = vmatpush1.msra.mxu0 %v259
    %430 = vmatprep.subr.mxu0 0.0
    %431 = vmatpush1.msra.mxu0 %v260
    %432 = vmatprep.subr.mxu0 0.0
    %433 = vmatpush1.msra.mxu0 %v261
    %434 = vmatprep.subr.mxu0 0.0
    %435 = vmatpush1.msra.mxu0 %v262
    %436 = vmatprep.subr.mxu0 0.0
    %437 = vmatpush1.msra.mxu0 %v263
    %438 = vmatprep.subr.mxu0 0.0
    %439 = vmatpush1.msra.mxu0 %v264
    %440 = vmatprep.subr.mxu0 0.0
    %441 = vmatpush1.msra.mxu0 %v265
    %442 = vmatprep.subr.mxu0 0.0
    %443 = vmatpush1.msra.mxu0 %v266
    %444 = vmatprep.subr.mxu0 0.0
    %445 = vmatpush1.msra.mxu0 %v267
    %446 = vmatprep.subr.mxu0 0.0
    %447 = vmatpush1.msra.mxu0 %v268
    %448 = vmatprep.subr.mxu0 0.0
    %449 = vmatpush1.msra.mxu0 %v269
    %450 = vmatprep.subr.mxu0 0.0
    %451 = vmatpush1.msra.mxu0 %v270
    %452 = vmatprep.subr.mxu0 0.0
    %453 = vmatpush1.msra.mxu0 %v271
    %454 = vmatprep.subr.mxu0 0.0
    %455 = vmatpush1.msra.mxu0 %v272
    %456 = vmatprep.subr.mxu0 0.0
    %457 = vmatpush1.msra.mxu0 %v273
    %458 = vmatprep.subr.mxu0 0.0
    %459 = vmatpush1.msra.mxu0 %v274
    %460 = vmatprep.subr.mxu0 0.0
    %461 = vmatpush1.msra.mxu0 %v275
    %462 = vmatprep.subr.mxu0 0.0
    %463 = vmatpush1.msra.mxu0 %v276
    %464 = vmatprep.subr.mxu0 0.0
    %465 = vmatpush1.msra.mxu0 %v277
    %466 = vmatprep.subr.mxu0 0.0
    %467 = vmatpush1.msra.mxu0 %v278
    %468 = vmatprep.subr.mxu0 0.0
    %469 = vmatpush1.msra.mxu0 %v279
    %470 = vmatprep.subr.mxu0 0.0
    %471 = vmatpush1.msra.mxu0 %v280
    %472 = vmatprep.subr.mxu0 0.0
    %473 = vmatpush1.msra.mxu0 %v281
    %474 = vmatprep.mubr.f32.mxu0 %v202
    %475 = vmatmul.mubr.f32.gmra.mrb[0].mxu0 %v194
    %v476 = vpop.f32.mrb[0].mxu0
    %v477 = vadd.f32 %v372, %v476
    %v478 = vpop.f32.mrb[0].mxu0
    %479 = vmatprep.mubr.f32.mxu0 %v203
    %480 = vmatmul.mubr.f32.gmra.mrb[0].mxu0 %v195
    %v481 = vpop.f32.mrb[0].mxu0
    %v482 = vadd.f32 %v377, %v481
    %v483 = vpop.f32.mrb[0].mxu0
    %484 = vmatprep.mubr.f32.mxu0 %v204
    %485 = vmatmul.mubr.f32.gmra.mrb[0].mxu0 %v196
    %v486 = vpop.f32.mrb[0].mxu0
    %v487 = vadd.f32 %v382, %v486
    %v488 = vpop.f32.mrb[0].mxu0
    %489 = vmatprep.mubr.f32.mxu0 %v205
    %490 = vmatmul.mubr.f32.gmra.mrb[0].mxu0 %v197
    %v491 = vpop.f32.mrb[0].mxu0
    %v492 = vadd.f32 %v387, %v491
    %v493 = vpop.f32.mrb[0].mxu0
    %494 = vmatprep.mubr.f32.mxu0 %v206
    %495 = vmatmul.mubr.f32.gmra.mrb[0].mxu0 %v198
    %v496 = vpop.f32.mrb[0].mxu0
    %v497 = vadd.f32 %v392, %v496
    %v498 = vpop.f32.mrb[0].mxu0
    %499 = vmatprep.mubr.f32.mxu0 %v207
    %500 = vmatmul.mubr.f32.gmra.mrb[0].mxu0 %v199
    %v501 = vpop.f32.mrb[0].mxu0
    %v502 = vadd.f32 %v397, %v501
    %v503 = vpop.f32.mrb[0].mxu0
    %504 = vmatprep.mubr.f32.mxu0 %v208
    %505 = vmatmul.mubr.f32.gmra.mrb[0].mxu0 %v200
    %v506 = vpop.f32.mrb[0].mxu0
    %v507 = vadd.f32 %v402, %v506
    %v508 = vpop.f32.mrb[0].mxu0
    %509 = vmatprep.mubr.f32.mxu0 %v209
    %510 = vmatmul.mubr.f32.gmra.mrb[0].mxu0 %v201
    %v511 = vpop.f32.mrb[0].mxu0
    %v512 = vadd.f32 %v407, %v511
    %v513 = vpop.f32.mrb[0].mxu0
    %514 = vdwg.mxu0
    %515 = vmatprep.subr.mxu0 0.0
    %516 = vmatpush1.msra.mxu0 %v282
    %517 = vmatprep.subr.mxu0 0.0
    %518 = vmatpush1.msra.mxu0 %v283
    %519 = vmatprep.subr.mxu0 0.0
    %520 = vmatpush1.msra.mxu0 %v284
    %521 = vmatprep.subr.mxu0 0.0
    %522 = vmatpush1.msra.mxu0 %v285
    %523 = vmatprep.subr.mxu0 0.0
    %524 = vmatpush1.msra.mxu0 %v286
    %525 = vmatprep.subr.mxu0 0.0
    %526 = vmatpush1.msra.mxu0 %v287
    %527 = vmatprep.subr.mxu0 0.0
    %528 = vmatpush1.msra.mxu0 %v288
    %529 = vmatprep.subr.mxu0 0.0
    %530 = vmatpush1.msra.mxu0 %v289
    %531 = vmatprep.subr.mxu0 0.0
    %532 = vmatpush1.msra.mxu0 %v290
    %533 = vmatprep.subr.mxu0 0.0
    %534 = vmatpush1.msra.mxu0 %v291
    %535 = vmatprep.subr.mxu0 0.0
    %536 = vmatpush1.msra.mxu0 %v292
    %537 = vmatprep.subr.mxu0 0.0
    %538 = vmatpush1.msra.mxu0 %v293
    %539 = vmatprep.subr.mxu0 0.0
    %540 = vmatpush1.msra.mxu0 %v294
    %541 = vmatprep.subr.mxu0 0.0
    %542 = vmatpush1.msra.mxu0 %v295
    %543 = vmatprep.subr.mxu0 0.0
    %544 = vmatpush1.msra.mxu0 %v296
    %545 = vmatprep.subr.mxu0 0.0
    %546 = vmatpush1.msra.mxu0 %v297
    %547 = vmatprep.subr.mxu0 0.0
    %548 = vmatpush1.msra.mxu0 0.0
    %549 = vmatprep.subr.mxu0 0.0
    %550 = vmatpush1.msra.mxu0 0.0
    %551 = vmatprep.subr.mxu0 0.0
    %552 = vmatpush1.msra.mxu0 0.0
    %553 = vmatprep.subr.mxu0 0.0
    %554 = vmatpush1.msra.mxu0 0.0
    %555 = vmatprep.subr.mxu0 0.0
    %556 = vmatpush1.msra.mxu0 0.0
    %557 = vmatprep.subr.mxu0 0.0
    %558 = vmatpush1.msra.mxu0 0.0
    %559 = vmatprep.subr.mxu0 0.0
    %560 = vmatpush1.msra.mxu0 0.0
    %561 = vmatprep.subr.mxu0 0.0
    %562 = vmatpush1.msra.mxu0 0.0
    %563 = vmatprep.subr.mxu0 0.0
    %564 = vmatpush1.msra.mxu0 0.0
    %565 = vmatprep.subr.mxu0 0.0
    %566 = vmatpush1.msra.mxu0 0.0
    %567 = vmatprep.subr.mxu0 0.0
    %568 = vmatpush1.msra.mxu0 0.0
    %569 = vmatprep.subr.mxu0 0.0
    %570 = vmatpush1.msra.mxu0 0.0
    %571 = vmatprep.subr.mxu0 0.0
    %572 = vmatpush1.msra.mxu0 0.0
    %573 = vmatprep.subr.mxu0 0.0
    %574 = vmatpush1.msra.mxu0 0.0
    %575 = vmatprep.subr.mxu0 0.0
    %576 = vmatpush1.msra.mxu0 0.0
    %577 = vmatprep.subr.mxu0 0.0
    %578 = vmatpush1.msra.mxu0 0.0
    %579 = vmatprep.mubr.f32.mxu0 0.0
    %580 = vmatmul.mubr.f32.gmra.mrb[0].mxu0 %v210
    %v581 = vpop.f32.mrb[0].mxu0
    %v582 = vadd.f32 %v477, %v581
    %v583 = vpop.f32.mrb[0].mxu0
    %584 = vmatprep.mubr.f32.mxu0 0.0
    %585 = vmatmul.mubr.f32.gmra.mrb[0].mxu0 %v211
    %v586 = vpop.f32.mrb[0].mxu0
    %v587 = vadd.f32 %v482, %v586
    %v588 = vpop.f32.mrb[0].mxu0
    %589 = vmatprep.mubr.f32.mxu0 0.0
    %590 = vmatmul.mubr.f32.gmra.mrb[0].mxu0 %v212
    %v591 = vpop.f32.mrb[0].mxu0
    %v592 = vadd.f32 %v487, %v591
    %v593 = vpop.f32.mrb[0].mxu0
    %594 = vmatprep.mubr.f32.mxu0 0.0
    %595 = vmatmul.mubr.f32.gmra.mrb[0].mxu0 %v213
    %v596 = vpop.f32.mrb[0].mxu0
    %v597 = vadd.f32 %v492, %v596
    %v598 = vpop.f32.mrb[0].mxu0
    %599 = vmatprep.mubr.f32.mxu0 0.0
    %600 = vmatmul.mubr.f32.gmra.mrb[0].mxu0 %v214
    %v601 = vpop.f32.mrb[0].mxu0
    %v602 = vadd.f32 %v497, %v601
    %v603 = vpop.f32.mrb[0].mxu0
    %604 = vmatprep.mubr.f32.mxu0 0.0
    %605 = vmatmul.mubr.f32.gmra.mrb[0].mxu0 %v215
    %v606 = vpop.f32.mrb[0].mxu0
    %v607 = vadd.f32 %v502, %v606
    %v608 = vpop.f32.mrb[0].mxu0
    %609 = vmatprep.mubr.f32.mxu0 0.0
    %610 = vmatmul.mubr.f32.gmra.mrb[0].mxu0 %v216
    %v611 = vpop.f32.mrb[0].mxu0
    %v612 = vadd.f32 %v507, %v611
    %v613 = vpop.f32.mrb[0].mxu0
    %614 = vmatprep.mubr.f32.mxu0 0.0
    %615 = vmatmul.mubr.f32.gmra.mrb[0].mxu0 %v217
    %v616 = vpop.f32.mrb[0].mxu0
    %v617 = vadd.f32 %v512, %v616
    %v618 = vpop.f32.mrb[0].mxu0
    %619 = vdwg.mxu0
    %v620 = vtanh.pop %v582
    %v621 = vtanh.pop %v587
    %v622 = vtanh.pop %v592
    %v623 = vtanh.pop %v597
    %v624 = vtanh.pop %v602
    %v625 = vtanh.pop %v607
    %v626 = vtanh.pop %v612
    %v627 = vtanh.pop %v617
    %v628 = vadd.f32 %v162, %v620
    %v629 = vadd.f32 %v163, %v621
    %v630 = vadd.f32 %v164, %v622
    %v631 = vadd.f32 %v165, %v623
    %v632 = vadd.f32 %v166, %v624
    %v633 = vadd.f32 %v167, %v625
    %v634 = vadd.f32 %v168, %v626
    %v635 = vadd.f32 %v169, %v627
    %v636 = vmul.f32 %v628, %v125
    %v637 = vmul.f32 %v629, %v130
    %v638 = vmul.f32 %v630, %v135
    %v639 = vmul.f32 %v631, %v140
    %v640 = vmul.f32 %v632, %v145
    %v641 = vmul.f32 %v633, %v150
    %v642 = vmul.f32 %v634, %v155
    %v643 = vmul.f32 %v635, %v160
    %644 = vst [vmem:[#allocation2 + $0x2] sm:$0xff] %v636
    %645 = vst [vmem:[#allocation2 + $0xa] sm:$0xff] %v637
    %646 = vst [vmem:[#allocation2 + $0x12] sm:$0xff] %v638
    %647 = vst [vmem:[#allocation2 + $0x1a] sm:$0xff] %v639
    %648 = vst [vmem:[#allocation2 + $0x22] sm:$0xff] %v640
    %649 = vst [vmem:[#allocation2 + $0x2a] sm:$0xff] %v641
    %650 = vst [vmem:[#allocation2 + $0x32] sm:$0xff] %v642
    %651 = vst [vmem:[#allocation2 + $0x3a] sm:$0xff] %v643
    %v652 = vld [vmem:[#allocation2] sm:$0xff]
    %v653 = vld [vmem:[#allocation2 + $0x8] sm:$0xff]
    %v654 = vld [vmem:[#allocation2 + $0x10] sm:$0xff]
    %v655 = vld [vmem:[#allocation2 + $0x18] sm:$0xff]
    %v656 = vld [vmem:[#allocation2 + $0x20] sm:$0xff]
    %v657 = vld [vmem:[#allocation2 + $0x28] sm:$0xff]
    %v658 = vld [vmem:[#allocation2 + $0x30] sm:$0xff]
    %v659 = vld [vmem:[#allocation2 + $0x38] sm:$0xff]
    %v660 = vld [vmem:[#allocation2 + $0x1] sm:$0xff]
    %v661 = vld [vmem:[#allocation2 + $0x9] sm:$0xff]
    %v662 = vld [vmem:[#allocation2 + $0x11] sm:$0xff]
    %v663 = vld [vmem:[#allocation2 + $0x19] sm:$0xff]
    %v664 = vld [vmem:[#allocation2 + $0x21] sm:$0xff]
    %v665 = vld [vmem:[#allocation2 + $0x29] sm:$0xff]
    %v666 = vld [vmem:[#allocation2 + $0x31] sm:$0xff]
    %v667 = vld [vmem:[#allocation2 + $0x39] sm:$0xff]
    %v668 = vld [vmem:[#allocation2 + $0x2] sm:$0xff]
    %v669 = vld [vmem:[#allocation2 + $0xa] sm:$0xff]
    %v670 = vld [vmem:[#allocation2 + $0x12] sm:$0xff]
    %v671 = vld [vmem:[#allocation2 + $0x1a] sm:$0xff]
    %v672 = vld [vmem:[#allocation2 + $0x22] sm:$0xff]
    %v673 = vld [vmem:[#allocation2 + $0x2a] sm:$0xff]
    %v674 = vld [vmem:[#allocation2 + $0x32] sm:$0xff]
    %v675 = vld [vmem:[#allocation2 + $0x3a] sm:$0xff]
    %v676 = vld [vmem:[#allocation2 + $0x3] sm:$0xff]
    %v677 = vld [vmem:[#allocation2 + $0xb] sm:$0xff]
    %v678 = vld [vmem:[#allocation2 + $0x13] sm:$0xff]
    %v679 = vld [vmem:[#allocation2 + $0x1b] sm:$0xff]
    %v680 = vld [vmem:[#allocation2 + $0x23] sm:$0xff]
    %v681 = vld [vmem:[#allocation2 + $0x2b] sm:$0xff]
    %v682 = vld [vmem:[#allocation2 + $0x33] sm:$0xff]
    %v683 = vld [vmem:[#allocation2 + $0x3b] sm:$0xff]
    %v684 = vld [vmem:[#allocation2 + $0x4] sm:$0xff]
    %v685 = vld [vmem:[#allocation2 + $0xc] sm:$0xff]
    %v686 = vld [vmem:[#allocation2 + $0x14] sm:$0xff]
    %v687 = vld [vmem:[#allocation2 + $0x1c] sm:$0xff]
    %v688 = vld [vmem:[#allocation2 + $0x24] sm:$0xff]
    %v689 = vld [vmem:[#allocation2 + $0x2c] sm:$0xff]
    %v690 = vld [vmem:[#allocation2 + $0x34] sm:$0xff]
    %v691 = vld [vmem:[#allocation2 + $0x3c] sm:$0xff]
    %v692 = vld [vmem:[%s4] sm:$0xff]
    %v693 = vld [vmem:[%s4 + $0x8] sm:$0xff]
    %v694 = vld [vmem:[%s4 + $0x10] sm:$0xff]
    %v695 = vld [vmem:[%s4 + $0x18] sm:$0xff]
    %v696 = vld [vmem:[%s4 + $0x20] sm:$0xff]
    %v697 = vld [vmem:[%s4 + $0x28] sm:$0xff]
    %v698 = vld [vmem:[%s4 + $0x30] sm:$0xff]
    %v699 = vld [vmem:[%s4 + $0x38] sm:$0xff]
    %v700 = vld [vmem:[%s4 + $0x40] sm:$0xff]
    %v701 = vld [vmem:[%s4 + $0x48] sm:$0xff]
    %v702 = vld [vmem:[%s4 + $0x50] sm:$0xff]
    %v703 = vld [vmem:[%s4 + $0x58] sm:$0xff]
    %v704 = vld [vmem:[%s4 + $0x60] sm:$0xff]
    %v705 = vld [vmem:[%s4 + $0x68] sm:$0xff]
    %v706 = vld [vmem:[%s4 + $0x70] sm:$0xff]
    %v707 = vld [vmem:[%s4 + $0x78] sm:$0xff]
    %v708 = vld [vmem:[%s4 + $0x80] sm:$0xff]
    %v709 = vld [vmem:[%s4 + $0x88] sm:$0xff]
    %v710 = vld [vmem:[%s4 + $0x90] sm:$0xff]
    %v711 = vld [vmem:[%s4 + $0x98] sm:$0xff]
    %v712 = vld [vmem:[%s4 + $0xa0] sm:$0xff]
    %v713 = vld [vmem:[%s4 + $0xa8] sm:$0xff]
    %v714 = vld [vmem:[%s4 + $0xb0] sm:$0xff]
    %v715 = vld [vmem:[%s4 + $0xb8] sm:$0xff]
    %v716 = vld [vmem:[%s4 + $0xc0] sm:$0xff]
    %v717 = vld [vmem:[%s4 + $0xc8] sm:$0xff]
    %v718 = vld [vmem:[%s4 + $0xd0] sm:$0xff]
    %v719 = vld [vmem:[%s4 + $0xd8] sm:$0xff]
    %v720 = vld [vmem:[%s4 + $0xe0] sm:$0xff]
    %v721 = vld [vmem:[%s4 + $0xe8] sm:$0xff]
    %v722 = vld [vmem:[%s4 + $0xf0] sm:$0xff]
    %v723 = vld [vmem:[%s4 + $0xf8] sm:$0xff]
    %v724 = vld [vmem:[%s4 + $0x100] sm:$0xff]
    %v725 = vld [vmem:[%s4 + $0x108] sm:$0xff]
    %v726 = vld [vmem:[%s4 + $0x110] sm:$0xff]
    %v727 = vld [vmem:[%s4 + $0x118] sm:$0xff]
    %v728 = vld [vmem:[%s4 + $0x120] sm:$0xff]
    %v729 = vld [vmem:[%s4 + $0x128] sm:$0xff]
    %v730 = vld [vmem:[%s4 + $0x130] sm:$0xff]
    %v731 = vld [vmem:[%s4 + $0x138] sm:$0xff]
    %v732 = vld [vmem:[%s4 + $0x140] sm:$0xff]
    %v733 = vld [vmem:[%s4 + $0x148] sm:$0xff]
    %v734 = vld [vmem:[%s4 + $0x150] sm:$0xff]
    %v735 = vld [vmem:[%s4 + $0x158] sm:$0xff]
    %v736 = vld [vmem:[%s4 + $0x160] sm:$0xff]
    %v737 = vld [vmem:[%s4 + $0x168] sm:$0xff]
    %v738 = vld [vmem:[%s4 + $0x170] sm:$0xff]
    %v739 = vld [vmem:[%s4 + $0x178] sm:$0xff]
    %v740 = vld [vmem:[%s4 + $0x180] sm:$0xff]
    %v741 = vld [vmem:[%s4 + $0x188] sm:$0xff]
    %v742 = vld [vmem:[%s4 + $0x190] sm:$0xff]
    %v743 = vld [vmem:[%s4 + $0x198] sm:$0xff]
    %v744 = vld [vmem:[%s4 + $0x1a0] sm:$0xff]
    %v745 = vld [vmem:[%s4 + $0x1a8] sm:$0xff]
    %v746 = vld [vmem:[%s4 + $0x1b0] sm:$0xff]
    %v747 = vld [vmem:[%s4 + $0x1b8] sm:$0xff]
    %v748 = vld [vmem:[%s4 + $0x1c0] sm:$0xff]
    %v749 = vld [vmem:[%s4 + $0x1c8] sm:$0xff]
    %v750 = vld [vmem:[%s4 + $0x1d0] sm:$0xff]
    %v751 = vld [vmem:[%s4 + $0x1d8] sm:$0xff]
    %v752 = vld [vmem:[%s4 + $0x1e0] sm:$0xff]
    %v753 = vld [vmem:[%s4 + $0x1e8] sm:$0xff]
    %v754 = vld [vmem:[%s4 + $0x1f0] sm:$0xff]
    %v755 = vld [vmem:[%s4 + $0x1f8] sm:$0xff]
    %v756 = vld [vmem:[%s4 + $0x200] sm:$0xff]
    %v757 = vld [vmem:[%s4 + $0x208] sm:$0xff]
    %v758 = vld [vmem:[%s4 + $0x210] sm:$0xff]
    %v759 = vld [vmem:[%s4 + $0x218] sm:$0xff]
    %v760 = vld [vmem:[%s4 + $0x220] sm:$0xff]
    %v761 = vld [vmem:[%s4 + $0x228] sm:$0xff]
    %v762 = vld [vmem:[%s4 + $0x230] sm:$0xff]
    %v763 = vld [vmem:[%s4 + $0x238] sm:$0xff]
    %v764 = vld [vmem:[%s4 + $0x240] sm:$0xff]
    %v765 = vld [vmem:[%s4 + $0x248] sm:$0xff]
    %v766 = vld [vmem:[%s4 + $0x250] sm:$0xff]
    %v767 = vld [vmem:[%s4 + $0x258] sm:$0xff]
    %v768 = vld [vmem:[%s4 + $0x260] sm:$0xff]
    %v769 = vld [vmem:[%s4 + $0x268] sm:$0xff]
    %v770 = vld [vmem:[%s4 + $0x270] sm:$0xff]
    %v771 = vld [vmem:[%s4 + $0x278] sm:$0xff]
    %v772 = vld [vmem:[%s5] sm:$0x1]
    %v774 = vlaneseq
    %v775 = vshrl.u32 %v774, 7
    %v776 = vsub.s32 0, %v775
    %v777 = vrot.slane %v772, %v776
    %779 = vmatprep.subr.mxu0 0.0
    %780 = vmatpush1.msra.mxu0 %v692
    %781 = vmatprep.subr.mxu0 0.0
    %782 = vmatpush1.msra.mxu0 %v693
    %783 = vmatprep.subr.mxu0 0.0
    %784 = vmatpush1.msra.mxu0 %v694
    %785 = vmatprep.subr.mxu0 0.0
    %786 = vmatpush1.msra.mxu0 %v695
    %787 = vmatprep.subr.mxu0 0.0
    %788 = vmatpush1.msra.mxu0 %v696
    %789 = vmatprep.subr.mxu0 0.0
    %790 = vmatpush1.msra.mxu0 %v697
    %791 = vmatprep.subr.mxu0 0.0
    %792 = vmatpush1.msra.mxu0 %v698
    %793 = vmatprep.subr.mxu0 0.0
    %794 = vmatpush1.msra.mxu0 %v699
    %795 = vmatprep.subr.mxu0 0.0
    %796 = vmatpush1.msra.mxu0 %v700
    %797 = vmatprep.subr.mxu0 0.0
    %798 = vmatpush1.msra.mxu0 %v701
    %799 = vmatprep.subr.mxu0 0.0
    %800 = vmatpush1.msra.mxu0 %v702
    %801 = vmatprep.subr.mxu0 0.0
    %802 = vmatpush1.msra.mxu0 %v703
    %803 = vmatprep.subr.mxu0 0.0
    %804 = vmatpush1.msra.mxu0 %v704
    %805 = vmatprep.subr.mxu0 0.0
    %806 = vmatpush1.msra.mxu0 %v705
    %807 = vmatprep.subr.mxu0 0.0
    %808 = vmatpush1.msra.mxu0 %v706
    %809 = vmatprep.subr.mxu0 0.0
    %810 = vmatpush1.msra.mxu0 %v707
    %811 = vmatprep.subr.mxu0 0.0
    %812 = vmatpush1.msra.mxu0 %v708
    %813 = vmatprep.subr.mxu0 0.0
    %814 = vmatpush1.msra.mxu0 %v709
    %815 = vmatprep.subr.mxu0 0.0
    %816 = vmatpush1.msra.mxu0 %v710
    %817 = vmatprep.subr.mxu0 0.0
    %818 = vmatpush1.msra.mxu0 %v711
    %819 = vmatprep.subr.mxu0 0.0
    %820 = vmatpush1.msra.mxu0 %v712
    %821 = vmatprep.subr.mxu0 0.0
    %822 = vmatpush1.msra.mxu0 %v713
    %823 = vmatprep.subr.mxu0 0.0
    %824 = vmatpush1.msra.mxu0 %v714
    %825 = vmatprep.subr.mxu0 0.0
    %826 = vmatpush1.msra.mxu0 %v715
    %827 = vmatprep.subr.mxu0 0.0
    %828 = vmatpush1.msra.mxu0 %v716
    %829 = vmatprep.subr.mxu0 0.0
    %830 = vmatpush1.msra.mxu0 %v717
    %831 = vmatprep.subr.mxu0 0.0
    %832 = vmatpush1.msra.mxu0 %v718
    %833 = vmatprep.subr.mxu0 0.0
    %834 = vmatpush1.msra.mxu0 %v719
    %835 = vmatprep.subr.mxu0 0.0
    %836 = vmatpush1.msra.mxu0 %v720
    %837 = vmatprep.subr.mxu0 0.0
    %838 = vmatpush1.msra.mxu0 %v721
    %839 = vmatprep.subr.mxu0 0.0
    %840 = vmatpush1.msra.mxu0 %v722
    %841 = vmatprep.subr.mxu0 0.0
    %842 = vmatpush1.msra.mxu0 %v723
    %843 = vmatprep.mubr.f32.mxu0 %v660
    %844 = vmatmul.mubr.f32.gmra.mrb[0].mxu0 %v652
    %v845 = vpop.f32.mrb[0].mxu0
    %v846 = vadd.f32 %v777, %v845
    %v847 = vpop.f32.mrb[0].mxu0
    %848 = vmatprep.mubr.f32.mxu0 %v661
    %849 = vmatmul.mubr.f32.gmra.mrb[0].mxu0 %v653
    %v850 = vpop.f32.mrb[0].mxu0
    %v851 = vadd.f32 %v777, %v850
    %v852 = vpop.f32.mrb[0].mxu0
    %853 = vmatprep.mubr.f32.mxu0 %v662
    %854 = vmatmul.mubr.f32.gmra.mrb[0].mxu0 %v654
    %v855 = vpop.f32.mrb[0].mxu0
    %v856 = vadd.f32 %v777, %v855
    %v857 = vpop.f32.mrb[0].mxu0
    %858 = vmatprep.mubr.f32.mxu0 %v663
    %859 = vmatmul.mubr.f32.gmra.mrb[0].mxu0 %v655
    %v860 = vpop.f32.mrb[0].mxu0
    %v861 = vadd.f32 %v777, %v860
    %v862 = vpop.f32.mrb[0].mxu0
    %863 = vmatprep.mubr.f32.mxu0 %v664
    %864 = vmatmul.mubr.f32.gmra.mrb[0].mxu0 %v656
    %v865 = vpop.f32.mrb[0].mxu0
    %v866 = vadd.f32 %v777, %v865
    %v867 = vpop.f32.mrb[0].mxu0
    %868 = vmatprep.mubr.f32.mxu0 %v665
    %869 = vmatmul.mubr.f32.gmra.mrb[0].mxu0 %v657
    %v870 = vpop.f32.mrb[0].mxu0
    %v871 = vadd.f32 %v777, %v870
    %v872 = vpop.f32.mrb[0].mxu0
    %873 = vmatprep.mubr.f32.mxu0 %v666
    %874 = vmatmul.mubr.f32.gmra.mrb[0].mxu0 %v658
    %v875 = vpop.f32.mrb[0].mxu0
    %v876 = vadd.f32 %v777, %v875
    %v877 = vpop.f32.mrb[0].mxu0
    %878 = vmatprep.mubr.f32.mxu0 %v667
    %879 = vmatmul.mubr.f32.gmra.mrb[0].mxu0 %v659
    %v880 = vpop.f32.mrb[0].mxu0
    %v881 = vadd.f32 %v777, %v880
    %v882 = vpop.f32.mrb[0].mxu0
    %883 = vdwg.mxu0
    %884 = vmatprep.subr.mxu0 0.0
    %885 = vmatpush1.msra.mxu0 %v724
    %886 = vmatprep.subr.mxu0 0.0
    %887 = vmatpush1.msra.mxu0 %v725
    %888 = vmatprep.subr.mxu0 0.0
    %889 = vmatpush1.msra.mxu0 %v726
    %890 = vmatprep.subr.mxu0 0.0
    %891 = vmatpush1.msra.mxu0 %v727
    %892 = vmatprep.subr.mxu0 0.0
    %893 = vmatpush1.msra.mxu0 %v728
    %894 = vmatprep.subr.mxu0 0.0
    %895 = vmatpush1.msra.mxu0 %v729
    %896 = vmatprep.subr.mxu0 0.0
    %897 = vmatpush1.msra.mxu0 %v730
    %898 = vmatprep.subr.mxu0 0.0
    %899 = vmatpush1.msra.mxu0 %v731
    %900 = vmatprep.subr.mxu0 0.0
    %901 = vmatpush1.msra.mxu0 %v732
    %902 = vmatprep.subr.mxu0 0.0
    %903 = vmatpush1.msra.mxu0 %v733
    %904 = vmatprep.subr.mxu0 0.0
    %905 = vmatpush1.msra.mxu0 %v734
    %906 = vmatprep.subr.mxu0 0.0
    %907 = vmatpush1.msra.mxu0 %v735
    %908 = vmatprep.subr.mxu0 0.0
    %909 = vmatpush1.msra.mxu0 %v736
    %910 = vmatprep.subr.mxu0 0.0
    %911 = vmatpush1.msra.mxu0 %v737
    %912 = vmatprep.subr.mxu0 0.0
    %913 = vmatpush1.msra.mxu0 %v738
    %914 = vmatprep.subr.mxu0 0.0
    %915 = vmatpush1.msra.mxu0 %v739
    %916 = vmatprep.subr.mxu0 0.0
    %917 = vmatpush1.msra.mxu0 %v740
    %918 = vmatprep.subr.mxu0 0.0
    %919 = vmatpush1.msra.mxu0 %v741
    %920 = vmatprep.subr.mxu0 0.0
    %921 = vmatpush1.msra.mxu0 %v742
    %922 = vmatprep.subr.mxu0 0.0
    %923 = vmatpush1.msra.mxu0 %v743
    %924 = vmatprep.subr.mxu0 0.0
    %925 = vmatpush1.msra.mxu0 %v744
    %926 = vmatprep.subr.mxu0 0.0
    %927 = vmatpush1.msra.mxu0 %v745
    %928 = vmatprep.subr.mxu0 0.0
    %929 = vmatpush1.msra.mxu0 %v746
    %930 = vmatprep.subr.mxu0 0.0
    %931 = vmatpush1.msra.mxu0 %v747
    %932 = vmatprep.subr.mxu0 0.0
    %933 = vmatpush1.msra.mxu0 %v748
    %934 = vmatprep.subr.mxu0 0.0
    %935 = vmatpush1.msra.mxu0 %v749
    %936 = vmatprep.subr.mxu0 0.0
    %937 = vmatpush1.msra.mxu0 %v750
    %938 = vmatprep.subr.mxu0 0.0
    %939 = vmatpush1.msra.mxu0 %v751
    %940 = vmatprep.subr.mxu0 0.0
    %941 = vmatpush1.msra.mxu0 %v752
    %942 = vmatprep.subr.mxu0 0.0
    %943 = vmatpush1.msra.mxu0 %v753
    %944 = vmatprep.subr.mxu0 0.0
    %945 = vmatpush1.msra.mxu0 %v754
    %946 = vmatprep.subr.mxu0 0.0
    %947 = vmatpush1.msra.mxu0 %v755
    %948 = vmatprep.mubr.f32.mxu0 %v676
    %949 = vmatmul.mubr.f32.gmra.mrb[0].mxu0 %v668
    %v950 = vpop.f32.mrb[0].mxu0
    %v951 = vadd.f32 %v846, %v950
    %v952 = vpop.f32.mrb[0].mxu0
    %953 = vmatprep.mubr.f32.mxu0 %v677
    %954 = vmatmul.mubr.f32.gmra.mrb[0].mxu0 %v669
    %v955 = vpop.f32.mrb[0].mxu0
    %v956 = vadd.f32 %v851, %v955
    %v957 = vpop.f32.mrb[0].mxu0
    %958 = vmatprep.mubr.f32.mxu0 %v678
    %959 = vmatmul.mubr.f32.gmra.mrb[0].mxu0 %v670
    %v960 = vpop.f32.mrb[0].mxu0
    %v961 = vadd.f32 %v856, %v960
    %v962 = vpop.f32.mrb[0].mxu0
    %963 = vmatprep.mubr.f32.mxu0 %v679
    %964 = vmatmul.mubr.f32.gmra.mrb[0].mxu0 %v671
    %v965 = vpop.f32.mrb[0].mxu0
    %v966 = vadd.f32 %v861, %v965
    %v967 = vpop.f32.mrb[0].mxu0
    %968 = vmatprep.mubr.f32.mxu0 %v680
    %969 = vmatmul.mubr.f32.gmra.mrb[0].mxu0 %v672
    %v970 = vpop.f32.mrb[0].mxu0
    %v971 = vadd.f32 %v866, %v970
    %v972 = vpop.f32.mrb[0].mxu0
    %973 = vmatprep.mubr.f32.mxu0 %v681
    %974 = vmatmul.mubr.f32.gmra.mrb[0].mxu0 %v673
    %v975 = vpop.f32.mrb[0].mxu0
    %v976 = vadd.f32 %v871, %v975
    %v977 = vpop.f32.mrb[0].mxu0
    %978 = vmatprep.mubr.f32.mxu0 %v682
    %979 = vmatmul.mubr.f32.gmra.mrb[0].mxu0 %v674
    %v980 = vpop.f32.mrb[0].mxu0
    %v981 = vadd.f32 %v876, %v980
    %v982 = vpop.f32.mrb[0].mxu0
    %983 = vmatprep.mubr.f32.mxu0 %v683
    %984 = vmatmul.mubr.f32.gmra.mrb[0].mxu0 %v675
    %v985 = vpop.f32.mrb[0].mxu0
    %v986 = vadd.f32 %v881, %v985
    %v987 = vpop.f32.mrb[0].mxu0
    %988 = vdwg.mxu0
    %989 = vmatprep.subr.mxu0 0.0
    %990 = vmatpush1.msra.mxu0 %v756
    %991 = vmatprep.subr.mxu0 0.0
    %992 = vmatpush1.msra.mxu0 %v757
    %993 = vmatprep.subr.mxu0 0.0
    %994 = vmatpush1.msra.mxu0 %v758
    %995 = vmatprep.subr.mxu0 0.0
    %996 = vmatpush1.msra.mxu0 %v759
    %997 = vmatprep.subr.mxu0 0.0
    %998 = vmatpush1.msra.mxu0 %v760
    %999 = vmatprep.subr.mxu0 0.0
    %1000 = vmatpush1.msra.mxu0 %v761
    %1001 = vmatprep.subr.mxu0 0.0
    %1002 = vmatpush1.msra.mxu0 %v762
    %1003 = vmatprep.subr.mxu0 0.0
    %1004 = vmatpush1.msra.mxu0 %v763
    %1005 = vmatprep.subr.mxu0 0.0
    %1006 = vmatpush1.msra.mxu0 %v764
    %1007 = vmatprep.subr.mxu0 0.0
    %1008 = vmatpush1.msra.mxu0 %v765
    %1009 = vmatprep.subr.mxu0 0.0
    %1010 = vmatpush1.msra.mxu0 %v766
    %1011 = vmatprep.subr.mxu0 0.0
    %1012 = vmatpush1.msra.mxu0 %v767
    %1013 = vmatprep.subr.mxu0 0.0
    %1014 = vmatpush1.msra.mxu0 %v768
    %1015 = vmatprep.subr.mxu0 0.0
    %1016 = vmatpush1.msra.mxu0 %v769
    %1017 = vmatprep.subr.mxu0 0.0
    %1018 = vmatpush1.msra.mxu0 %v770
    %1019 = vmatprep.subr.mxu0 0.0
    %1020 = vmatpush1.msra.mxu0 %v771
    %1021 = vmatprep.subr.mxu0 0.0
    %1022 = vmatpush1.msra.mxu0 0.0
    %1023 = vmatprep.subr.mxu0 0.0
    %1024 = vmatpush1.msra.mxu0 0.0
    %1025 = vmatprep.subr.mxu0 0.0
    %1026 = vmatpush1.msra.mxu0 0.0
    %1027 = vmatprep.subr.mxu0 0.0
    %1028 = vmatpush1.msra.mxu0 0.0
    %1029 = vmatprep.subr.mxu0 0.0
    %1030 = vmatpush1.msra.mxu0 0.0
    %1031 = vmatprep.subr.mxu0 0.0
    %1032 = vmatpush1.msra.mxu0 0.0
    %1033 = vmatprep.subr.mxu0 0.0
    %1034 = vmatpush1.msra.mxu0 0.0
    %1035 = vmatprep.subr.mxu0 0.0
    %1036 = vmatpush1.msra.mxu0 0.0
    %1037 = vmatprep.subr.mxu0 0.0
    %1038 = vmatpush1.msra.mxu0 0.0
    %1039 = vmatprep.subr.mxu0 0.0
    %1040 = vmatpush1.msra.mxu0 0.0
    %1041 = vmatprep.subr.mxu0 0.0
    %1042 = vmatpush1.msra.mxu0 0.0
    %1043 = vmatprep.subr.mxu0 0.0
    %1044 = vmatpush1.msra.mxu0 0.0
    %1045 = vmatprep.subr.mxu0 0.0
    %1046 = vmatpush1.msra.mxu0 0.0
    %1047 = vmatprep.subr.mxu0 0.0
    %1048 = vmatpush1.msra.mxu0 0.0
    %1049 = vmatprep.subr.mxu0 0.0
    %1050 = vmatpush1.msra.mxu0 0.0
    %1051 = vmatprep.subr.mxu0 0.0
    %1052 = vmatpush1.msra.mxu0 0.0
    %1053 = vmatprep.mubr.f32.mxu0 0.0
    %1054 = vmatmul.mubr.f32.gmra.mrb[0].mxu0 %v684
    %v1055 = vpop.f32.mrb[0].mxu0
    %v1056 = vadd.f32 %v951, %v1055
    %v1057 = vpop.f32.mrb[0].mxu0
    %1058 = vmatprep.mubr.f32.mxu0 0.0
    %1059 = vmatmul.mubr.f32.gmra.mrb[0].mxu0 %v685
    %v1060 = vpop.f32.mrb[0].mxu0
    %v1061 = vadd.f32 %v956, %v1060
    %v1062 = vpop.f32.mrb[0].mxu0
    %1063 = vmatprep.mubr.f32.mxu0 0.0
    %1064 = vmatmul.mubr.f32.gmra.mrb[0].mxu0 %v686
    %v1065 = vpop.f32.mrb[0].mxu0
    %v1066 = vadd.f32 %v961, %v1065
    %v1067 = vpop.f32.mrb[0].mxu0
    %1068 = vmatprep.mubr.f32.mxu0 0.0
    %1069 = vmatmul.mubr.f32.gmra.mrb[0].mxu0 %v687
    %v1070 = vpop.f32.mrb[0].mxu0
    %v1071 = vadd.f32 %v966, %v1070
    %v1072 = vpop.f32.mrb[0].mxu0
    %1073 = vmatprep.mubr.f32.mxu0 0.0
    %1074 = vmatmul.mubr.f32.gmra.mrb[0].mxu0 %v688
    %v1075 = vpop.f32.mrb[0].mxu0
    %v1076 = vadd.f32 %v971, %v1075
    %v1077 = vpop.f32.mrb[0].mxu0
    %1078 = vmatprep.mubr.f32.mxu0 0.0
    %1079 = vmatmul.mubr.f32.gmra.mrb[0].mxu0 %v689
    %v1080 = vpop.f32.mrb[0].mxu0
    %v1081 = vadd.f32 %v976, %v1080
    %v1082 = vpop.f32.mrb[0].mxu0
    %1083 = vmatprep.mubr.f32.mxu0 0.0
    %1084 = vmatmul.mubr.f32.gmra.mrb[0].mxu0 %v690
    %v1085 = vpop.f32.mrb[0].mxu0
    %v1086 = vadd.f32 %v981, %v1085
    %v1087 = vpop.f32.mrb[0].mxu0
    %1088 = vmatprep.mubr.f32.mxu0 0.0
    %1089 = vmatmul.mubr.f32.gmra.mrb[0].mxu0 %v691
    %v1090 = vpop.f32.mrb[0].mxu0
    %v1091 = vadd.f32 %v986, %v1090
    %v1092 = vpop.f32.mrb[0].mxu0
    %1093 = vdwg.mxu0
    %v1094 = vtanh.pop %v1056
    %v1095 = vtanh.pop %v1061
    %v1096 = vtanh.pop %v1066
    %v1097 = vtanh.pop %v1071
    %v1098 = vtanh.pop %v1076
    %v1099 = vtanh.pop %v1081
    %v1100 = vtanh.pop %v1086
    %v1101 = vtanh.pop %v1091
    %v1102 = vadd.f32 %v636, %v1094
    %v1103 = vadd.f32 %v637, %v1095
    %v1104 = vadd.f32 %v638, %v1096
    %v1105 = vadd.f32 %v639, %v1097
    %v1106 = vadd.f32 %v640, %v1098
    %v1107 = vadd.f32 %v641, %v1099
    %v1108 = vadd.f32 %v642, %v1100
    %v1109 = vadd.f32 %v643, %v1101
    %v1110 = vmul.f32 %v1102, %v125
    %v1111 = vmul.f32 %v1103, %v130
    %v1112 = vmul.f32 %v1104, %v135
    %v1113 = vmul.f32 %v1105, %v140
    %v1114 = vmul.f32 %v1106, %v145
    %v1115 = vmul.f32 %v1107, %v150
    %v1116 = vmul.f32 %v1108, %v155
    %v1117 = vmul.f32 %v1109, %v160
    %1118 = vst [vmem:[#allocation2 + $0x2] sm:$0xff] %v1110
    %1119 = vst [vmem:[#allocation2 + $0xa] sm:$0xff] %v1111
    %1120 = vst [vmem:[#allocation2 + $0x12] sm:$0xff] %v1112
    %1121 = vst [vmem:[#allocation2 + $0x1a] sm:$0xff] %v1113
    %1122 = vst [vmem:[#allocation2 + $0x22] sm:$0xff] %v1114
    %1123 = vst [vmem:[#allocation2 + $0x2a] sm:$0xff] %v1115
    %1124 = vst [vmem:[#allocation2 + $0x32] sm:$0xff] %v1116
    %1125 = vst [vmem:[#allocation2 + $0x3a] sm:$0xff] %v1117
    %v1126 = vld [vmem:[#allocation2 + $0x1] sm:$0xff]
    %v1127 = vld [vmem:[#allocation2 + $0x9] sm:$0xff]
    %v1128 = vld [vmem:[#allocation2 + $0x11] sm:$0xff]
    %v1129 = vld [vmem:[#allocation2 + $0x19] sm:$0xff]
    %v1130 = vld [vmem:[#allocation2 + $0x21] sm:$0xff]
    %v1131 = vld [vmem:[#allocation2 + $0x29] sm:$0xff]
    %v1132 = vld [vmem:[#allocation2 + $0x31] sm:$0xff]
    %v1133 = vld [vmem:[#allocation2 + $0x39] sm:$0xff]
    %v1134 = vld [vmem:[#allocation2 + $0x2] sm:$0xff]
    %v1135 = vld [vmem:[#allocation2 + $0xa] sm:$0xff]
    %v1136 = vld [vmem:[#allocation2 + $0x12] sm:$0xff]
    %v1137 = vld [vmem:[#allocation2 + $0x1a] sm:$0xff]
    %v1138 = vld [vmem:[#allocation2 + $0x22] sm:$0xff]
    %v1139 = vld [vmem:[#allocation2 + $0x2a] sm:$0xff]
    %v1140 = vld [vmem:[#allocation2 + $0x32] sm:$0xff]
    %v1141 = vld [vmem:[#allocation2 + $0x3a] sm:$0xff]
    %v1142 = vld [vmem:[#allocation2 + $0x3] sm:$0xff]
    %v1143 = vld [vmem:[#allocation2 + $0xb] sm:$0xff]
    %v1144 = vld [vmem:[#allocation2 + $0x13] sm:$0xff]
    %v1145 = vld [vmem:[#allocation2 + $0x1b] sm:$0xff]
    %v1146 = vld [vmem:[#allocation2 + $0x23] sm:$0xff]
    %v1147 = vld [vmem:[#allocation2 + $0x2b] sm:$0xff]
    %v1148 = vld [vmem:[#allocation2 + $0x33] sm:$0xff]
    %v1149 = vld [vmem:[#allocation2 + $0x3b] sm:$0xff]
    %v1150 = vld [vmem:[#allocation4] sm:$0xff]
    %v1151 = vld [vmem:[#allocation4 + $0x8] sm:$0xff]
    %v1152 = vld [vmem:[#allocation4 + $0x10] sm:$0xff]
    %v1153 = vld [vmem:[#allocation4 + $0x18] sm:$0xff]
    %v1154 = vld [vmem:[#allocation4 + $0x20] sm:$0xff]
    %v1155 = vld [vmem:[#allocation4 + $0x28] sm:$0xff]
    %v1156 = vld [vmem:[#allocation4 + $0x30] sm:$0xff]
    %v1157 = vld [vmem:[#allocation4 + $0x38] sm:$0xff]
    %v1158 = vld [vmem:[#allocation4 + $0x40] sm:$0xff]
    %v1159 = vld [vmem:[#allocation4 + $0x48] sm:$0xff]
    %v1160 = vld [vmem:[#allocation4 + $0x50] sm:$0xff]
    %v1161 = vld [vmem:[#allocation4 + $0x58] sm:$0xff]
    %v1162 = vld [vmem:[#allocation4 + $0x60] sm:$0xff]
    %v1163 = vld [vmem:[#allocation4 + $0x68] sm:$0xff]
    %v1164 = vld [vmem:[#allocation4 + $0x70] sm:$0xff]
    %v1165 = vld [vmem:[#allocation4 + $0x78] sm:$0xff]
    %v1166 = vld [vmem:[#allocation4 + $0x80] sm:$0xff]
    %v1167 = vld [vmem:[#allocation4 + $0x88] sm:$0xff]
    %v1168 = vld [vmem:[#allocation4 + $0x90] sm:$0xff]
    %v1169 = vld [vmem:[#allocation4 + $0x98] sm:$0xff]
    %v1170 = vld [vmem:[#allocation4 + $0xa0] sm:$0xff]
    %v1171 = vld [vmem:[#allocation4 + $0xa8] sm:$0xff]
    %v1172 = vld [vmem:[#allocation4 + $0xb0] sm:$0xff]
    %v1173 = vld [vmem:[#allocation4 + $0xb8] sm:$0xff]
    %v1174 = vld [vmem:[#allocation4 + $0xc0] sm:$0xff]
    %v1175 = vld [vmem:[#allocation4 + $0xc8] sm:$0xff]
    %v1176 = vld [vmem:[#allocation4 + $0xd0] sm:$0xff]
    %v1177 = vld [vmem:[#allocation4 + $0xd8] sm:$0xff]
    %v1178 = vld [vmem:[#allocation4 + $0xe0] sm:$0xff]
    %v1179 = vld [vmem:[#allocation4 + $0xe8] sm:$0xff]
    %v1180 = vld [vmem:[#allocation4 + $0xf0] sm:$0xff]
    %v1181 = vld [vmem:[#allocation4 + $0xf8] sm:$0xff]
    %v1182 = vld [vmem:[#allocation4 + $0x100] sm:$0xff]
    %v1183 = vld [vmem:[#allocation4 + $0x108] sm:$0xff]
    %v1184 = vld [vmem:[#allocation4 + $0x110] sm:$0xff]
    %v1185 = vld [vmem:[#allocation4 + $0x118] sm:$0xff]
    %v1186 = vld [vmem:[#allocation4 + $0x120] sm:$0xff]
    %v1187 = vld [vmem:[#allocation4 + $0x128] sm:$0xff]
    %v1188 = vld [vmem:[#allocation4 + $0x130] sm:$0xff]
    %v1189 = vld [vmem:[#allocation4 + $0x138] sm:$0xff]
    %v1190 = vld [vmem:[#allocation4 + $0x140] sm:$0xff]
    %v1191 = vld [vmem:[#allocation4 + $0x148] sm:$0xff]
    %v1192 = vld [vmem:[#allocation4 + $0x150] sm:$0xff]
    %v1193 = vld [vmem:[#allocation4 + $0x158] sm:$0xff]
    %v1194 = vld [vmem:[#allocation4 + $0x160] sm:$0xff]
    %v1195 = vld [vmem:[#allocation4 + $0x168] sm:$0xff]
    %v1196 = vld [vmem:[#allocation4 + $0x170] sm:$0xff]
    %v1197 = vld [vmem:[#allocation4 + $0x178] sm:$0xff]
    %v1198 = vld [vmem:[%s7] sm:$0x1]
    %v1200 = vlaneseq
    %v1201 = vshrl.u32 %v1200, 7
    %v1202 = vsub.s32 0, %v1201
    %v1203 = vrot.slane %v1198, %v1202
    %1205 = vmatprep.subr.mxu0 0.0
    %1206 = vmatpush1.msra.mxu0 %v1150
    %1207 = vmatprep.subr.mxu0 0.0
    %1208 = vmatpush1.msra.mxu0 %v1151
    %1209 = vmatprep.subr.mxu0 0.0
    %1210 = vmatpush1.msra.mxu0 %v1152
    %1211 = vmatprep.subr.mxu0 0.0
    %1212 = vmatpush1.msra.mxu0 %v1153
    %1213 = vmatprep.subr.mxu0 0.0
    %1214 = vmatpush1.msra.mxu0 %v1154
    %1215 = vmatprep.subr.mxu0 0.0
    %1216 = vmatpush1.msra.mxu0 %v1155
    %1217 = vmatprep.subr.mxu0 0.0
    %1218 = vmatpush1.msra.mxu0 %v1156
    %1219 = vmatprep.subr.mxu0 0.0
    %1220 = vmatpush1.msra.mxu0 %v1157
    %1221 = vmatprep.subr.mxu0 0.0
    %1222 = vmatpush1.msra.mxu0 %v1158
    %1223 = vmatprep.subr.mxu0 0.0
    %1224 = vmatpush1.msra.mxu0 %v1159
    %1225 = vmatprep.subr.mxu0 0.0
    %1226 = vmatpush1.msra.mxu0 %v1160
    %1227 = vmatprep.subr.mxu0 0.0
    %1228 = vmatpush1.msra.mxu0 %v1161
    %1229 = vmatprep.subr.mxu0 0.0
    %1230 = vmatpush1.msra.mxu0 %v1162
    %1231 = vmatprep.subr.mxu0 0.0
    %1232 = vmatpush1.msra.mxu0 %v1163
    %1233 = vmatprep.subr.mxu0 0.0
    %1234 = vmatpush1.msra.mxu0 %v1164
    %1235 = vmatprep.subr.mxu0 0.0
    %1236 = vmatpush1.msra.mxu0 %v1165
    %1237 = vmatprep.subr.mxu0 0.0
    %1238 = vmatpush1.msra.mxu0 %v1166
    %1239 = vmatprep.subr.mxu0 0.0
    %1240 = vmatpush1.msra.mxu0 %v1167
    %1241 = vmatprep.subr.mxu0 0.0
    %1242 = vmatpush1.msra.mxu0 %v1168
    %1243 = vmatprep.subr.mxu0 0.0
    %1244 = vmatpush1.msra.mxu0 %v1169
    %1245 = vmatprep.subr.mxu0 0.0
    %1246 = vmatpush1.msra.mxu0 %v1170
    %1247 = vmatprep.subr.mxu0 0.0
    %1248 = vmatpush1.msra.mxu0 %v1171
    %1249 = vmatprep.subr.mxu0 0.0
    %1250 = vmatpush1.msra.mxu0 %v1172
    %1251 = vmatprep.subr.mxu0 0.0
    %1252 = vmatpush1.msra.mxu0 %v1173
    %1253 = vmatprep.subr.mxu0 0.0
    %1254 = vmatpush1.msra.mxu0 %v1174
    %1255 = vmatprep.subr.mxu0 0.0
    %1256 = vmatpush1.msra.mxu0 %v1175
    %1257 = vmatprep.subr.mxu0 0.0
    %1258 = vmatpush1.msra.mxu0 %v1176
    %1259 = vmatprep.subr.mxu0 0.0
    %1260 = vmatpush1.msra.mxu0 %v1177
    %1261 = vmatprep.subr.mxu0 0.0
    %1262 = vmatpush1.msra.mxu0 %v1178
    %1263 = vmatprep.subr.mxu0 0.0
    %1264 = vmatpush1.msra.mxu0 %v1179
    %1265 = vmatprep.subr.mxu0 0.0
    %1266 = vmatpush1.msra.mxu0 %v1180
    %1267 = vmatprep.subr.mxu0 0.0
    %1268 = vmatpush1.msra.mxu0 %v1181
    %1269 = vmatprep.mubr.f32.mxu0 %v1134
    %1270 = vmatmul.mubr.f32.gmra.mrb[0].mxu0 %v1126
    %v1271 = vpop.f32.mrb[0].mxu0
    %v1272 = vadd.f32 %v1203, %v1271
    %v1273 = vpop.f32.mrb[0].mxu0
    %1274 = vmatprep.mubr.f32.mxu0 %v1135
    %1275 = vmatmul.mubr.f32.gmra.mrb[0].mxu0 %v1127
    %v1276 = vpop.f32.mrb[0].mxu0
    %v1277 = vadd.f32 %v1203, %v1276
    %v1278 = vpop.f32.mrb[0].mxu0
    %1279 = vmatprep.mubr.f32.mxu0 %v1136
    %1280 = vmatmul.mubr.f32.gmra.mrb[0].mxu0 %v1128
    %v1281 = vpop.f32.mrb[0].mxu0
    %v1282 = vadd.f32 %v1203, %v1281
    %v1283 = vpop.f32.mrb[0].mxu0
    %1284 = vmatprep.mubr.f32.mxu0 %v1137
    %1285 = vmatmul.mubr.f32.gmra.mrb[0].mxu0 %v1129
    %v1286 = vpop.f32.mrb[0].mxu0
    %v1287 = vadd.f32 %v1203, %v1286
    %v1288 = vpop.f32.mrb[0].mxu0
    %1289 = vmatprep.mubr.f32.mxu0 %v1138
    %1290 = vmatmul.mubr.f32.gmra.mrb[0].mxu0 %v1130
    %v1291 = vpop.f32.mrb[0].mxu0
    %v1292 = vadd.f32 %v1203, %v1291
    %v1293 = vpop.f32.mrb[0].mxu0
    %1294 = vmatprep.mubr.f32.mxu0 %v1139
    %1295 = vmatmul.mubr.f32.gmra.mrb[0].mxu0 %v1131
    %v1296 = vpop.f32.mrb[0].mxu0
    %v1297 = vadd.f32 %v1203, %v1296
    %v1298 = vpop.f32.mrb[0].mxu0
    %1299 = vmatprep.mubr.f32.mxu0 %v1140
    %1300 = vmatmul.mubr.f32.gmra.mrb[0].mxu0 %v1132
    %v1301 = vpop.f32.mrb[0].mxu0
    %v1302 = vadd.f32 %v1203, %v1301
    %v1303 = vpop.f32.mrb[0].mxu0
    %1304 = vmatprep.mubr.f32.mxu0 %v1141
    %1305 = vmatmul.mubr.f32.gmra.mrb[0].mxu0 %v1133
    %v1306 = vpop.f32.mrb[0].mxu0
    %v1307 = vadd.f32 %v1203, %v1306
    %v1308 = vpop.f32.mrb[0].mxu0
    %1309 = vdwg.mxu0
    %1310 = vmatprep.subr.mxu0 0.0
    %1311 = vmatpush1.msra.mxu0 %v1182
    %1312 = vmatprep.subr.mxu0 0.0
    %1313 = vmatpush1.msra.mxu0 %v1183
    %1314 = vmatprep.subr.mxu0 0.0
    %1315 = vmatpush1.msra.mxu0 %v1184
    %1316 = vmatprep.subr.mxu0 0.0
    %1317 = vmatpush1.msra.mxu0 %v1185
    %1318 = vmatprep.subr.mxu0 0.0
    %1319 = vmatpush1.msra.mxu0 %v1186
    %1320 = vmatprep.subr.mxu0 0.0
    %1321 = vmatpush1.msra.mxu0 %v1187
    %1322 = vmatprep.subr.mxu0 0.0
    %1323 = vmatpush1.msra.mxu0 %v1188
    %1324 = vmatprep.subr.mxu0 0.0
    %1325 = vmatpush1.msra.mxu0 %v1189
    %1326 = vmatprep.subr.mxu0 0.0
    %1327 = vmatpush1.msra.mxu0 %v1190
    %1328 = vmatprep.subr.mxu0 0.0
    %1329 = vmatpush1.msra.mxu0 %v1191
    %1330 = vmatprep.subr.mxu0 0.0
    %1331 = vmatpush1.msra.mxu0 %v1192
    %1332 = vmatprep.subr.mxu0 0.0
    %1333 = vmatpush1.msra.mxu0 %v1193
    %1334 = vmatprep.subr.mxu0 0.0
    %1335 = vmatpush1.msra.mxu0 %v1194
    %1336 = vmatprep.subr.mxu0 0.0
    %1337 = vmatpush1.msra.mxu0 %v1195
    %1338 = vmatprep.subr.mxu0 0.0
    %1339 = vmatpush1.msra.mxu0 %v1196
    %1340 = vmatprep.subr.mxu0 0.0
    %1341 = vmatpush1.msra.mxu0 %v1197
    %1342 = vmatprep.subr.mxu0 0.0
    %1343 = vmatpush1.msra.mxu0 0.0
    %1344 = vmatprep.subr.mxu0 0.0
    %1345 = vmatpush1.msra.mxu0 0.0
    %1346 = vmatprep.subr.mxu0 0.0
    %1347 = vmatpush1.msra.mxu0 0.0
    %1348 = vmatprep.subr.mxu0 0.0
    %1349 = vmatpush1.msra.mxu0 0.0
    %1350 = vmatprep.subr.mxu0 0.0
    %1351 = vmatpush1.msra.mxu0 0.0
    %1352 = vmatprep.subr.mxu0 0.0
    %1353 = vmatpush1.msra.mxu0 0.0
    %1354 = vmatprep.subr.mxu0 0.0
    %1355 = vmatpush1.msra.mxu0 0.0
    %1356 = vmatprep.subr.mxu0 0.0
    %1357 = vmatpush1.msra.mxu0 0.0
    %1358 = vmatprep.subr.mxu0 0.0
    %1359 = vmatpush1.msra.mxu0 0.0
    %1360 = vmatprep.subr.mxu0 0.0
    %1361 = vmatpush1.msra.mxu0 0.0
    %1362 = vmatprep.subr.mxu0 0.0
    %1363 = vmatpush1.msra.mxu0 0.0
    %1364 = vmatprep.subr.mxu0 0.0
    %1365 = vmatpush1.msra.mxu0 0.0
    %1366 = vmatprep.subr.mxu0 0.0
    %1367 = vmatpush1.msra.mxu0 0.0
    %1368 = vmatprep.subr.mxu0 0.0
    %1369 = vmatpush1.msra.mxu0 0.0
    %1370 = vmatprep.subr.mxu0 0.0
    %1371 = vmatpush1.msra.mxu0 0.0
    %1372 = vmatprep.subr.mxu0 0.0
    %1373 = vmatpush1.msra.mxu0 0.0
    %1374 = vmatprep.mubr.f32.mxu0 0.0
    %1375 = vmatmul.mubr.f32.gmra.mrb[0].mxu0 %v1142
    %v1376 = vpop.f32.mrb[0].mxu0
    %v1377 = vadd.f32 %v1272, %v1376
    %v1378 = vpop.f32.mrb[0].mxu0
    %1379 = vmatprep.mubr.f32.mxu0 0.0
    %1380 = vmatmul.mubr.f32.gmra.mrb[0].mxu0 %v1143
    %v1381 = vpop.f32.mrb[0].mxu0
    %v1382 = vadd.f32 %v1277, %v1381
    %v1383 = vpop.f32.mrb[0].mxu0
    %1384 = vmatprep.mubr.f32.mxu0 0.0
    %1385 = vmatmul.mubr.f32.gmra.mrb[0].mxu0 %v1144
    %v1386 = vpop.f32.mrb[0].mxu0
    %v1387 = vadd.f32 %v1282, %v1386
    %v1388 = vpop.f32.mrb[0].mxu0
    %1389 = vmatprep.mubr.f32.mxu0 0.0
    %1390 = vmatmul.mubr.f32.gmra.mrb[0].mxu0 %v1145
    %v1391 = vpop.f32.mrb[0].mxu0
    %v1392 = vadd.f32 %v1287, %v1391
    %v1393 = vpop.f32.mrb[0].mxu0
    %1394 = vmatprep.mubr.f32.mxu0 0.0
    %1395 = vmatmul.mubr.f32.gmra.mrb[0].mxu0 %v1146
    %v1396 = vpop.f32.mrb[0].mxu0
    %v1397 = vadd.f32 %v1292, %v1396
    %v1398 = vpop.f32.mrb[0].mxu0
    %1399 = vmatprep.mubr.f32.mxu0 0.0
    %1400 = vmatmul.mubr.f32.gmra.mrb[0].mxu0 %v1147
    %v1401 = vpop.f32.mrb[0].mxu0
    %v1402 = vadd.f32 %v1297, %v1401
    %v1403 = vpop.f32.mrb[0].mxu0
    %1404 = vmatprep.mubr.f32.mxu0 0.0
    %1405 = vmatmul.mubr.f32.gmra.mrb[0].mxu0 %v1148
    %v1406 = vpop.f32.mrb[0].mxu0
    %v1407 = vadd.f32 %v1302, %v1406
    %v1408 = vpop.f32.mrb[0].mxu0
    %1409 = vmatprep.mubr.f32.mxu0 0.0
    %1410 = vmatmul.mubr.f32.gmra.mrb[0].mxu0 %v1149
    %v1411 = vpop.f32.mrb[0].mxu0
    %v1412 = vadd.f32 %v1307, %v1411
    %v1413 = vpop.f32.mrb[0].mxu0
    %1414 = vdwg.mxu0
    %v1415 = vmul.f32 %v1377, %v125
    %v1416 = vmul.f32 %v1382, %v130
    %v1417 = vmul.f32 %v1387, %v135
    %v1418 = vmul.f32 %v1392, %v140
    %v1419 = vmul.f32 %v1397, %v145
    %v1420 = vmul.f32 %v1402, %v150
    %v1421 = vmul.f32 %v1407, %v155
    %v1422 = vmul.f32 %v1412, %v160
    %v1423 = vld [vmem:[%s8] sm:$0xff]
    %v1424 = vld [vmem:[%s8 + $0x8] sm:$0xff]
    %v1425 = vld [vmem:[%s8 + $0x10] sm:$0xff]
    %v1426 = vld [vmem:[%s8 + $0x18] sm:$0xff]
    %v1427 = vld [vmem:[%s8 + $0x20] sm:$0xff]
    %v1428 = vld [vmem:[%s8 + $0x28] sm:$0xff]
    %v1429 = vld [vmem:[%s8 + $0x30] sm:$0xff]
    %v1430 = vld [vmem:[%s8 + $0x38] sm:$0xff]
    %v1431 = vld [vmem:[%s8 + $0x40] sm:$0xff]
    %v1432 = vld [vmem:[%s8 + $0x48] sm:$0xff]
    %v1433 = vld [vmem:[%s8 + $0x50] sm:$0xff]
    %v1434 = vld [vmem:[%s8 + $0x58] sm:$0xff]
    %v1435 = vld [vmem:[%s8 + $0x60] sm:$0xff]
    %v1436 = vld [vmem:[%s8 + $0x68] sm:$0xff]
    %v1437 = vld [vmem:[%s8 + $0x70] sm:$0xff]
    %v1438 = vld [vmem:[%s8 + $0x78] sm:$0xff]
    %v1439 = vld [vmem:[%s9] sm:$0x1]
    %v1441 = vlaneseq
    %v1442 = vshrl.u32 %v1441, 7
    %v1443 = vsub.s32 0, %v1442
    %v1444 = vrot.slane %v1439, %v1443
    %1446 = vmatprep.subr.mxu0 0.0
    %1447 = vmatpush1.msra.mxu0 %v1423
    %1448 = vmatprep.subr.mxu0 0.0
    %1449 = vmatpush1.msra.mxu0 %v1424
    %1450 = vmatprep.subr.mxu0 0.0
    %1451 = vmatpush1.msra.mxu0 %v1425
    %1452 = vmatprep.subr.mxu0 0.0
    %1453 = vmatpush1.msra.mxu0 %v1426
    %1454 = vmatprep.subr.mxu0 0.0
    %1455 = vmatpush1.msra.mxu0 %v1427
    %1456 = vmatprep.subr.mxu0 0.0
    %1457 = vmatpush1.msra.mxu0 %v1428
    %1458 = vmatprep.subr.mxu0 0.0
    %1459 = vmatpush1.msra.mxu0 %v1429
    %1460 = vmatprep.subr.mxu0 0.0
    %1461 = vmatpush1.msra.mxu0 %v1430
    %1462 = vmatprep.subr.mxu0 0.0
    %1463 = vmatpush1.msra.mxu0 %v1431
    %1464 = vmatprep.subr.mxu0 0.0
    %1465 = vmatpush1.msra.mxu0 %v1432
    %1466 = vmatprep.subr.mxu0 0.0
    %1467 = vmatpush1.msra.mxu0 %v1433
    %1468 = vmatprep.subr.mxu0 0.0
    %1469 = vmatpush1.msra.mxu0 %v1434
    %1470 = vmatprep.subr.mxu0 0.0
    %1471 = vmatpush1.msra.mxu0 %v1435
    %1472 = vmatprep.subr.mxu0 0.0
    %1473 = vmatpush1.msra.mxu0 %v1436
    %1474 = vmatprep.subr.mxu0 0.0
    %1475 = vmatpush1.msra.mxu0 %v1437
    %1476 = vmatprep.subr.mxu0 0.0
    %1477 = vmatpush1.msra.mxu0 %v1438
    %1478 = vmatprep.subr.mxu0 0.0
    %1479 = vmatpush1.msra.mxu0 0.0
    %1480 = vmatprep.subr.mxu0 0.0
    %1481 = vmatpush1.msra.mxu0 0.0
    %1482 = vmatprep.subr.mxu0 0.0
    %1483 = vmatpush1.msra.mxu0 0.0
    %1484 = vmatprep.subr.mxu0 0.0
    %1485 = vmatpush1.msra.mxu0 0.0
    %1486 = vmatprep.subr.mxu0 0.0
    %1487 = vmatpush1.msra.mxu0 0.0
    %1488 = vmatprep.subr.mxu0 0.0
    %1489 = vmatpush1.msra.mxu0 0.0
    %1490 = vmatprep.subr.mxu0 0.0
    %1491 = vmatpush1.msra.mxu0 0.0
    %1492 = vmatprep.subr.mxu0 0.0
    %1493 = vmatpush1.msra.mxu0 0.0
    %1494 = vmatprep.subr.mxu0 0.0
    %1495 = vmatpush1.msra.mxu0 0.0
    %1496 = vmatprep.subr.mxu0 0.0
    %1497 = vmatpush1.msra.mxu0 0.0
    %1498 = vmatprep.subr.mxu0 0.0
    %1499 = vmatpush1.msra.mxu0 0.0
    %1500 = vmatprep.subr.mxu0 0.0
    %1501 = vmatpush1.msra.mxu0 0.0
    %1502 = vmatprep.subr.mxu0 0.0
    %1503 = vmatpush1.msra.mxu0 0.0
    %1504 = vmatprep.subr.mxu0 0.0
    %1505 = vmatpush1.msra.mxu0 0.0
    %1506 = vmatprep.subr.mxu0 0.0
    %1507 = vmatpush1.msra.mxu0 0.0
    %1508 = vmatprep.subr.mxu0 0.0
    %1509 = vmatpush1.msra.mxu0 0.0
    %1510 = vmatprep.mubr.f32.mxu0 0.0
    %1511 = vmatmul.mubr.f32.gmra.mrb[0].mxu0 %v1415
    %v1512 = vpop.f32.mrb[0].mxu0
    %v1513 = vadd.f32 %v1444, %v1512
    %v1514 = vpop.f32.mrb[0].mxu0
    %1515 = vmatprep.mubr.f32.mxu0 0.0
    %1516 = vmatmul.mubr.f32.gmra.mrb[0].mxu0 %v1416
    %v1517 = vpop.f32.mrb[0].mxu0
    %v1518 = vadd.f32 %v1444, %v1517
    %v1519 = vpop.f32.mrb[0].mxu0
    %1520 = vmatprep.mubr.f32.mxu0 0.0
    %1521 = vmatmul.mubr.f32.gmra.mrb[0].mxu0 %v1417
    %v1522 = vpop.f32.mrb[0].mxu0
    %v1523 = vadd.f32 %v1444, %v1522
    %v1524 = vpop.f32.mrb[0].mxu0
    %1525 = vmatprep.mubr.f32.mxu0 0.0
    %1526 = vmatmul.mubr.f32.gmra.mrb[0].mxu0 %v1418
    %v1527 = vpop.f32.mrb[0].mxu0
    %v1528 = vadd.f32 %v1444, %v1527
    %v1529 = vpop.f32.mrb[0].mxu0
    %1530 = vmatprep.mubr.f32.mxu0 0.0
    %1531 = vmatmul.mubr.f32.gmra.mrb[0].mxu0 %v1419
    %v1532 = vpop.f32.mrb[0].mxu0
    %v1533 = vadd.f32 %v1444, %v1532
    %v1534 = vpop.f32.mrb[0].mxu0
    %1535 = vmatprep.mubr.f32.mxu0 0.0
    %1536 = vmatmul.mubr.f32.gmra.mrb[0].mxu0 %v1420
    %v1537 = vpop.f32.mrb[0].mxu0
    %v1538 = vadd.f32 %v1444, %v1537
    %v1539 = vpop.f32.mrb[0].mxu0
    %1540 = vmatprep.mubr.f32.mxu0 0.0
    %1541 = vmatmul.mubr.f32.gmra.mrb[0].mxu0 %v1421
    %v1542 = vpop.f32.mrb[0].mxu0
    %v1543 = vadd.f32 %v1444, %v1542
    %v1544 = vpop.f32.mrb[0].mxu0
    %1545 = vmatprep.mubr.f32.mxu0 0.0
    %1546 = vmatmul.mubr.f32.gmra.mrb[0].mxu0 %v1422
    %v1547 = vpop.f32.mrb[0].mxu0
    %v1548 = vadd.f32 %v1444, %v1547
    %v1549 = vpop.f32.mrb[0].mxu0
    %1550 = vdwg.mxu0
    %v1551 = vmul.f32 %v1513, %v125
    %v1552 = vmul.f32 %v1518, %v130
    %v1553 = vmul.f32 %v1523, %v135
    %v1554 = vmul.f32 %v1528, %v140
    %v1555 = vmul.f32 %v1533, %v145
    %v1556 = vmul.f32 %v1538, %v150
    %v1557 = vmul.f32 %v1543, %v155
    %v1558 = vmul.f32 %v1548, %v160
    %vm1575 = vcmask 1041408
    %v1576 = vrot.slane %v1551, 6
    %v1577 = vrot.slane %v162, 6
    %v1578 = vrot.slane %v1552, 6
    %v1579 = vsel %vm1575, %v1576, %v1578
    %v1580 = vrot.slane %v163, 6
    %v1581 = vsel %vm1575, %v1577, %v1580
    %v1582 = vrot.slane %v1553, 6
    %v1583 = vsel %vm1575, %v1578, %v1582
    %v1584 = vrot.slane %v164, 6
    %v1585 = vsel %vm1575, %v1580, %v1584
    %v1586 = vrot.slane %v1554, 6
    %v1587 = vsel %vm1575, %v1582, %v1586
    %v1588 = vrot.slane %v165, 6
    %v1589 = vsel %vm1575, %v1584, %v1588
    %v1590 = vrot.slane %v1555, 6
    %v1591 = vsel %vm1575, %v1586, %v1590
    %v1592 = vrot.slane %v166, 6
    %v1593 = vsel %vm1575, %v1588, %v1592
    %v1594 = vrot.slane %v1556, 6
    %v1595 = vsel %vm1575, %v1590, %v1594
    %v1596 = vrot.slane %v167, 6
    %v1597 = vsel %vm1575, %v1592, %v1596
    %v1598 = vrot.slane %v1557, 6
    %v1599 = vsel %vm1575, %v1594, %v1598
    %v1600 = vrot.slane %v168, 6
    %v1601 = vsel %vm1575, %v1596, %v1600
    %v1602 = vrot.slane %v1558, 6
    %v1603 = vsel %vm1575, %v1598, %v1602
    %v1604 = vrot.slane %v169, 6
    %v1605 = vsel %vm1575, %v1600, %v1604
    %1624 = vst [vmem:[#allocation3] sm:$0xfc] %v1576
    %1625 = vst [vmem:[#allocation3 + $0x8] sm:$0xfc] %v1577
    %1626 = vst [vmem:[#allocation3 + $0x10] sm:$0xff] %v1579
    %1627 = vst [vmem:[#allocation3 + $0x18] sm:$0xff] %v1581
    %1628 = vst [vmem:[#allocation3 + $0x20] sm:$0xff] %v1583
    %1629 = vst [vmem:[#allocation3 + $0x28] sm:$0xff] %v1585
    %1630 = vst [vmem:[#allocation3 + $0x30] sm:$0xff] %v1587
    %1631 = vst [vmem:[#allocation3 + $0x38] sm:$0xff] %v1589
    %1632 = vst [vmem:[#allocation3 + $0x40] sm:$0xff] %v1591
    %1633 = vst [vmem:[#allocation3 + $0x48] sm:$0xff] %v1593
    %1634 = vst [vmem:[#allocation3 + $0x50] sm:$0xff] %v1595
    %1635 = vst [vmem:[#allocation3 + $0x58] sm:$0xff] %v1597
    %1636 = vst [vmem:[#allocation3 + $0x60] sm:$0xff] %v1599
    %1637 = vst [vmem:[#allocation3 + $0x68] sm:$0xff] %v1601
    %1638 = vst [vmem:[#allocation3 + $0x70] sm:$0xff] %v1603
    %1639 = vst [vmem:[#allocation3 + $0x78] sm:$0xff] %v1605
    %1640 = vst [vmem:[#allocation3 + $0x80] sm:$0x3] %v1602
    %1641 = vst [vmem:[#allocation3 + $0x88] sm:$0x3] %v1604
    %v1642 = vld [vmem:[#allocation3] sm:$0xff]
    %v1643 = vld [vmem:[#allocation3 + $0x8] sm:$0xff]
    %v1644 = vld [vmem:[#allocation3 + $0x10] sm:$0xff]
    %v1645 = vld [vmem:[#allocation3 + $0x18] sm:$0xff]
    %v1646 = vld [vmem:[#allocation3 + $0x20] sm:$0xff]
    %v1647 = vld [vmem:[#allocation3 + $0x28] sm:$0xff]
    %v1648 = vld [vmem:[#allocation3 + $0x30] sm:$0xff]
    %v1649 = vld [vmem:[#allocation3 + $0x38] sm:$0xff]
    %v1650 = vld [vmem:[#allocation3 + $0x40] sm:$0xff]
    %v1651 = vld [vmem:[#allocation3 + $0x48] sm:$0xff]
    %v1652 = vld [vmem:[#allocation3 + $0x50] sm:$0xff]
    %v1653 = vld [vmem:[#allocation3 + $0x58] sm:$0xff]
    %v1654 = vld [vmem:[#allocation3 + $0x60] sm:$0xff]
    %v1655 = vld [vmem:[#allocation3 + $0x68] sm:$0xff]
    %v1656 = vld [vmem:[#allocation3 + $0x70] sm:$0xff]
    %v1657 = vld [vmem:[#allocation3 + $0x78] sm:$0xff]
    %v1658 = vld [vmem:[#allocation3] sm:$0xfe]
    %v1659 = vld [vmem:[#allocation3 + $0x8] sm:$0xfe]
    %v1660 = vld [vmem:[#allocation3 + $0x80] sm:$0x1]
    %v1661 = vld [vmem:[#allocation3 + $0x88] sm:$0x1]
    %v1662 = vld [vmem:[#allocation3] sm:$0xfc]
    %v1663 = vld [vmem:[#allocation3 + $0x8] sm:$0xfc]
    %v1664 = vld [vmem:[#allocation3 + $0x80] sm:$0x3]
    %v1665 = vld [vmem:[#allocation3 + $0x88] sm:$0x3]
    %v1666 = vld [vmem:[#allocation3] sm:$0xf8]
    %v1667 = vld [vmem:[#allocation3 + $0x8] sm:$0xf8]
    %v1668 = vld [vmem:[#allocation3 + $0x80] sm:$0x7]
    %v1669 = vld [vmem:[#allocation3 + $0x88] sm:$0x7]
    %v1670 = vld [vmem:[#allocation3] sm:$0xf0]
    %v1671 = vld [vmem:[#allocation3 + $0x8] sm:$0xf0]
    %v1672 = vld [vmem:[#allocation3 + $0x80] sm:$0xf]
    %v1673 = vld [vmem:[#allocation3 + $0x88] sm:$0xf]
    %vm1692 = vcmask 1046528
    %v1693 = vrot.slane %v1658, 1
    %v1694 = vrot.slane %v1644, 1
    %v1695 = vsel %vm1692, %v1693, %v1694
    %v1696 = vrot.slane %v1659, 1
    %v1697 = vrot.slane %v1645, 1
    %v1698 = vsel %vm1692, %v1696, %v1697
    %v1699 = vrot.slane %v1646, 1
    %v1700 = vsel %vm1692, %v1694, %v1699
    %v1701 = vrot.slane %v1647, 1
    %v1702 = vsel %vm1692, %v1697, %v1701
    %v1703 = vrot.slane %v1648, 1
    %v1704 = vsel %vm1692, %v1699, %v1703
    %v1705 = vrot.slane %v1649, 1
    %v1706 = vsel %vm1692, %v1701, %v1705
    %v1707 = vrot.slane %v1650, 1
    %v1708 = vsel %vm1692, %v1703, %v1707
    %v1709 = vrot.slane %v1651, 1
    %v1710 = vsel %vm1692, %v1705, %v1709
    %v1711 = vrot.slane %v1652, 1
    %v1712 = vsel %vm1692, %v1707, %v1711
    %v1713 = vrot.slane %v1653, 1
    %v1714 = vsel %vm1692, %v1709, %v1713
    %v1715 = vrot.slane %v1654, 1
    %v1716 = vsel %vm1692, %v1711, %v1715
    %v1717 = vrot.slane %v1655, 1
    %v1718 = vsel %vm1692, %v1713, %v1717
    %v1719 = vrot.slane %v1656, 1
    %v1720 = vsel %vm1692, %v1715, %v1719
    %v1721 = vrot.slane %v1657, 1
    %v1722 = vsel %vm1692, %v1717, %v1721
    %v1723 = vrot.slane %v1660, 1
    %v1724 = vsel %vm1692, %v1719, %v1723
    %v1725 = vrot.slane %v1661, 1
    %v1726 = vsel %vm1692, %v1721, %v1725
    %vm1747 = vcmask 1045504
    %v1748 = vrot.slane %v1662, 2
    %v1749 = vrot.slane %v1644, 2
    %v1750 = vsel %vm1747, %v1748, %v1749
    %v1751 = vrot.slane %v1663, 2
    %v1752 = vrot.slane %v1645, 2
    %v1753 = vsel %vm1747, %v1751, %v1752
    %v1754 = vrot.slane %v1646, 2
    %v1755 = vsel %vm1747, %v1749, %v1754
    %v1756 = vrot.slane %v1647, 2
    %v1757 = vsel %vm1747, %v1752, %v1756
    %v1758 = vrot.slane %v1648, 2
    %v1759 = vsel %vm1747, %v1754, %v1758
    %v1760 = vrot.slane %v1649, 2
    %v1761 = vsel %vm1747, %v1756, %v1760
    %v1762 = vrot.slane %v1650, 2
    %v1763 = vsel %vm1747, %v1758, %v1762
    %v1764 = vrot.slane %v1651, 2
    %v1765 = vsel %vm1747, %v1760, %v1764
    %v1766 = vrot.slane %v1652, 2
    %v1767 = vsel %vm1747, %v1762, %v1766
    %v1768 = vrot.slane %v1653, 2
    %v1769 = vsel %vm1747, %v1764, %v1768
    %v1770 = vrot.slane %v1654, 2
    %v1771 = vsel %vm1747, %v1766, %v1770
    %v1772 = vrot.slane %v1655, 2
    %v1773 = vsel %vm1747, %v1768, %v1772
    %v1774 = vrot.slane %v1656, 2
    %v1775 = vsel %vm1747, %v1770, %v1774
    %v1776 = vrot.slane %v1657, 2
    %v1777 = vsel %vm1747, %v1772, %v1776
    %v1778 = vrot.slane %v1664, 2
    %v1779 = vsel %vm1747, %v1774, %v1778
    %v1780 = vrot.slane %v1665, 2
    %v1781 = vsel %vm1747, %v1776, %v1780
    %vm1802 = vcmask 1044480
    %v1803 = vrot.slane %v1666, 3
    %v1804 = vrot.slane %v1644, 3
    %v1805 = vsel %vm1802, %v1803, %v1804
    %v1806 = vrot.slane %v1667, 3
    %v1807 = vrot.slane %v1645, 3
    %v1808 = vsel %vm1802, %v1806, %v1807
    %v1809 = vrot.slane %v1646, 3
    %v1810 = vsel %vm1802, %v1804, %v1809
    %v1811 = vrot.slane %v1647, 3
    %v1812 = vsel %vm1802, %v1807, %v1811
    %v1813 = vrot.slane %v1648, 3
    %v1814 = vsel %vm1802, %v1809, %v1813
    %v1815 = vrot.slane %v1649, 3
    %v1816 = vsel %vm1802, %v1811, %v1815
    %v1817 = vrot.slane %v1650, 3
    %v1818 = vsel %vm1802, %v1813, %v1817
    %v1819 = vrot.slane %v1651, 3
    %v1820 = vsel %vm1802, %v1815, %v1819
    %v1821 = vrot.slane %v1652, 3
    %v1822 = vsel %vm1802, %v1817, %v1821
    %v1823 = vrot.slane %v1653, 3
    %v1824 = vsel %vm1802, %v1819, %v1823
    %v1825 = vrot.slane %v1654, 3
    %v1826 = vsel %vm1802, %v1821, %v1825
    %v1827 = vrot.slane %v1655, 3
    %v1828 = vsel %vm1802, %v1823, %v1827
    %v1829 = vrot.slane %v1656, 3
    %v1830 = vsel %vm1802, %v1825, %v1829
    %v1831 = vrot.slane %v1657, 3
    %v1832 = vsel %vm1802, %v1827, %v1831
    %v1833 = vrot.slane %v1668, 3
    %v1834 = vsel %vm1802, %v1829, %v1833
    %v1835 = vrot.slane %v1669, 3
    %v1836 = vsel %vm1802, %v1831, %v1835
    %vm1857 = vcmask 1043456
    %v1858 = vrot.slane %v1670, 4
    %v1859 = vrot.slane %v1644, 4
    %v1860 = vsel %vm1857, %v1858, %v1859
    %v1861 = vrot.slane %v1671, 4
    %v1862 = vrot.slane %v1645, 4
    %v1863 = vsel %vm1857, %v1861, %v1862
    %v1864 = vrot.slane %v1646, 4
    %v1865 = vsel %vm1857, %v1859, %v1864
    %v1866 = vrot.slane %v1647, 4
    %v1867 = vsel %vm1857, %v1862, %v1866
    %v1868 = vrot.slane %v1648, 4
    %v1869 = vsel %vm1857, %v1864, %v1868
    %v1870 = vrot.slane %v1649, 4
    %v1871 = vsel %vm1857, %v1866, %v1870
    %v1872 = vrot.slane %v1650, 4
    %v1873 = vsel %vm1857, %v1868, %v1872
    %v1874 = vrot.slane %v1651, 4
    %v1875 = vsel %vm1857, %v1870, %v1874
    %v1876 = vrot.slane %v1652, 4
    %v1877 = vsel %vm1857, %v1872, %v1876
    %v1878 = vrot.slane %v1653, 4
    %v1879 = vsel %vm1857, %v1874, %v1878
    %v1880 = vrot.slane %v1654, 4
    %v1881 = vsel %vm1857, %v1876, %v1880
    %v1882 = vrot.slane %v1655, 4
    %v1883 = vsel %vm1857, %v1878, %v1882
    %v1884 = vrot.slane %v1656, 4
    %v1885 = vsel %vm1857, %v1880, %v1884
    %v1886 = vrot.slane %v1657, 4
    %v1887 = vsel %vm1857, %v1882, %v1886
    %v1888 = vrot.slane %v1672, 4
    %v1889 = vsel %vm1857, %v1884, %v1888
    %v1890 = vrot.slane %v1673, 4
    %v1891 = vsel %vm1857, %v1886, %v1890
    %v1908 = vld [vmem:[%s10] sm:$0xff]
    %v1909 = vld [vmem:[%s10 + $0x8] sm:$0xff]
    %v1910 = vld [vmem:[%s10 + $0x10] sm:$0xff]
    %v1911 = vld [vmem:[%s10 + $0x18] sm:$0xff]
    %v1912 = vld [vmem:[%s10 + $0x20] sm:$0xff]
    %v1913 = vld [vmem:[%s10 + $0x28] sm:$0xff]
    %v1914 = vld [vmem:[%s10 + $0x30] sm:$0xff]
    %v1915 = vld [vmem:[%s10 + $0x38] sm:$0xff]
    %v1916 = vld [vmem:[%s10 + $0x40] sm:$0xff]
    %v1917 = vld [vmem:[%s10 + $0x48] sm:$0xff]
    %v1918 = vld [vmem:[%s10 + $0x50] sm:$0xff]
    %v1919 = vld [vmem:[%s10 + $0x58] sm:$0xff]
    %v1920 = vld [vmem:[%s10 + $0x60] sm:$0xff]
    %v1921 = vld [vmem:[%s10 + $0x68] sm:$0xff]
    %v1922 = vld [vmem:[%s10 + $0x70] sm:$0xff]
    %v1923 = vld [vmem:[%s10 + $0x78] sm:$0xff]
    %v1924 = vld [vmem:[%s10 + $0x80] sm:$0xff]
    %v1925 = vld [vmem:[%s10 + $0x88] sm:$0xff]
    %v1926 = vld [vmem:[%s10 + $0x90] sm:$0xff]
    %v1927 = vld [vmem:[%s10 + $0x98] sm:$0xff]
    %v1928 = vld [vmem:[%s10 + $0xa0] sm:$0xff]
    %v1929 = vld [vmem:[%s10 + $0xa8] sm:$0xff]
    %v1930 = vld [vmem:[%s10 + $0xb0] sm:$0xff]
    %v1931 = vld [vmem:[%s10 + $0xb8] sm:$0xff]
    %v1932 = vld [vmem:[%s10 + $0xc0] sm:$0xff]
    %v1933 = vld [vmem:[%s10 + $0xc8] sm:$0xff]
    %v1934 = vld [vmem:[%s10 + $0xd0] sm:$0xff]
    %v1935 = vld [vmem:[%s10 + $0xd8] sm:$0xff]
    %v1936 = vld [vmem:[%s10 + $0xe0] sm:$0xff]
    %v1937 = vld [vmem:[%s10 + $0xe8] sm:$0xff]
    %v1938 = vld [vmem:[%s10 + $0xf0] sm:$0xff]
    %v1939 = vld [vmem:[%s10 + $0xf8] sm:$0xff]
    %v1940 = vld [vmem:[%s10 + $0x100] sm:$0xff]
    %v1941 = vld [vmem:[%s10 + $0x108] sm:$0xff]
    %v1942 = vld [vmem:[%s10 + $0x110] sm:$0xff]
    %v1943 = vld [vmem:[%s10 + $0x118] sm:$0xff]
    %v1944 = vld [vmem:[%s10 + $0x120] sm:$0xff]
    %v1945 = vld [vmem:[%s10 + $0x128] sm:$0xff]
    %v1946 = vld [vmem:[%s10 + $0x130] sm:$0xff]
    %v1947 = vld [vmem:[%s10 + $0x138] sm:$0xff]
    %v1948 = vld [vmem:[%s10 + $0x140] sm:$0xff]
    %v1949 = vld [vmem:[%s10 + $0x148] sm:$0xff]
    %v1950 = vld [vmem:[%s10 + $0x150] sm:$0xff]
    %v1951 = vld [vmem:[%s10 + $0x158] sm:$0xff]
    %v1952 = vld [vmem:[%s10 + $0x160] sm:$0xff]
    %v1953 = vld [vmem:[%s10 + $0x168] sm:$0xff]
    %v1954 = vld [vmem:[%s10 + $0x170] sm:$0xff]
    %v1955 = vld [vmem:[%s10 + $0x178] sm:$0xff]
    %v1956 = vld [vmem:[%s10 + $0x180] sm:$0xff]
    %v1957 = vld [vmem:[%s10 + $0x188] sm:$0xff]
    %v1958 = vld [vmem:[%s10 + $0x190] sm:$0xff]
    %v1959 = vld [vmem:[%s10 + $0x198] sm:$0xff]
    %v1960 = vld [vmem:[%s10 + $0x1a0] sm:$0xff]
    %v1961 = vld [vmem:[%s10 + $0x1a8] sm:$0xff]
    %v1962 = vld [vmem:[%s10 + $0x1b0] sm:$0xff]
    %v1963 = vld [vmem:[%s10 + $0x1b8] sm:$0xff]
    %v1964 = vld [vmem:[%s10 + $0x1c0] sm:$0xff]
    %v1965 = vld [vmem:[%s10 + $0x1c8] sm:$0xff]
    %v1966 = vld [vmem:[%s10 + $0x1d0] sm:$0xff]
    %v1967 = vld [vmem:[%s10 + $0x1d8] sm:$0xff]
    %v1968 = vld [vmem:[%s10 + $0x1e0] sm:$0xff]
    %v1969 = vld [vmem:[%s10 + $0x1e8] sm:$0xff]
    %v1970 = vld [vmem:[%s10 + $0x1f0] sm:$0xff]
    %v1971 = vld [vmem:[%s10 + $0x1f8] sm:$0xff]
    %v1972 = vld [vmem:[%s10 + $0x200] sm:$0xff]
    %v1973 = vld [vmem:[%s10 + $0x208] sm:$0xff]
    %v1974 = vld [vmem:[%s10 + $0x210] sm:$0xff]
    %v1975 = vld [vmem:[%s10 + $0x218] sm:$0xff]
    %v1976 = vld [vmem:[%s10 + $0x220] sm:$0xff]
    %v1977 = vld [vmem:[%s10 + $0x228] sm:$0xff]
    %v1978 = vld [vmem:[%s10 + $0x230] sm:$0xff]
    %v1979 = vld [vmem:[%s10 + $0x238] sm:$0xff]
    %v1980 = vld [vmem:[%s10 + $0x240] sm:$0xff]
    %v1981 = vld [vmem:[%s10 + $0x248] sm:$0xff]
    %v1982 = vld [vmem:[%s10 + $0x250] sm:$0xff]
    %v1983 = vld [vmem:[%s10 + $0x258] sm:$0xff]
    %v1984 = vld [vmem:[%s10 + $0x260] sm:$0xff]
    %v1985 = vld [vmem:[%s10 + $0x268] sm:$0xff]
    %v1986 = vld [vmem:[%s10 + $0x270] sm:$0xff]
    %v1987 = vld [vmem:[%s10 + $0x278] sm:$0xff]
    %v1988 = vld [vmem:[%s10 + $0x280] sm:$0xff]
    %v1989 = vld [vmem:[%s10 + $0x288] sm:$0xff]
    %v1990 = vld [vmem:[%s10 + $0x290] sm:$0xff]
    %v1991 = vld [vmem:[%s10 + $0x298] sm:$0xff]
    %v1992 = vld [vmem:[%s10 + $0x2a0] sm:$0xff]
    %v1993 = vld [vmem:[%s10 + $0x2a8] sm:$0xff]
    %v1994 = vld [vmem:[%s10 + $0x2b0] sm:$0xff]
    %v1995 = vld [vmem:[%s10 + $0x2b8] sm:$0xff]
    %v1996 = vld [vmem:[%s10 + $0x2c0] sm:$0xff]
    %v1997 = vld [vmem:[%s10 + $0x2c8] sm:$0xff]
    %v1998 = vld [vmem:[%s10 + $0x2d0] sm:$0xff]
    %v1999 = vld [vmem:[%s10 + $0x2d8] sm:$0xff]
    %v2000 = vld [vmem:[%s10 + $0x2e0] sm:$0xff]
    %v2001 = vld [vmem:[%s10 + $0x2e8] sm:$0xff]
    %v2002 = vld [vmem:[%s10 + $0x2f0] sm:$0xff]
    %v2003 = vld [vmem:[%s10 + $0x2f8] sm:$0xff]
    %v2004 = vld [vmem:[%s10 + $0x300] sm:$0xff]
    %v2005 = vld [vmem:[%s10 + $0x308] sm:$0xff]
    %v2006 = vld [vmem:[%s10 + $0x310] sm:$0xff]
    %v2007 = vld [vmem:[%s10 + $0x318] sm:$0xff]
    %v2008 = vld [vmem:[%s10 + $0x320] sm:$0xff]
    %v2009 = vld [vmem:[%s10 + $0x328] sm:$0xff]
    %v2010 = vld [vmem:[%s10 + $0x330] sm:$0xff]
    %v2011 = vld [vmem:[%s10 + $0x338] sm:$0xff]
    %v2012 = vld [vmem:[%s10 + $0x340] sm:$0xff]
    %v2013 = vld [vmem:[%s10 + $0x348] sm:$0xff]
    %v2014 = vld [vmem:[%s10 + $0x350] sm:$0xff]
    %v2015 = vld [vmem:[%s10 + $0x358] sm:$0xff]
    %v2016 = vld [vmem:[%s10 + $0x360] sm:$0xff]
    %v2017 = vld [vmem:[%s10 + $0x368] sm:$0xff]
    %v2018 = vld [vmem:[%s10 + $0x370] sm:$0xff]
    %v2019 = vld [vmem:[%s10 + $0x378] sm:$0xff]
    %v2020 = vld [vmem:[%s10 + $0x380] sm:$0xff]
    %v2021 = vld [vmem:[%s10 + $0x388] sm:$0xff]
    %v2022 = vld [vmem:[%s10 + $0x390] sm:$0xff]
    %v2023 = vld [vmem:[%s10 + $0x398] sm:$0xff]
    %v2024 = vld [vmem:[%s10 + $0x3a0] sm:$0xff]
    %v2025 = vld [vmem:[%s10 + $0x3a8] sm:$0xff]
    %v2026 = vld [vmem:[%s10 + $0x3b0] sm:$0xff]
    %v2027 = vld [vmem:[%s10 + $0x3b8] sm:$0xff]
    %v2028 = vld [vmem:[%s10 + $0x3c0] sm:$0xff]
    %v2029 = vld [vmem:[%s10 + $0x3c8] sm:$0xff]
    %v2030 = vld [vmem:[%s10 + $0x3d0] sm:$0xff]
    %v2031 = vld [vmem:[%s10 + $0x3d8] sm:$0xff]
    %v2032 = vld [vmem:[%s10 + $0x3e0] sm:$0xff]
    %v2033 = vld [vmem:[%s10 + $0x3e8] sm:$0xff]
    %v2034 = vld [vmem:[%s10 + $0x3f0] sm:$0xff]
    %v2035 = vld [vmem:[%s10 + $0x3f8] sm:$0xff]
    %v2036 = vld [vmem:[%s10 + $0x400] sm:$0xff]
    %v2037 = vld [vmem:[%s10 + $0x408] sm:$0xff]
    %v2038 = vld [vmem:[%s10 + $0x410] sm:$0xff]
    %v2039 = vld [vmem:[%s10 + $0x418] sm:$0xff]
    %v2040 = vld [vmem:[%s10 + $0x420] sm:$0xff]
    %v2041 = vld [vmem:[%s10 + $0x428] sm:$0xff]
    %v2042 = vld [vmem:[%s10 + $0x430] sm:$0xff]
    %v2043 = vld [vmem:[%s10 + $0x438] sm:$0xff]
    %v2044 = vld [vmem:[%s10 + $0x440] sm:$0xff]
    %v2045 = vld [vmem:[%s10 + $0x448] sm:$0xff]
    %v2046 = vld [vmem:[%s10 + $0x450] sm:$0xff]
    %v2047 = vld [vmem:[%s10 + $0x458] sm:$0xff]
    %v2048 = vld [vmem:[%s10 + $0x460] sm:$0xff]
    %v2049 = vld [vmem:[%s10 + $0x468] sm:$0xff]
    %v2050 = vld [vmem:[%s10 + $0x470] sm:$0xff]
    %v2051 = vld [vmem:[%s10 + $0x478] sm:$0xff]
    %v2052 = vld [vmem:[%s10 + $0x480] sm:$0xff]
    %v2053 = vld [vmem:[%s10 + $0x488] sm:$0xff]
    %v2054 = vld [vmem:[%s10 + $0x490] sm:$0xff]
    %v2055 = vld [vmem:[%s10 + $0x498] sm:$0xff]
    %v2056 = vld [vmem:[%s10 + $0x4a0] sm:$0xff]
    %v2057 = vld [vmem:[%s10 + $0x4a8] sm:$0xff]
    %v2058 = vld [vmem:[%s10 + $0x4b0] sm:$0xff]
    %v2059 = vld [vmem:[%s10 + $0x4b8] sm:$0xff]
    %v2060 = vld [vmem:[%s10 + $0x4c0] sm:$0xff]
    %v2061 = vld [vmem:[%s10 + $0x4c8] sm:$0xff]
    %v2062 = vld [vmem:[%s10 + $0x4d0] sm:$0xff]
    %v2063 = vld [vmem:[%s10 + $0x4d8] sm:$0xff]
    %v2064 = vld [vmem:[%s10 + $0x4e0] sm:$0xff]
    %v2065 = vld [vmem:[%s10 + $0x4e8] sm:$0xff]
    %v2066 = vld [vmem:[%s10 + $0x4f0] sm:$0xff]
    %v2067 = vld [vmem:[%s10 + $0x4f8] sm:$0xff]
    %v2068 = vld [vmem:[%s11] sm:$0x1]
    %v2070 = vlaneseq
    %v2071 = vshrl.u32 %v2070, 7
    %v2072 = vsub.s32 0, %v2071
    %v2073 = vrot.slane %v2068, %v2072
    %2075 = vmatprep.subr.mxu0 0.0
    %2076 = vmatpush1.msra.mxu0 %v1908
    %2077 = vmatprep.subr.mxu0 0.0
    %2078 = vmatpush1.msra.mxu0 %v1909
    %2079 = vmatprep.subr.mxu0 0.0
    %2080 = vmatpush1.msra.mxu0 %v1910
    %2081 = vmatprep.subr.mxu0 0.0
    %2082 = vmatpush1.msra.mxu0 %v1911
    %2083 = vmatprep.subr.mxu0 0.0
    %2084 = vmatpush1.msra.mxu0 %v1912
    %2085 = vmatprep.subr.mxu0 0.0
    %2086 = vmatpush1.msra.mxu0 %v1913
    %2087 = vmatprep.subr.mxu0 0.0
    %2088 = vmatpush1.msra.mxu0 %v1914
    %2089 = vmatprep.subr.mxu0 0.0
    %2090 = vmatpush1.msra.mxu0 %v1915
    %2091 = vmatprep.subr.mxu0 0.0
    %2092 = vmatpush1.msra.mxu0 %v1916
    %2093 = vmatprep.subr.mxu0 0.0
    %2094 = vmatpush1.msra.mxu0 %v1917
    %2095 = vmatprep.subr.mxu0 0.0
    %2096 = vmatpush1.msra.mxu0 %v1918
    %2097 = vmatprep.subr.mxu0 0.0
    %2098 = vmatpush1.msra.mxu0 %v1919
    %2099 = vmatprep.subr.mxu0 0.0
    %2100 = vmatpush1.msra.mxu0 %v1920
    %2101 = vmatprep.subr.mxu0 0.0
    %2102 = vmatpush1.msra.mxu0 %v1921
    %2103 = vmatprep.subr.mxu0 0.0
    %2104 = vmatpush1.msra.mxu0 %v1922
    %2105 = vmatprep.subr.mxu0 0.0
    %2106 = vmatpush1.msra.mxu0 %v1923
    %2107 = vmatprep.subr.mxu0 0.0
    %2108 = vmatpush1.msra.mxu0 %v1924
    %2109 = vmatprep.subr.mxu0 0.0
    %2110 = vmatpush1.msra.mxu0 %v1925
    %2111 = vmatprep.subr.mxu0 0.0
    %2112 = vmatpush1.msra.mxu0 %v1926
    %2113 = vmatprep.subr.mxu0 0.0
    %2114 = vmatpush1.msra.mxu0 %v1927
    %2115 = vmatprep.subr.mxu0 0.0
    %2116 = vmatpush1.msra.mxu0 %v1928
    %2117 = vmatprep.subr.mxu0 0.0
    %2118 = vmatpush1.msra.mxu0 %v1929
    %2119 = vmatprep.subr.mxu0 0.0
    %2120 = vmatpush1.msra.mxu0 %v1930
    %2121 = vmatprep.subr.mxu0 0.0
    %2122 = vmatpush1.msra.mxu0 %v1931
    %2123 = vmatprep.subr.mxu0 0.0
    %2124 = vmatpush1.msra.mxu0 %v1932
    %2125 = vmatprep.subr.mxu0 0.0
    %2126 = vmatpush1.msra.mxu0 %v1933
    %2127 = vmatprep.subr.mxu0 0.0
    %2128 = vmatpush1.msra.mxu0 %v1934
    %2129 = vmatprep.subr.mxu0 0.0
    %2130 = vmatpush1.msra.mxu0 %v1935
    %2131 = vmatprep.subr.mxu0 0.0
    %2132 = vmatpush1.msra.mxu0 %v1936
    %2133 = vmatprep.subr.mxu0 0.0
    %2134 = vmatpush1.msra.mxu0 %v1937
    %2135 = vmatprep.subr.mxu0 0.0
    %2136 = vmatpush1.msra.mxu0 %v1938
    %2137 = vmatprep.subr.mxu0 0.0
    %2138 = vmatpush1.msra.mxu0 %v1939
    %2139 = vmatprep.mubr.f32.mxu0 %v1643
    %2140 = vmatmul.mubr.f32.gmra.mrb[0].mxu0 %v1642
    %v2141 = vpop.f32.mrb[0].mxu0
    %v2142 = vadd.f32 %v2073, %v2141
    %v2143 = vpop.f32.mrb[0].mxu0
    %2144 = vmatprep.mubr.f32.mxu0 %v1645
    %2145 = vmatmul.mubr.f32.gmra.mrb[0].mxu0 %v1644
    %v2146 = vpop.f32.mrb[0].mxu0
    %v2147 = vadd.f32 %v2073, %v2146
    %v2148 = vpop.f32.mrb[0].mxu0
    %2149 = vmatprep.mubr.f32.mxu0 %v1647
    %2150 = vmatmul.mubr.f32.gmra.mrb[0].mxu0 %v1646
    %v2151 = vpop.f32.mrb[0].mxu0
    %v2152 = vadd.f32 %v2073, %v2151
    %v2153 = vpop.f32.mrb[0].mxu0
    %2154 = vmatprep.mubr.f32.mxu0 %v1649
    %2155 = vmatmul.mubr.f32.gmra.mrb[0].mxu0 %v1648
    %v2156 = vpop.f32.mrb[0].mxu0
    %v2157 = vadd.f32 %v2073, %v2156
    %v2158 = vpop.f32.mrb[0].mxu0
    %2159 = vmatprep.mubr.f32.mxu0 %v1651
    %2160 = vmatmul.mubr.f32.gmra.mrb[0].mxu0 %v1650
    %v2161 = vpop.f32.mrb[0].mxu0
    %v2162 = vadd.f32 %v2073, %v2161
    %v2163 = vpop.f32.mrb[0].mxu0
    %2164 = vmatprep.mubr.f32.mxu0 %v1653
    %2165 = vmatmul.mubr.f32.gmra.mrb[0].mxu0 %v1652
    %v2166 = vpop.f32.mrb[0].mxu0
    %v2167 = vadd.f32 %v2073, %v2166
    %v2168 = vpop.f32.mrb[0].mxu0
    %2169 = vmatprep.mubr.f32.mxu0 %v1655
    %2170 = vmatmul.mubr.f32.gmra.mrb[0].mxu0 %v1654
    %v2171 = vpop.f32.mrb[0].mxu0
    %v2172 = vadd.f32 %v2073, %v2171
    %v2173 = vpop.f32.mrb[0].mxu0
    %2174 = vmatprep.mubr.f32.mxu0 %v1657
    %2175 = vmatmul.mubr.f32.gmra.mrb[0].mxu0 %v1656
    %v2176 = vpop.f32.mrb[0].mxu0
    %v2177 = vadd.f32 %v2073, %v2176
    %v2178 = vpop.f32.mrb[0].mxu0
    %2179 = vdwg.mxu0
    %2180 = vmatprep.subr.mxu0 0.0
    %2181 = vmatpush1.msra.mxu0 %v1940
    %2182 = vmatprep.subr.mxu0 0.0
    %2183 = vmatpush1.msra.mxu0 %v1941
    %2184 = vmatprep.subr.mxu0 0.0
    %2185 = vmatpush1.msra.mxu0 %v1942
    %2186 = vmatprep.subr.mxu0 0.0
    %2187 = vmatpush1.msra.mxu0 %v1943
    %2188 = vmatprep.subr.mxu0 0.0
    %2189 = vmatpush1.msra.mxu0 %v1944
    %2190 = vmatprep.subr.mxu0 0.0
    %2191 = vmatpush1.msra.mxu0 %v1945
    %2192 = vmatprep.subr.mxu0 0.0
    %2193 = vmatpush1.msra.mxu0 %v1946
    %2194 = vmatprep.subr.mxu0 0.0
    %2195 = vmatpush1.msra.mxu0 %v1947
    %2196 = vmatprep.subr.mxu0 0.0
    %2197 = vmatpush1.msra.mxu0 %v1948
    %2198 = vmatprep.subr.mxu0 0.0
    %2199 = vmatpush1.msra.mxu0 %v1949
    %2200 = vmatprep.subr.mxu0 0.0
    %2201 = vmatpush1.msra.mxu0 %v1950
    %2202 = vmatprep.subr.mxu0 0.0
    %2203 = vmatpush1.msra.mxu0 %v1951
    %2204 = vmatprep.subr.mxu0 0.0
    %2205 = vmatpush1.msra.mxu0 %v1952
    %2206 = vmatprep.subr.mxu0 0.0
    %2207 = vmatpush1.msra.mxu0 %v1953
    %2208 = vmatprep.subr.mxu0 0.0
    %2209 = vmatpush1.msra.mxu0 %v1954
    %2210 = vmatprep.subr.mxu0 0.0
    %2211 = vmatpush1.msra.mxu0 %v1955
    %2212 = vmatprep.subr.mxu0 0.0
    %2213 = vmatpush1.msra.mxu0 %v1956
    %2214 = vmatprep.subr.mxu0 0.0
    %2215 = vmatpush1.msra.mxu0 %v1957
    %2216 = vmatprep.subr.mxu0 0.0
    %2217 = vmatpush1.msra.mxu0 %v1958
    %2218 = vmatprep.subr.mxu0 0.0
    %2219 = vmatpush1.msra.mxu0 %v1959
    %2220 = vmatprep.subr.mxu0 0.0
    %2221 = vmatpush1.msra.mxu0 %v1960
    %2222 = vmatprep.subr.mxu0 0.0
    %2223 = vmatpush1.msra.mxu0 %v1961
    %2224 = vmatprep.subr.mxu0 0.0
    %2225 = vmatpush1.msra.mxu0 %v1962
    %2226 = vmatprep.subr.mxu0 0.0
    %2227 = vmatpush1.msra.mxu0 %v1963
    %2228 = vmatprep.subr.mxu0 0.0
    %2229 = vmatpush1.msra.mxu0 %v1964
    %2230 = vmatprep.subr.mxu0 0.0
    %2231 = vmatpush1.msra.mxu0 %v1965
    %2232 = vmatprep.subr.mxu0 0.0
    %2233 = vmatpush1.msra.mxu0 %v1966
    %2234 = vmatprep.subr.mxu0 0.0
    %2235 = vmatpush1.msra.mxu0 %v1967
    %2236 = vmatprep.subr.mxu0 0.0
    %2237 = vmatpush1.msra.mxu0 %v1968
    %2238 = vmatprep.subr.mxu0 0.0
    %2239 = vmatpush1.msra.mxu0 %v1969
    %2240 = vmatprep.subr.mxu0 0.0
    %2241 = vmatpush1.msra.mxu0 %v1970
    %2242 = vmatprep.subr.mxu0 0.0
    %2243 = vmatpush1.msra.mxu0 %v1971
    %2244 = vmatprep.mubr.f32.mxu0 %v1698
    %2245 = vmatmul.mubr.f32.gmra.mrb[0].mxu0 %v1695
    %v2246 = vpop.f32.mrb[0].mxu0
    %v2247 = vadd.f32 %v2142, %v2246
    %v2248 = vpop.f32.mrb[0].mxu0
    %2249 = vmatprep.mubr.f32.mxu0 %v1702
    %2250 = vmatmul.mubr.f32.gmra.mrb[0].mxu0 %v1700
    %v2251 = vpop.f32.mrb[0].mxu0
    %v2252 = vadd.f32 %v2147, %v2251
    %v2253 = vpop.f32.mrb[0].mxu0
    %2254 = vmatprep.mubr.f32.mxu0 %v1706
    %2255 = vmatmul.mubr.f32.gmra.mrb[0].mxu0 %v1704
    %v2256 = vpop.f32.mrb[0].mxu0
    %v2257 = vadd.f32 %v2152, %v2256
    %v2258 = vpop.f32.mrb[0].mxu0
    %2259 = vmatprep.mubr.f32.mxu0 %v1710
    %2260 = vmatmul.mubr.f32.gmra.mrb[0].mxu0 %v1708
    %v2261 = vpop.f32.mrb[0].mxu0
    %v2262 = vadd.f32 %v2157, %v2261
    %v2263 = vpop.f32.mrb[0].mxu0
    %2264 = vmatprep.mubr.f32.mxu0 %v1714
    %2265 = vmatmul.mubr.f32.gmra.mrb[0].mxu0 %v1712
    %v2266 = vpop.f32.mrb[0].mxu0
    %v2267 = vadd.f32 %v2162, %v2266
    %v2268 = vpop.f32.mrb[0].mxu0
    %2269 = vmatprep.mubr.f32.mxu0 %v1718
    %2270 = vmatmul.mubr.f32.gmra.mrb[0].mxu0 %v1716
    %v2271 = vpop.f32.mrb[0].mxu0
    %v2272 = vadd.f32 %v2167, %v2271
    %v2273 = vpop.f32.mrb[0].mxu0
    %2274 = vmatprep.mubr.f32.mxu0 %v1722
    %2275 = vmatmul.mubr.f32.gmra.mrb[0].mxu0 %v1720
    %v2276 = vpop.f32.mrb[0].mxu0
    %v2277 = vadd.f32 %v2172, %v2276
    %v2278 = vpop.f32.mrb[0].mxu0
    %2279 = vmatprep.mubr.f32.mxu0 %v1726
    %2280 = vmatmul.mubr.f32.gmra.mrb[0].mxu0 %v1724
    %v2281 = vpop.f32.mrb[0].mxu0
    %v2282 = vadd.f32 %v2177, %v2281
    %v2283 = vpop.f32.mrb[0].mxu0
    %2284 = vdwg.mxu0
    %2285 = vmatprep.subr.mxu0 0.0
    %2286 = vmatpush1.msra.mxu0 %v1972
    %2287 = vmatprep.subr.mxu0 0.0
    %2288 = vmatpush1.msra.mxu0 %v1973
    %2289 = vmatprep.subr.mxu0 0.0
    %2290 = vmatpush1.msra.mxu0 %v1974
    %2291 = vmatprep.subr.mxu0 0.0
    %2292 = vmatpush1.msra.mxu0 %v1975
    %2293 = vmatprep.subr.mxu0 0.0
    %2294 = vmatpush1.msra.mxu0 %v1976
    %2295 = vmatprep.subr.mxu0 0.0
    %2296 = vmatpush1.msra.mxu0 %v1977
    %2297 = vmatprep.subr.mxu0 0.0
    %2298 = vmatpush1.msra.mxu0 %v1978
    %2299 = vmatprep.subr.mxu0 0.0
    %2300 = vmatpush1.msra.mxu0 %v1979
    %2301 = vmatprep.subr.mxu0 0.0
    %2302 = vmatpush1.msra.mxu0 %v1980
    %2303 = vmatprep.subr.mxu0 0.0
    %2304 = vmatpush1.msra.mxu0 %v1981
    %2305 = vmatprep.subr.mxu0 0.0
    %2306 = vmatpush1.msra.mxu0 %v1982
    %2307 = vmatprep.subr.mxu0 0.0
    %2308 = vmatpush1.msra.mxu0 %v1983
    %2309 = vmatprep.subr.mxu0 0.0
    %2310 = vmatpush1.msra.mxu0 %v1984
    %2311 = vmatprep.subr.mxu0 0.0
    %2312 = vmatpush1.msra.mxu0 %v1985
    %2313 = vmatprep.subr.mxu0 0.0
    %2314 = vmatpush1.msra.mxu0 %v1986
    %2315 = vmatprep.subr.mxu0 0.0
    %2316 = vmatpush1.msra.mxu0 %v1987
    %2317 = vmatprep.subr.mxu0 0.0
    %2318 = vmatpush1.msra.mxu0 %v1988
    %2319 = vmatprep.subr.mxu0 0.0
    %2320 = vmatpush1.msra.mxu0 %v1989
    %2321 = vmatprep.subr.mxu0 0.0
    %2322 = vmatpush1.msra.mxu0 %v1990
    %2323 = vmatprep.subr.mxu0 0.0
    %2324 = vmatpush1.msra.mxu0 %v1991
    %2325 = vmatprep.subr.mxu0 0.0
    %2326 = vmatpush1.msra.mxu0 %v1992
    %2327 = vmatprep.subr.mxu0 0.0
    %2328 = vmatpush1.msra.mxu0 %v1993
    %2329 = vmatprep.subr.mxu0 0.0
    %2330 = vmatpush1.msra.mxu0 %v1994
    %2331 = vmatprep.subr.mxu0 0.0
    %2332 = vmatpush1.msra.mxu0 %v1995
    %2333 = vmatprep.subr.mxu0 0.0
    %2334 = vmatpush1.msra.mxu0 %v1996
    %2335 = vmatprep.subr.mxu0 0.0
    %2336 = vmatpush1.msra.mxu0 %v1997
    %2337 = vmatprep.subr.mxu0 0.0
    %2338 = vmatpush1.msra.mxu0 %v1998
    %2339 = vmatprep.subr.mxu0 0.0
    %2340 = vmatpush1.msra.mxu0 %v1999
    %2341 = vmatprep.subr.mxu0 0.0
    %2342 = vmatpush1.msra.mxu0 %v2000
    %2343 = vmatprep.subr.mxu0 0.0
    %2344 = vmatpush1.msra.mxu0 %v2001
    %2345 = vmatprep.subr.mxu0 0.0
    %2346 = vmatpush1.msra.mxu0 %v2002
    %2347 = vmatprep.subr.mxu0 0.0
    %2348 = vmatpush1.msra.mxu0 %v2003
    %2349 = vmatprep.mubr.f32.mxu0 %v1753
    %2350 = vmatmul.mubr.f32.gmra.mrb[0].mxu0 %v1750
    %v2351 = vpop.f32.mrb[0].mxu0
    %v2352 = vadd.f32 %v2247, %v2351
    %v2353 = vpop.f32.mrb[0].mxu0
    %2354 = vmatprep.mubr.f32.mxu0 %v1757
    %2355 = vmatmul.mubr.f32.gmra.mrb[0].mxu0 %v1755
    %v2356 = vpop.f32.mrb[0].mxu0
    %v2357 = vadd.f32 %v2252, %v2356
    %v2358 = vpop.f32.mrb[0].mxu0
    %2359 = vmatprep.mubr.f32.mxu0 %v1761
    %2360 = vmatmul.mubr.f32.gmra.mrb[0].mxu0 %v1759
    %v2361 = vpop.f32.mrb[0].mxu0
    %v2362 = vadd.f32 %v2257, %v2361
    %v2363 = vpop.f32.mrb[0].mxu0
    %2364 = vmatprep.mubr.f32.mxu0 %v1765
    %2365 = vmatmul.mubr.f32.gmra.mrb[0].mxu0 %v1763
    %v2366 = vpop.f32.mrb[0].mxu0
    %v2367 = vadd.f32 %v2262, %v2366
    %v2368 = vpop.f32.mrb[0].mxu0
    %2369 = vmatprep.mubr.f32.mxu0 %v1769
    %2370 = vmatmul.mubr.f32.gmra.mrb[0].mxu0 %v1767
    %v2371 = vpop.f32.mrb[0].mxu0
    %v2372 = vadd.f32 %v2267, %v2371
    %v2373 = vpop.f32.mrb[0].mxu0
    %2374 = vmatprep.mubr.f32.mxu0 %v1773
    %2375 = vmatmul.mubr.f32.gmra.mrb[0].mxu0 %v1771
    %v2376 = vpop.f32.mrb[0].mxu0
    %v2377 = vadd.f32 %v2272, %v2376
    %v2378 = vpop.f32.mrb[0].mxu0
    %2379 = vmatprep.mubr.f32.mxu0 %v1777
    %2380 = vmatmul.mubr.f32.gmra.mrb[0].mxu0 %v1775
    %v2381 = vpop.f32.mrb[0].mxu0
    %v2382 = vadd.f32 %v2277, %v2381
    %v2383 = vpop.f32.mrb[0].mxu0
    %2384 = vmatprep.mubr.f32.mxu0 %v1781
    %2385 = vmatmul.mubr.f32.gmra.mrb[0].mxu0 %v1779
    %v2386 = vpop.f32.mrb[0].mxu0
    %v2387 = vadd.f32 %v2282, %v2386
    %v2388 = vpop.f32.mrb[0].mxu0
    %2389 = vdwg.mxu0
    %2390 = vmatprep.subr.mxu0 0.0
    %2391 = vmatpush1.msra.mxu0 %v2004
    %2392 = vmatprep.subr.mxu0 0.0
    %2393 = vmatpush1.msra.mxu0 %v2005
    %2394 = vmatprep.subr.mxu0 0.0
    %2395 = vmatpush1.msra.mxu0 %v2006
    %2396 = vmatprep.subr.mxu0 0.0
    %2397 = vmatpush1.msra.mxu0 %v2007
    %2398 = vmatprep.subr.mxu0 0.0
    %2399 = vmatpush1.msra.mxu0 %v2008
    %2400 = vmatprep.subr.mxu0 0.0
    %2401 = vmatpush1.msra.mxu0 %v2009
    %2402 = vmatprep.subr.mxu0 0.0
    %2403 = vmatpush1.msra.mxu0 %v2010
    %2404 = vmatprep.subr.mxu0 0.0
    %2405 = vmatpush1.msra.mxu0 %v2011
    %2406 = vmatprep.subr.mxu0 0.0
    %2407 = vmatpush1.msra.mxu0 %v2012
    %2408 = vmatprep.subr.mxu0 0.0
    %2409 = vmatpush1.msra.mxu0 %v2013
    %2410 = vmatprep.subr.mxu0 0.0
    %2411 = vmatpush1.msra.mxu0 %v2014
    %2412 = vmatprep.subr.mxu0 0.0
    %2413 = vmatpush1.msra.mxu0 %v2015
    %2414 = vmatprep.subr.mxu0 0.0
    %2415 = vmatpush1.msra.mxu0 %v2016
    %2416 = vmatprep.subr.mxu0 0.0
    %2417 = vmatpush1.msra.mxu0 %v2017
    %2418 = vmatprep.subr.mxu0 0.0
    %2419 = vmatpush1.msra.mxu0 %v2018
    %2420 = vmatprep.subr.mxu0 0.0
    %2421 = vmatpush1.msra.mxu0 %v2019
    %2422 = vmatprep.subr.mxu0 0.0
    %2423 = vmatpush1.msra.mxu0 %v2020
    %2424 = vmatprep.subr.mxu0 0.0
    %2425 = vmatpush1.msra.mxu0 %v2021
    %2426 = vmatprep.subr.mxu0 0.0
    %2427 = vmatpush1.msra.mxu0 %v2022
    %2428 = vmatprep.subr.mxu0 0.0
    %2429 = vmatpush1.msra.mxu0 %v2023
    %2430 = vmatprep.subr.mxu0 0.0
    %2431 = vmatpush1.msra.mxu0 %v2024
    %2432 = vmatprep.subr.mxu0 0.0
    %2433 = vmatpush1.msra.mxu0 %v2025
    %2434 = vmatprep.subr.mxu0 0.0
    %2435 = vmatpush1.msra.mxu0 %v2026
    %2436 = vmatprep.subr.mxu0 0.0
    %2437 = vmatpush1.msra.mxu0 %v2027
    %2438 = vmatprep.subr.mxu0 0.0
    %2439 = vmatpush1.msra.mxu0 %v2028
    %2440 = vmatprep.subr.mxu0 0.0
    %2441 = vmatpush1.msra.mxu0 %v2029
    %2442 = vmatprep.subr.mxu0 0.0
    %2443 = vmatpush1.msra.mxu0 %v2030
    %2444 = vmatprep.subr.mxu0 0.0
    %2445 = vmatpush1.msra.mxu0 %v2031
    %2446 = vmatprep.subr.mxu0 0.0
    %2447 = vmatpush1.msra.mxu0 %v2032
    %2448 = vmatprep.subr.mxu0 0.0
    %2449 = vmatpush1.msra.mxu0 %v2033
    %2450 = vmatprep.subr.mxu0 0.0
    %2451 = vmatpush1.msra.mxu0 %v2034
    %2452 = vmatprep.subr.mxu0 0.0
    %2453 = vmatpush1.msra.mxu0 %v2035
    %2454 = vmatprep.mubr.f32.mxu0 %v1808
    %2455 = vmatmul.mubr.f32.gmra.mrb[0].mxu0 %v1805
    %v2456 = vpop.f32.mrb[0].mxu0
    %v2457 = vadd.f32 %v2352, %v2456
    %v2458 = vpop.f32.mrb[0].mxu0
    %2459 = vmatprep.mubr.f32.mxu0 %v1812
    %2460 = vmatmul.mubr.f32.gmra.mrb[0].mxu0 %v1810
    %v2461 = vpop.f32.mrb[0].mxu0
    %v2462 = vadd.f32 %v2357, %v2461
    %v2463 = vpop.f32.mrb[0].mxu0
    %2464 = vmatprep.mubr.f32.mxu0 %v1816
    %2465 = vmatmul.mubr.f32.gmra.mrb[0].mxu0 %v1814
    %v2466 = vpop.f32.mrb[0].mxu0
    %v2467 = vadd.f32 %v2362, %v2466
    %v2468 = vpop.f32.mrb[0].mxu0
    %2469 = vmatprep.mubr.f32.mxu0 %v1820
    %2470 = vmatmul.mubr.f32.gmra.mrb[0].mxu0 %v1818
    %v2471 = vpop.f32.mrb[0].mxu0
    %v2472 = vadd.f32 %v2367, %v2471
    %v2473 = vpop.f32.mrb[0].mxu0
    %2474 = vmatprep.mubr.f32.mxu0 %v1824
    %2475 = vmatmul.mubr.f32.gmra.mrb[0].mxu0 %v1822
    %v2476 = vpop.f32.mrb[0].mxu0
    %v2477 = vadd.f32 %v2372, %v2476
    %v2478 = vpop.f32.mrb[0].mxu0
    %2479 = vmatprep.mubr.f32.mxu0 %v1828
    %2480 = vmatmul.mubr.f32.gmra.mrb[0].mxu0 %v1826
    %v2481 = vpop.f32.mrb[0].mxu0
    %v2482 = vadd.f32 %v2377, %v2481
    %v2483 = vpop.f32.mrb[0].mxu0
    %2484 = vmatprep.mubr.f32.mxu0 %v1832
    %2485 = vmatmul.mubr.f32.gmra.mrb[0].mxu0 %v1830
    %v2486 = vpop.f32.mrb[0].mxu0
    %v2487 = vadd.f32 %v2382, %v2486
    %v2488 = vpop.f32.mrb[0].mxu0
    %2489 = vmatprep.mubr.f32.mxu0 %v1836
    %2490 = vmatmul.mubr.f32.gmra.mrb[0].mxu0 %v1834
    %v2491 = vpop.f32.mrb[0].mxu0
    %v2492 = vadd.f32 %v2387, %v2491
    %v2493 = vpop.f32.mrb[0].mxu0
    %2494 = vdwg.mxu0
    %2495 = vmatprep.subr.mxu0 0.0
    %2496 = vmatpush1.msra.mxu0 %v2036
    %2497 = vmatprep.subr.mxu0 0.0
    %2498 = vmatpush1.msra.mxu0 %v2037
    %2499 = vmatprep.subr.mxu0 0.0
    %2500 = vmatpush1.msra.mxu0 %v2038
    %2501 = vmatprep.subr.mxu0 0.0
    %2502 = vmatpush1.msra.mxu0 %v2039
    %2503 = vmatprep.subr.mxu0 0.0
    %2504 = vmatpush1.msra.mxu0 %v2040
    %2505 = vmatprep.subr.mxu0 0.0
    %2506 = vmatpush1.msra.mxu0 %v2041
    %2507 = vmatprep.subr.mxu0 0.0
    %2508 = vmatpush1.msra.mxu0 %v2042
    %2509 = vmatprep.subr.mxu0 0.0
    %2510 = vmatpush1.msra.mxu0 %v2043
    %2511 = vmatprep.subr.mxu0 0.0
    %2512 = vmatpush1.msra.mxu0 %v2044
    %2513 = vmatprep.subr.mxu0 0.0
    %2514 = vmatpush1.msra.mxu0 %v2045
    %2515 = vmatprep.subr.mxu0 0.0
    %2516 = vmatpush1.msra.mxu0 %v2046
    %2517 = vmatprep.subr.mxu0 0.0
    %2518 = vmatpush1.msra.mxu0 %v2047
    %2519 = vmatprep.subr.mxu0 0.0
    %2520 = vmatpush1.msra.mxu0 %v2048
    %2521 = vmatprep.subr.mxu0 0.0
    %2522 = vmatpush1.msra.mxu0 %v2049
    %2523 = vmatprep.subr.mxu0 0.0
    %2524 = vmatpush1.msra.mxu0 %v2050
    %2525 = vmatprep.subr.mxu0 0.0
    %2526 = vmatpush1.msra.mxu0 %v2051
    %2527 = vmatprep.subr.mxu0 0.0
    %2528 = vmatpush1.msra.mxu0 %v2052
    %2529 = vmatprep.subr.mxu0 0.0
    %2530 = vmatpush1.msra.mxu0 %v2053
    %2531 = vmatprep.subr.mxu0 0.0
    %2532 = vmatpush1.msra.mxu0 %v2054
    %2533 = vmatprep.subr.mxu0 0.0
    %2534 = vmatpush1.msra.mxu0 %v2055
    %2535 = vmatprep.subr.mxu0 0.0
    %2536 = vmatpush1.msra.mxu0 %v2056
    %2537 = vmatprep.subr.mxu0 0.0
    %2538 = vmatpush1.msra.mxu0 %v2057
    %2539 = vmatprep.subr.mxu0 0.0
    %2540 = vmatpush1.msra.mxu0 %v2058
    %2541 = vmatprep.subr.mxu0 0.0
    %2542 = vmatpush1.msra.mxu0 %v2059
    %2543 = vmatprep.subr.mxu0 0.0
    %2544 = vmatpush1.msra.mxu0 %v2060
    %2545 = vmatprep.subr.mxu0 0.0
    %2546 = vmatpush1.msra.mxu0 %v2061
    %2547 = vmatprep.subr.mxu0 0.0
    %2548 = vmatpush1.msra.mxu0 %v2062
    %2549 = vmatprep.subr.mxu0 0.0
    %2550 = vmatpush1.msra.mxu0 %v2063
    %2551 = vmatprep.subr.mxu0 0.0
    %2552 = vmatpush1.msra.mxu0 %v2064
    %2553 = vmatprep.subr.mxu0 0.0
    %2554 = vmatpush1.msra.mxu0 %v2065
    %2555 = vmatprep.subr.mxu0 0.0
    %2556 = vmatpush1.msra.mxu0 %v2066
    %2557 = vmatprep.subr.mxu0 0.0
    %2558 = vmatpush1.msra.mxu0 %v2067
    %2559 = vmatprep.mubr.f32.mxu0 %v1863
    %2560 = vmatmul.mubr.f32.gmra.mrb[0].mxu0 %v1860
    %v2561 = vpop.f32.mrb[0].mxu0
    %v2562 = vadd.f32 %v2457, %v2561
    %v2563 = vpop.f32.mrb[0].mxu0
    %2564 = vmatprep.mubr.f32.mxu0 %v1867
    %2565 = vmatmul.mubr.f32.gmra.mrb[0].mxu0 %v1865
    %v2566 = vpop.f32.mrb[0].mxu0
    %v2567 = vadd.f32 %v2462, %v2566
    %v2568 = vpop.f32.mrb[0].mxu0
    %2569 = vmatprep.mubr.f32.mxu0 %v1871
    %2570 = vmatmul.mubr.f32.gmra.mrb[0].mxu0 %v1869
    %v2571 = vpop.f32.mrb[0].mxu0
    %v2572 = vadd.f32 %v2467, %v2571
    %v2573 = vpop.f32.mrb[0].mxu0
    %2574 = vmatprep.mubr.f32.mxu0 %v1875
    %2575 = vmatmul.mubr.f32.gmra.mrb[0].mxu0 %v1873
    %v2576 = vpop.f32.mrb[0].mxu0
    %v2577 = vadd.f32 %v2472, %v2576
    %v2578 = vpop.f32.mrb[0].mxu0
    %2579 = vmatprep.mubr.f32.mxu0 %v1879
    %2580 = vmatmul.mubr.f32.gmra.mrb[0].mxu0 %v1877
    %v2581 = vpop.f32.mrb[0].mxu0
    %v2582 = vadd.f32 %v2477, %v2581
    %v2583 = vpop.f32.mrb[0].mxu0
    %2584 = vmatprep.mubr.f32.mxu0 %v1883
    %2585 = vmatmul.mubr.f32.gmra.mrb[0].mxu0 %v1881
    %v2586 = vpop.f32.mrb[0].mxu0
    %v2587 = vadd.f32 %v2482, %v2586
    %v2588 = vpop.f32.mrb[0].mxu0
    %2589 = vmatprep.mubr.f32.mxu0 %v1887
    %2590 = vmatmul.mubr.f32.gmra.mrb[0].mxu0 %v1885
    %v2591 = vpop.f32.mrb[0].mxu0
    %v2592 = vadd.f32 %v2487, %v2591
    %v2593 = vpop.f32.mrb[0].mxu0
    %2594 = vmatprep.mubr.f32.mxu0 %v1891
    %2595 = vmatmul.mubr.f32.gmra.mrb[0].mxu0 %v1889
    %v2596 = vpop.f32.mrb[0].mxu0
    %v2597 = vadd.f32 %v2492, %v2596
    %v2598 = vpop.f32.mrb[0].mxu0
    %2599 = vdwg.mxu0
    %v2600 = vld [vmem:[#allocation7] sm:$0xff]
    %v2601 = vld [vmem:[#allocation7 + $0x8] sm:$0xff]
    %v2602 = vld [vmem:[#allocation7 + $0x10] sm:$0xff]
    %v2603 = vld [vmem:[#allocation7 + $0x18] sm:$0xff]
    %v2604 = vld [vmem:[#allocation7 + $0x20] sm:$0xff]
    %v2605 = vld [vmem:[#allocation7 + $0x28] sm:$0xff]
    %v2606 = vld [vmem:[#allocation7 + $0x30] sm:$0xff]
    %v2607 = vld [vmem:[#allocation7 + $0x38] sm:$0xff]
    %v2608 = vld [vmem:[#allocation7 + $0x40] sm:$0xff]
    %v2609 = vld [vmem:[#allocation7 + $0x48] sm:$0xff]
    %v2610 = vld [vmem:[#allocation7 + $0x50] sm:$0xff]
    %v2611 = vld [vmem:[#allocation7 + $0x58] sm:$0xff]
    %v2612 = vld [vmem:[#allocation7 + $0x60] sm:$0xff]
    %v2613 = vld [vmem:[#allocation7 + $0x68] sm:$0xff]
    %v2614 = vld [vmem:[#allocation7 + $0x70] sm:$0xff]
    %v2615 = vld [vmem:[#allocation7 + $0x78] sm:$0xff]
    %v2616 = vld [vmem:[%s13] sm:$0x1]
    %v2618 = vlaneseq
    %v2619 = vshrl.u32 %v2618, 7
    %v2620 = vsub.s32 0, %v2619
    %v2621 = vrot.slane %v2616, %v2620
    %2623 = vmatprep.subr.mxu0 0.0
    %2624 = vmatpush1.msra.mxu0 %v2600
    %2625 = vmatprep.subr.mxu0 0.0
    %2626 = vmatpush1.msra.mxu0 %v2601
    %2627 = vmatprep.subr.mxu0 0.0
    %2628 = vmatpush1.msra.mxu0 %v2602
    %2629 = vmatprep.subr.mxu0 0.0
    %2630 = vmatpush1.msra.mxu0 %v2603
    %2631 = vmatprep.subr.mxu0 0.0
    %2632 = vmatpush1.msra.mxu0 %v2604
    %2633 = vmatprep.subr.mxu0 0.0
    %2634 = vmatpush1.msra.mxu0 %v2605
    %2635 = vmatprep.subr.mxu0 0.0
    %2636 = vmatpush1.msra.mxu0 %v2606
    %2637 = vmatprep.subr.mxu0 0.0
    %2638 = vmatpush1.msra.mxu0 %v2607
    %2639 = vmatprep.subr.mxu0 0.0
    %2640 = vmatpush1.msra.mxu0 %v2608
    %2641 = vmatprep.subr.mxu0 0.0
    %2642 = vmatpush1.msra.mxu0 %v2609
    %2643 = vmatprep.subr.mxu0 0.0
    %2644 = vmatpush1.msra.mxu0 %v2610
    %2645 = vmatprep.subr.mxu0 0.0
    %2646 = vmatpush1.msra.mxu0 %v2611
    %2647 = vmatprep.subr.mxu0 0.0
    %2648 = vmatpush1.msra.mxu0 %v2612
    %2649 = vmatprep.subr.mxu0 0.0
    %2650 = vmatpush1.msra.mxu0 %v2613
    %2651 = vmatprep.subr.mxu0 0.0
    %2652 = vmatpush1.msra.mxu0 %v2614
    %2653 = vmatprep.subr.mxu0 0.0
    %2654 = vmatpush1.msra.mxu0 %v2615
    %2655 = vmatprep.subr.mxu0 0.0
    %2656 = vmatpush1.msra.mxu0 0.0
    %2657 = vmatprep.subr.mxu0 0.0
    %2658 = vmatpush1.msra.mxu0 0.0
    %2659 = vmatprep.subr.mxu0 0.0
    %2660 = vmatpush1.msra.mxu0 0.0
    %2661 = vmatprep.subr.mxu0 0.0
    %2662 = vmatpush1.msra.mxu0 0.0
    %2663 = vmatprep.subr.mxu0 0.0
    %2664 = vmatpush1.msra.mxu0 0.0
    %2665 = vmatprep.subr.mxu0 0.0
    %2666 = vmatpush1.msra.mxu0 0.0
    %2667 = vmatprep.subr.mxu0 0.0
    %2668 = vmatpush1.msra.mxu0 0.0
    %2669 = vmatprep.subr.mxu0 0.0
    %2670 = vmatpush1.msra.mxu0 0.0
    %2671 = vmatprep.subr.mxu0 0.0
    %2672 = vmatpush1.msra.mxu0 0.0
    %2673 = vmatprep.subr.mxu0 0.0
    %2674 = vmatpush1.msra.mxu0 0.0
    %2675 = vmatprep.subr.mxu0 0.0
    %2676 = vmatpush1.msra.mxu0 0.0
    %2677 = vmatprep.subr.mxu0 0.0
    %2678 = vmatpush1.msra.mxu0 0.0
    %2679 = vmatprep.subr.mxu0 0.0
    %2680 = vmatpush1.msra.mxu0 0.0
    %2681 = vmatprep.subr.mxu0 0.0
    %2682 = vmatpush1.msra.mxu0 0.0
    %2683 = vmatprep.subr.mxu0 0.0
    %2684 = vmatpush1.msra.mxu0 0.0
    %2685 = vmatprep.subr.mxu0 0.0
    %2686 = vmatpush1.msra.mxu0 0.0
    %2687 = vmatprep.mubr.f32.mxu0 0.0
    %2688 = vmatmul.mubr.f32.gmra.mrb[0].mxu0 %v2562
    %v2689 = vpop.f32.mrb[0].mxu0
    %v2690 = vadd.f32 %v2621, %v2689
    %v2691 = vpop.f32.mrb[0].mxu0
    %2692 = vmatprep.mubr.f32.mxu0 0.0
    %2693 = vmatmul.mubr.f32.gmra.mrb[0].mxu0 %v2567
    %v2694 = vpop.f32.mrb[0].mxu0
    %v2695 = vadd.f32 %v2621, %v2694
    %v2696 = vpop.f32.mrb[0].mxu0
    %2697 = vmatprep.mubr.f32.mxu0 0.0
    %2698 = vmatmul.mubr.f32.gmra.mrb[0].mxu0 %v2572
    %v2699 = vpop.f32.mrb[0].mxu0
    %v2700 = vadd.f32 %v2621, %v2699
    %v2701 = vpop.f32.mrb[0].mxu0
    %2702 = vmatprep.mubr.f32.mxu0 0.0
    %2703 = vmatmul.mubr.f32.gmra.mrb[0].mxu0 %v2577
    %v2704 = vpop.f32.mrb[0].mxu0
    %v2705 = vadd.f32 %v2621, %v2704
    %v2706 = vpop.f32.mrb[0].mxu0
    %2707 = vmatprep.mubr.f32.mxu0 0.0
    %2708 = vmatmul.mubr.f32.gmra.mrb[0].mxu0 %v2582
    %v2709 = vpop.f32.mrb[0].mxu0
    %v2710 = vadd.f32 %v2621, %v2709
    %v2711 = vpop.f32.mrb[0].mxu0
    %2712 = vmatprep.mubr.f32.mxu0 0.0
    %2713 = vmatmul.mubr.f32.gmra.mrb[0].mxu0 %v2587
    %v2714 = vpop.f32.mrb[0].mxu0
    %v2715 = vadd.f32 %v2621, %v2714
    %v2716 = vpop.f32.mrb[0].mxu0
    %2717 = vmatprep.mubr.f32.mxu0 0.0
    %2718 = vmatmul.mubr.f32.gmra.mrb[0].mxu0 %v2592
    %v2719 = vpop.f32.mrb[0].mxu0
    %v2720 = vadd.f32 %v2621, %v2719
    %v2721 = vpop.f32.mrb[0].mxu0
    %2722 = vmatprep.mubr.f32.mxu0 0.0
    %2723 = vmatmul.mubr.f32.gmra.mrb[0].mxu0 %v2597
    %v2724 = vpop.f32.mrb[0].mxu0
    %v2725 = vadd.f32 %v2621, %v2724
    %v2726 = vpop.f32.mrb[0].mxu0
    %2727 = vdwg.mxu0
    %v2728 = vtanh.pop %v2690
    %v2729 = vtanh.pop %v2695
    %v2730 = vtanh.pop %v2700
    %v2731 = vtanh.pop %v2705
    %v2732 = vtanh.pop %v2710
    %v2733 = vtanh.pop %v2715
    %v2734 = vtanh.pop %v2720
    %v2735 = vtanh.pop %v2725
    %v2736 = vadd.f32 %v1551, %v2728
    %v2737 = vadd.f32 %v1552, %v2729
    %v2738 = vadd.f32 %v1553, %v2730
    %v2739 = vadd.f32 %v1554, %v2731
    %v2740 = vadd.f32 %v1555, %v2732
    %v2741 = vadd.f32 %v1556, %v2733
    %v2742 = vadd.f32 %v1557, %v2734
    %v2743 = vadd.f32 %v1558, %v2735
    %v2744 = vmul.f32 %v2736, %v125
    %v2745 = vmul.f32 %v2737, %v130
    %v2746 = vmul.f32 %v2738, %v135
    %v2747 = vmul.f32 %v2739, %v140
    %v2748 = vmul.f32 %v2740, %v145
    %v2749 = vmul.f32 %v2741, %v150
    %v2750 = vmul.f32 %v2742, %v155
    %v2751 = vmul.f32 %v2743, %v160
    %2752 = vst [vmem:[#allocation9] sm:$0xff] %v1551
    %2753 = vst [vmem:[#allocation9 + $0x8] sm:$0xff] %v1552
    %2754 = vst [vmem:[#allocation9 + $0x10] sm:$0xff] %v1553
    %2755 = vst [vmem:[#allocation9 + $0x18] sm:$0xff] %v1554
    %2756 = vst [vmem:[#allocation9 + $0x20] sm:$0xff] %v1555
    %2757 = vst [vmem:[#allocation9 + $0x28] sm:$0xff] %v1556
    %2758 = vst [vmem:[#allocation9 + $0x30] sm:$0xff] %v1557
    %2759 = vst [vmem:[#allocation9 + $0x38] sm:$0xff] %v1558
    %2760 = vst [vmem:[#allocation10] sm:$0xff] %v2744
    %2761 = vst [vmem:[#allocation10 + $0x8] sm:$0xff] %v2745
    %2762 = vst [vmem:[#allocation10 + $0x10] sm:$0xff] %v2746
    %2763 = vst [vmem:[#allocation10 + $0x18] sm:$0xff] %v2747
    %2764 = vst [vmem:[#allocation10 + $0x20] sm:$0xff] %v2748
    %2765 = vst [vmem:[#allocation10 + $0x28] sm:$0xff] %v2749
    %2766 = vst [vmem:[#allocation10 + $0x30] sm:$0xff] %v2750
    %2767 = vst [vmem:[#allocation10 + $0x38] sm:$0xff] %v2751
    // Predicated region
    $region66: #{portaspeech_forward.3} parent=1 // pred_check
      _
    $region67: #{portaspeech_forward.3} parent=1 // pred_check_branch
      %2769 = sbr.rel (0) target = $region69
    $region68: #{portaspeech_forward.3} parent=1 // pred_region
      %s2771 = ssub.s32 1024, 1024
      %2772 = vsyncadd [#allocation6], %s2771
      %s2773 = sshll.u32 [#allocation9], 4
      %s2774 = int_to_ptr.vmem [resolvable:$true] %s2773
      %2779 = dma.vmem_to_hbm [thread:$0]  %s2774, 1024, %s14, [#allocation6], 128, 128, 8
    $region69: #{portaspeech_forward.3} parent=1 // pred_fallthru
      _
    // Predicated region
    $region70: #{portaspeech_forward.3} parent=1 // pred_check
      _
    $region71: #{portaspeech_forward.3} parent=1 // pred_check_branch
      %2781 = sbr.rel (0) target = $region73
    $region72: #{portaspeech_forward.3} parent=1 // pred_region
      %s2783 = ssub.s32 1024, 1024
      %2784 = vsyncadd [#allocation11], %s2783
      %s2785 = sshll.u32 [#allocation10], 4
      %s2786 = int_to_ptr.vmem [resolvable:$true] %s2785
      %2791 = dma.vmem_to_hbm [thread:$0]  %s2786, 1024, %s15, [#allocation11], 128, 128, 8
    $region73: #{portaspeech_forward.3} parent=1 // pred_fallthru
      _
    // Predicated region
    $region74: #{portaspeech_forward.3} parent=1 // pred_check
      _
    $region75: #{portaspeech_forward.3} parent=1 // pred_check_branch
      %2793 = sbr.rel (0) target = $region77
    $region76: #{portaspeech_forward.3} parent=1 // pred_region
      %2794 = dma.done [#allocation6], 1024
    $region77: #{portaspeech_forward.3} parent=1 // pred_fallthru
      _
    // Predicated region
    $region78: #{portaspeech_forward.3} parent=1 // pred_check
      _
    $region79: #{portaspeech_forward.3} parent=1 // pred_check_branch
      %2796 = sbr.rel (0) target = $region81
    $region80: #{portaspeech_forward.3} parent=1 // pred_region
      %2797 = dma.done [#allocation11], 1024
    $region81: #{portaspeech_forward.3} parent=1 // pred_fallthru
      _
    %2798 = vsyncpa [#allocation5], 1
    %2799 = vsyncpa [#allocation8], 1
    %2800 = vsyncpa [#allocation6], 1
    %2801 = vsyncpa [#allocation11], 1

</llo_original>
